<compile_context>
chip_gen: v5e
topology: v5e:2x2
jax: 0.10.0
libtpu: 0.0.40
codegen_flags: <defaults>
</compile_context>

<pallas_src>
import numpy as np
import jax
import jax.numpy as jnp
from jax import lax
from jax.experimental import pallas as pl
from jax.experimental.pallas import tpu as pltpu

# ----------------------------- model config ---------------------------------
HIDDEN        = 32            # hidden_dim (d_model)
NUM_HEADS     = 4             # num_heads
HEAD_DIM      = HIDDEN // NUM_HEADS
DFF           = 2048          # nn.TransformerDecoderLayer default dim_feedforward
FF_CHUNK      = 512           # DFF chunk size inside the kernel
NUM_LAYERS    = 2
NUM_CLASSES   = 12
FC_PAD        = 128           # lane-dense padded logits width (>= NUM_CLASSES)
LN_EPS        = 1e-5          # nn.LayerNorm default eps
PADDING_VALUE = 0
NEG           = -1e30         # finite "masked" value (safer than -inf)
VEC_ROWS      = 16            # rows in the coalesced small-vector slab

# Row layout of the coalesced (NUM_LAYERS, VEC_ROWS, HIDDEN) small-vector slab
R_SA_BQ, R_SA_BK, R_SA_BV, R_SA_BO = 0, 1, 2, 3
R_CA_BQ, R_CA_BK, R_CA_BV, R_CA_BO = 4, 5, 6, 7
R_L2B = 8
R_LN1G, R_LN1B, R_LN2G, R_LN2B, R_LN3G, R_LN3B = 9, 10, 11, 12, 13, 14


# ------------------------- in-kernel helper math -----------------------------
def _layer_norm(x, gamma, beta):
    mu = jnp.mean(x, axis=-1, keepdims=True)
    xc = x - mu
    var = jnp.mean(xc * xc, axis=-1, keepdims=True)        # biased var (torch)
    return xc * lax.rsqrt(var + LN_EPS) * gamma + beta


def _mha(q_src, kv_src, qkv_w_ref, wo_ref, bq, bk, bv, bo, mask):
    """Batch-folded multi-head attention.

    q_src : (M, D) f32   — queries for ALL batch rows
    kv_src: (N, D) f32   — keys/values for ALL batch rows
    qkv_w_ref : (3*H*D, HEAD_DIM) bf16  per-head pre-split (in, out) weights,
                order [q heads | k heads | v heads], scale folded into Wq.
    wo_ref    : (D, D) f32  pre-transposed output projection (in, out)
    bq/bk/bv/bo : (1, D) f32  (bq pre-scaled)
    mask : (M, N) additive f32 mask (causal + padding + block-diagonal batch)
    """
    qb = q_src.astype(jnp.bfloat16)
    kvb = kv_src.astype(jnp.bfloat16)
    acc = None
    for h in range(NUM_HEADS):
        hb = slice(h * HEAD_DIM, (h + 1) * HEAD_DIM)
        wq = qkv_w_ref[(0 * NUM_HEADS + h) * HIDDEN:(0 * NUM_HEADS + h + 1) * HIDDEN, :]
        wk = qkv_w_ref[(1 * NUM_HEADS + h) * HIDDEN:(1 * NUM_HEADS + h + 1) * HIDDEN, :]
        wv = qkv_w_ref[(2 * NUM_HEADS + h) * HIDDEN:(2 * NUM_HEADS + h + 1) * HIDDEN, :]
        q = jnp.dot(qb, wq, preferred_element_type=jnp.float32) + bq[:, hb]   # (M, 8)
        k = jnp.dot(kvb, wk, preferred_element_type=jnp.float32) + bk[:, hb]  # (N, 8)
        v = jnp.dot(kvb, wv, preferred_element_type=jnp.float32) + bv[:, hb]  # (N, 8)
        # scores: contract head dims directly (q @ k.T without an explicit .T)
        s = lax.dot_general(q, k, (((1,), (1,)), ((), ())),
                            preferred_element_type=jnp.float32) + mask        # (M, N)
        s = s - jnp.max(s, axis=-1, keepdims=True)
        p = jnp.exp(s)
        p = p * pl.reciprocal(jnp.sum(p, axis=-1, keepdims=True), approx=True)
        oh = jnp.dot(p, v, preferred_element_type=jnp.float32)                # (M, 8)
        # accumulate through the matching sublane block of the out-projection
        ctb = jnp.dot(oh, wo_ref[hb, :], preferred_element_type=jnp.float32)  # (M, D)
        acc = ctb if acc is None else acc + ctb
    return acc + bo


# --------------------------- fused decoder kernel ----------------------------
def fused_decoder_kernel(x_ref, mem_ref, smask_ref, cmask_ref,
                         sa_qkv_ref, sa_wo_ref, ca_qkv_ref, ca_wo_ref,
                         lin1_w_ref, lin1_b_ref, lin2_w_ref, vecs_ref,
                         fc_w_ref, fc_b_ref, out_ref, x_scr):
    l = pl.program_id(0)

    @pl.when(l == 0)
    def _():
        x_scr[...] = x_ref[...]

    x = x_scr[...]                         # (M, D) f32 running activation
    vec = vecs_ref[...]                    # (VEC_ROWS, D) f32 small params

    # ---- self-attention + add & norm (post-norm) ----
    sa = _mha(x, x, sa_qkv_ref, sa_wo_ref,
              vec[R_SA_BQ:R_SA_BQ + 1], vec[R_SA_BK:R_SA_BK + 1],
              vec[R_SA_BV:R_SA_BV + 1], vec[R_SA_BO:R_SA_BO + 1],
              smask_ref[...])
    x = _layer_norm(x + sa, vec[R_LN1G:R_LN1G + 1], vec[R_LN1B:R_LN1B + 1])

    # ---- cross-attention + add & norm (no memory mask in this module) ----
    ca = _mha(x, mem_ref[...], ca_qkv_ref, ca_wo_ref,
              vec[R_CA_BQ:R_CA_BQ + 1], vec[R_CA_BK:R_CA_BK + 1],
              vec[R_CA_BV:R_CA_BV + 1], vec[R_CA_BO:R_CA_BO + 1],
              cmask_ref[...])
    x = _layer_norm(x + ca, vec[R_LN2G:R_LN2G + 1], vec[R_LN2B:R_LN2B + 1])

    # ---- feed-forward (relu), chunked over DFF to limit vreg pressure ----
    xb = x.astype(jnp.bfloat16)
    ff = jnp.zeros(x.shape, jnp.float32)
    for c in range(DFF // FF_CHUNK):
        cs = slice(c * FF_CHUNK, (c + 1) * FF_CHUNK)
        h = jnp.dot(xb, lin1_w_ref[:, cs],
                    preferred_element_type=jnp.float32) + lin1_b_ref[:, cs]
        h = jnp.maximum(h, 0.0).astype(jnp.bfloat16)
        ff = ff + jnp.dot(h, lin2_w_ref[cs, :],
                          preferred_element_type=jnp.float32)
    ff = ff + vec[R_L2B:R_L2B + 1]
    x = _layer_norm(x + ff, vec[R_LN3G:R_LN3G + 1], vec[R_LN3B:R_LN3B + 1])

    x_scr[...] = x

    # ---- fc_out into a lane-dense (M, 128) slab on the last layer ----
    @pl.when(l == pl.num_programs(0) - 1)
    def _():
        out_ref[...] = (jnp.dot(x.astype(jnp.bfloat16), fc_w_ref[...],
                                preferred_element_type=jnp.float32)
                        + fc_b_ref[...])


# --------------------------- parameters / packing ----------------------------
def make_positional_encoding(max_len, d_model):
    position = np.arange(max_len, dtype=np.float32)[:, None]
    div_term = np.exp(np.arange(0, d_model, 2, dtype=np.float32) *
                      (-np.log(10000.0) / d_model))
    pe = np.zeros((max_len, d_model), dtype=np.float32)
    pe[:, 0::2] = np.sin(position * div_term)
    pe[:, 1::2] = np.cos(position * div_term)
    return jnp.asarray(pe)


def init_params(key):
    """Random parameters in PyTorch layout (out_features, in_features)."""
    def nrm(k, shape, scale=0.02):
        return scale * jax.random.normal(k, shape, dtype=jnp.float32)

    keys = jax.random.split(key, 4 + NUM_LAYERS * 12)
    ki = iter(keys)

    emb = nrm(next(ki), (NUM_CLASSES, HIDDEN))
    emb = emb.at[PADDING_VALUE].set(0.0)          # padding_idx=0 row is zero

    layers = []
    for _ in range(NUM_LAYERS):
        layers.append(dict(
            sa_in_w=nrm(next(ki), (3 * HIDDEN, HIDDEN)),
            sa_in_b=nrm(next(ki), (1, 3 * HIDDEN)),
            sa_out_w=nrm(next(ki), (HIDDEN, HIDDEN)),
            sa_out_b=nrm(next(ki), (1, HIDDEN)),
            ca_in_w=nrm(next(ki), (3 * HIDDEN, HIDDEN)),
            ca_in_b=nrm(next(ki), (1, 3 * HIDDEN)),
            ca_out_w=nrm(next(ki), (HIDDEN, HIDDEN)),
            ca_out_b=nrm(next(ki), (1, HIDDEN)),
            lin1_w=nrm(next(ki), (DFF, HIDDEN)),
            lin1_b=nrm(next(ki), (1, DFF)),
            lin2_w=nrm(next(ki), (HIDDEN, DFF)),
            lin2_b=nrm(next(ki), (1, HIDDEN)),
            ln1_g=jnp.ones((1, HIDDEN), jnp.float32),
            ln1_b=jnp.zeros((1, HIDDEN), jnp.float32),
            ln2_g=jnp.ones((1, HIDDEN), jnp.float32),
            ln2_b=jnp.zeros((1, HIDDEN), jnp.float32),
            ln3_g=jnp.ones((1, HIDDEN), jnp.float32),
            ln3_b=jnp.zeros((1, HIDDEN), jnp.float32),
        ))

    fc_w = nrm(next(ki), (NUM_CLASSES, HIDDEN))
    fc_b = nrm(next(ki), (1, NUM_CLASSES))

    return dict(embedding=emb, pe=make_positional_encoding(5000, HIDDEN),
                layers=layers, fc_w=fc_w, fc_b=fc_b)


def pack_params(params):
    """One-time host-side packing: per-head split, (in,out) transpose, scale
    folding, bf16 cast of MXU weights, coalesced small-vector slab, padded
    lane-dense fc_out."""
    D, HD, H = HIDDEN, HEAD_DIM, NUM_HEADS
    scale = 1.0 / float(np.sqrt(HD))

    def per_head(w, s=1.0):
        # w: (D, D) PyTorch (out, in) -> (H*D, HD) stacked per-head (in, out)
        return jnp.concatenate(
            [(w[h * HD:(h + 1) * HD, :] * s).T for h in range(H)], axis=0)

    sa_qkv, sa_wo, ca_qkv, ca_wo = [], [], [], []
    lin1_w, lin1_b, lin2_w, vecs = [], [], [], []
    for lp in params["layers"]:
        w, b = lp["sa_in_w"], lp["sa_in_b"]
        sa_qkv.append(jnp.concatenate([per_head(w[0:D], scale),
                                       per_head(w[D:2 * D]),
                                       per_head(w[2 * D:3 * D])], axis=0))
        sa_wo.append(lp["sa_out_w"].T)
        wc, bc = lp["ca_in_w"], lp["ca_in_b"]
        ca_qkv.append(jnp.concatenate([per_head(wc[0:D], scale),
                                       per_head(wc[D:2 * D]),
                                       per_head(wc[2 * D:3 * D])], axis=0))
        ca_wo.append(lp["ca_out_w"].T)
        lin1_w.append(lp["lin1_w"].T)
        lin1_b.append(lp["lin1_b"])
        lin2_w.append(lp["lin2_w"].T)
        vecs.append(jnp.concatenate([
            b[:, 0:D] * scale, b[:, D:2 * D], b[:, 2 * D:3 * D], lp["sa_out_b"],
            bc[:, 0:D] * scale, bc[:, D:2 * D], bc[:, 2 * D:3 * D], lp["ca_out_b"],
            lp["lin2_b"],
            lp["ln1_g"], lp["ln1_b"], lp["ln2_g"], lp["ln2_b"],
            lp["ln3_g"], lp["ln3_b"],
            jnp.zeros((1, D), jnp.float32),
        ], axis=0))                                            # (VEC_ROWS, D)

    fc_w_pad = jnp.zeros((D, FC_PAD), jnp.float32).at[:, :NUM_CLASSES].set(
        params["fc_w"].T)
    fc_b_pad = jnp.zeros((1, FC_PAD), jnp.float32).at[:, :NUM_CLASSES].set(
        params["fc_b"])

    return dict(
        embedding=params["embedding"],
        pe=params["pe"],
        sa_qkv_w=jnp.stack(sa_qkv).astype(jnp.bfloat16),   # (L, 3*H*D, HD)
        sa_wo=jnp.stack(sa_wo).astype(jnp.float32),        # (L, D, D)
        ca_qkv_w=jnp.stack(ca_qkv).astype(jnp.bfloat16),
        ca_wo=jnp.stack(ca_wo).astype(jnp.float32),
        lin1_w=jnp.stack(lin1_w).astype(jnp.bfloat16),     # (L, D, DFF)
        lin1_b=jnp.stack(lin1_b).astype(jnp.float32),      # (L, 1, DFF)
        lin2_w=jnp.stack(lin2_w).astype(jnp.bfloat16),     # (L, DFF, D)
        vecs=jnp.stack(vecs).astype(jnp.float32),          # (L, VEC_ROWS, D)
        fc_w=fc_w_pad.astype(jnp.bfloat16),                # (D, FC_PAD)
        fc_b=fc_b_pad,                                     # (1, FC_PAD)
    )


# ------------------------------- jitted forward ------------------------------
@jax.jit
def transformer_decoder_forward(packed, memory, tgt, tgt_mask,
                                tgt_key_padding_mask):
    """memory: (B,S,D) f32, tgt: (B,T) int32, tgt_mask: (T,T) additive float,
    tgt_key_padding_mask: (B,T) bool.  Returns (B,T,NUM_CLASSES) f32 logits."""
    B, T = tgt.shape
    S = memory.shape[1]
    M, N = B * T, B * S

    # Embedding gather + positional encoding (glue; dropout == identity).
    x = jnp.take(packed["embedding"], tgt, axis=0) + packed["pe"][None, :T, :]
    x2d = x.reshape(M, HIDDEN).astype(jnp.float32)
    mem2d = memory.reshape(N, HIDDEN).astype(jnp.float32)

    # Block-diagonal additive masks over the batch-folded score matrices.
    if tgt_mask is None:
        base = jnp.zeros((T, T), jnp.float32)
    else:
        base = jnp.maximum(tgt_mask.astype(jnp.float32), NEG)  # clamp -inf
    m = jnp.broadcast_to(base[None], (B, T, T))
    if tgt_key_padding_mask is not None:
        m = m + jnp.where(tgt_key_padding_mask, NEG, 0.0)[:, None, :]
    same = (jnp.arange(B)[:, None, None, None] ==
            jnp.arange(B)[None, None, :, None])                 # (B,1,B,1)
    smask = jnp.where(same, m[:, :, None, :], NEG).reshape(M, M)
    cmask = jnp.broadcast_to(jnp.where(same, 0.0, NEG),
                             (B, T, B, S)).reshape(M, N)

    def fixed2d(shape):
        return pl.BlockSpec(shape, lambda l: (0, 0))

    def per_layer(shape):
        return pl.BlockSpec((None,) + shape, lambda l: (l, 0, 0))

    out_pad = pl.pallas_call(
        fused_decoder_kernel,
        grid=(NUM_LAYERS,),
        in_specs=[
            fixed2d((M, HIDDEN)),                            # x2d
            fixed2d((N, HIDDEN)),                            # mem2d
            fixed2d((M, M)),                                 # smask
            fixed2d((M, N)),                                 # cmask
            per_layer((3 * NUM_HEADS * HIDDEN, HEAD_DIM)),   # sa_qkv_w
            per_layer((HIDDEN, HIDDEN)),                     # sa_wo
            per_layer((3 * NUM_HEADS * HIDDEN, HEAD_DIM)),   # ca_qkv_w
            per_layer((HIDDEN, HIDDEN)),                     # ca_wo
            per_layer((HIDDEN, DFF)),                        # lin1_w
            per_layer((1, DFF)),                             # lin1_b
            per_layer((DFF, HIDDEN)),                        # lin2_w
            per_layer((VEC_ROWS, HIDDEN)),                   # vecs slab
            fixed2d((HIDDEN, FC_PAD)),                       # fc_w
            fixed2d((1, FC_PAD)),                            # fc_b
        ],
        out_specs=fixed2d((M, FC_PAD)),
        out_shape=jax.ShapeDtypeStruct((M, FC_PAD), jnp.float32),
        scratch_shapes=[pltpu.VMEM((M, HIDDEN), jnp.float32)],
        compiler_params=pltpu.CompilerParams(
            dimension_semantics=("arbitrary",)),
    )(x2d, mem2d, smask, cmask,
      packed["sa_qkv_w"], packed["sa_wo"], packed["ca_qkv_w"], packed["ca_wo"],
      packed["lin1_w"], packed["lin1_b"], packed["lin2_w"], packed["vecs"],
      packed["fc_w"], packed["fc_b"])

    # Slice the lane-dense slab back to the real class count.
    return out_pad[:, :NUM_CLASSES].reshape(B, T, NUM_CLASSES)


# ---------------------------------- main --------------------------------------
if __name__ == "__main__":
    B, T, S = 2, 8, 16

    key = jax.random.PRNGKey(0)
    k_param, k_mem, k_tgt = jax.random.split(key, 3)

    params = init_params(k_param)
    packed = pack_params(params)            # one-time host-side packing
    packed = jax.tree_util.tree_map(jax.block_until_ready, packed)

    memory = jax.random.normal(k_mem, (B, S, HIDDEN), dtype=jnp.float32)
    tgt = jax.random.randint(k_tgt, (B, T), 1, NUM_CLASSES).astype(jnp.int32)
    tgt = tgt.at[1, T - 1].set(PADDING_VALUE)           # one padded position
    tgt_key_padding_mask = (tgt == PADDING_VALUE)       # (B, T) bool

    # standard causal mask (float, -inf above the diagonal)
    causal = jnp.where(
        jnp.arange(T)[None, :] > jnp.arange(T)[:, None], float("-inf"), 0.0
    ).astype(jnp.float32)

    out = transformer_decoder_forward(packed, memory, tgt, causal,
                                      tgt_key_padding_mask)
    out = jax.block_until_ready(out)

    assert out.shape == (B, T, NUM_CLASSES), out.shape
    assert bool(jnp.isfinite(out).all()), "non-finite values in output"
    print("KERNEL_OK")
</pallas_src>

<mosaic_0001>
module attributes {stable_mosaic.version = 11 : i64} {
  func.func @fused_decoder_kernel(%arg0: i32, %arg1: memref<16x32xf32, #tpu.memory_space<vmem>>, %arg2: memref<32x32xf32, #tpu.memory_space<vmem>>, %arg3: memref<16x16xf32, #tpu.memory_space<vmem>>, %arg4: memref<16x32xf32, #tpu.memory_space<vmem>>, %arg5: memref<1x384x8xbf16, #tpu.memory_space<vmem>>, %arg6: memref<1x32x32xf32, #tpu.memory_space<vmem>>, %arg7: memref<1x384x8xbf16, #tpu.memory_space<vmem>>, %arg8: memref<1x32x32xf32, #tpu.memory_space<vmem>>, %arg9: memref<1x32x2048xbf16, #tpu.memory_space<vmem>>, %arg10: memref<1x1x2048xf32, #tpu.memory_space<vmem>>, %arg11: memref<1x2048x32xbf16, #tpu.memory_space<vmem>>, %arg12: memref<1x16x32xf32, #tpu.memory_space<vmem>>, %arg13: memref<32x128xbf16, #tpu.memory_space<vmem>>, %arg14: memref<1x128xf32, #tpu.memory_space<vmem>>, %arg15: memref<16x128xf32, #tpu.memory_space<vmem>>, %arg16: memref<16x32xf32, #tpu.memory_space<vmem>>) attributes {dimension_semantics = [#tpu.dimension_semantics<arbitrary>], iteration_bounds = array<i64: 2>, scalar_prefetch = 0 : i64, scratch_operands = 1 : i64, tpu.core_type = #tpu.core_type<tc>, window_params = [{pipeline_mode = #tpu.pipeline_mode<synchronous>, transform_indices = @transform_0, window_bounds = array<i64: 16, 32>}, {pipeline_mode = #tpu.pipeline_mode<synchronous>, transform_indices = @transform_1, window_bounds = array<i64: 32, 32>}, {pipeline_mode = #tpu.pipeline_mode<synchronous>, transform_indices = @transform_2, window_bounds = array<i64: 16, 16>}, {pipeline_mode = #tpu.pipeline_mode<synchronous>, transform_indices = @transform_3, window_bounds = array<i64: 16, 32>}, {transform_indices = @transform_4, window_bounds = array<i64: 1, 384, 8>}, {transform_indices = @transform_5, window_bounds = array<i64: 1, 32, 32>}, {transform_indices = @transform_6, window_bounds = array<i64: 1, 384, 8>}, {transform_indices = @transform_7, window_bounds = array<i64: 1, 32, 32>}, {transform_indices = @transform_8, window_bounds = array<i64: 1, 32, 2048>}, {transform_indices = @transform_9, window_bounds = array<i64: 1, 1, 2048>}, {transform_indices = @transform_10, window_bounds = array<i64: 1, 2048, 32>}, {transform_indices = @transform_11, window_bounds = array<i64: 1, 16, 32>}, {pipeline_mode = #tpu.pipeline_mode<synchronous>, transform_indices = @transform_12, window_bounds = array<i64: 32, 128>}, {pipeline_mode = #tpu.pipeline_mode<synchronous>, transform_indices = @transform_13, window_bounds = array<i64: 1, 128>}, {pipeline_mode = #tpu.pipeline_mode<synchronous>, transform_indices = @transform_14, window_bounds = array<i64: 16, 128>}]} {
    %c0_i32 = arith.constant 0 : i32
    %0 = arith.cmpi eq, %arg0, %c0_i32 : i32
    %1 = arith.extui %0 : i1 to i32
    %c0_i32_0 = arith.constant 0 : i32
    %2 = arith.cmpi ne, %1, %c0_i32_0 : i32
    scf.if %2 {
      %c0_220 = arith.constant 0 : index
      %c0_221 = arith.constant 0 : index
      %438 = vector.load %arg1[%c0_220, %c0_221] : memref<16x32xf32, #tpu.memory_space<vmem>>, vector<16x32xf32>
      %c0_222 = arith.constant 0 : index
      %c0_223 = arith.constant 0 : index
      %439 = vector.load %arg16[%c0_222, %c0_223] : memref<16x32xf32, #tpu.memory_space<vmem>>, vector<16x32xf32>
      tpu.vector_store %arg16[%c0_222, %c0_223], %438 {strides = array<i32>} : memref<16x32xf32, #tpu.memory_space<vmem>>, vector<16x32xf32>,
    } else {
    }
    %c0 = arith.constant 0 : index
    %c0_1 = arith.constant 0 : index
    %3 = vector.load %arg16[%c0, %c0_1] : memref<16x32xf32, #tpu.memory_space<vmem>>, vector<16x32xf32>
    %c0_2 = arith.constant 0 : index
    %c0_3 = arith.constant 0 : index
    %c0_4 = arith.constant 0 : index
    %4 = vector.load %arg12[%c0_2, %c0_3, %c0_4] : memref<1x16x32xf32, #tpu.memory_space<vmem>>, vector<1x16x32xf32>
    %5 = vector.shape_cast %4 : vector<1x16x32xf32> to vector<16x32xf32>
    %6 = vector.extract_strided_slice %5 {offsets = [0, 0], sizes = [1, 32], strides = [1, 1]} : vector<16x32xf32> to vector<1x32xf32>
    %7 = vector.extract_strided_slice %5 {offsets = [1, 0], sizes = [1, 32], strides = [1, 1]} : vector<16x32xf32> to vector<1x32xf32>
    %8 = vector.extract_strided_slice %5 {offsets = [2, 0], sizes = [1, 32], strides = [1, 1]} : vector<16x32xf32> to vector<1x32xf32>
    %9 = vector.extract_strided_slice %5 {offsets = [3, 0], sizes = [1, 32], strides = [1, 1]} : vector<16x32xf32> to vector<1x32xf32>
    %c0_5 = arith.constant 0 : index
    %c0_6 = arith.constant 0 : index
    %10 = vector.load %arg3[%c0_5, %c0_6] : memref<16x16xf32, #tpu.memory_space<vmem>>, vector<16x16xf32>
    %11 = arith.truncf %3 : vector<16x32xf32> to vector<16x32xbf16>
    %12 = arith.truncf %3 : vector<16x32xf32> to vector<16x32xbf16>
    %c0_7 = arith.constant 0 : index
    %c0_8 = arith.constant 0 : index
    %c0_9 = arith.constant 0 : index
    %13 = vector.load %arg5[%c0_7, %c0_8, %c0_9] : memref<1x384x8xbf16, #tpu.memory_space<vmem>>, vector<1x32x8xbf16>
    %14 = vector.shape_cast %13 : vector<1x32x8xbf16> to vector<32x8xbf16>
    %c0_10 = arith.constant 0 : index
    %c128 = arith.constant 128 : index
    %c0_11 = arith.constant 0 : index
    %15 = vector.load %arg5[%c0_10, %c128, %c0_11] : memref<1x384x8xbf16, #tpu.memory_space<vmem>>, vector<1x32x8xbf16>
    %16 = vector.shape_cast %15 : vector<1x32x8xbf16> to vector<32x8xbf16>
    %c0_12 = arith.constant 0 : index
    %c256 = arith.constant 256 : index
    %c0_13 = arith.constant 0 : index
    %17 = vector.load %arg5[%c0_12, %c256, %c0_13] : memref<1x384x8xbf16, #tpu.memory_space<vmem>>, vector<1x32x8xbf16>
    %18 = vector.shape_cast %17 : vector<1x32x8xbf16> to vector<32x8xbf16>
    %cst = arith.constant dense<0.000000e+00> : vector<16x8xf32>
    %19 = tpu.matmul %11, %14, %cst {dimension_numbers = #tpu.dot_dimension_numbers<[1], [0], [0], [1], [0, 0, 1, 1], [], []>} : vector<16x32xbf16>, vector<32x8xbf16>, vector<16x8xf32> -> vector<16x8xf32>
    %20 = vector.extract_strided_slice %6 {offsets = [0, 0], sizes = [1, 8], strides = [1, 1]} : vector<1x32xf32> to vector<1x8xf32>
    %21 = vector.broadcast %20 : vector<1x8xf32> to vector<16x8xf32>
    %22 = arith.addf %19, %21 : vector<16x8xf32>
    %cst_14 = arith.constant dense<0.000000e+00> : vector<16x8xf32>
    %23 = tpu.matmul %12, %16, %cst_14 {dimension_numbers = #tpu.dot_dimension_numbers<[1], [0], [0], [1], [0, 0, 1, 1], [], []>} : vector<16x32xbf16>, vector<32x8xbf16>, vector<16x8xf32> -> vector<16x8xf32>
    %24 = vector.extract_strided_slice %7 {offsets = [0, 0], sizes = [1, 8], strides = [1, 1]} : vector<1x32xf32> to vector<1x8xf32>
    %25 = vector.broadcast %24 : vector<1x8xf32> to vector<16x8xf32>
    %26 = arith.addf %23, %25 : vector<16x8xf32>
    %cst_15 = arith.constant dense<0.000000e+00> : vector<16x8xf32>
    %27 = tpu.matmul %12, %18, %cst_15 {dimension_numbers = #tpu.dot_dimension_numbers<[1], [0], [0], [1], [0, 0, 1, 1], [], []>} : vector<16x32xbf16>, vector<32x8xbf16>, vector<16x8xf32> -> vector<16x8xf32>
    %28 = vector.extract_strided_slice %8 {offsets = [0, 0], sizes = [1, 8], strides = [1, 1]} : vector<1x32xf32> to vector<1x8xf32>
    %29 = vector.broadcast %28 : vector<1x8xf32> to vector<16x8xf32>
    %30 = arith.addf %27, %29 : vector<16x8xf32>
    %cst_16 = arith.constant dense<0.000000e+00> : vector<16x16xf32>
    %31 = tpu.matmul %22, %26, %cst_16 {dimension_numbers = #tpu.dot_dimension_numbers<[1], [1], [0], [0], [0, 0, 1, 0], [], []>} : vector<16x8xf32>, vector<16x8xf32>, vector<16x16xf32> -> vector<16x16xf32>
    %32 = arith.addf %31, %10 : vector<16x16xf32>
    %cst_17 = arith.constant dense<0xFF800000> : vector<16xf32>
    %33 = vector.multi_reduction <maximumf>, %32, %cst_17 [1] : vector<16x16xf32> to vector<16xf32>
    %34 = vector.shape_cast %33 : vector<16xf32> to vector<16x1xf32>
    %35 = vector.broadcast %34 : vector<16x1xf32> to vector<16x16xf32>
    %36 = arith.subf %32, %35 : vector<16x16xf32>
    %37 = math.exp %36 : vector<16x16xf32>
    %cst_18 = arith.constant dense<0.000000e+00> : vector<16xf32>
    %38 = vector.multi_reduction <add>, %37, %cst_18 [1] : vector<16x16xf32> to vector<16xf32>
    %39 = vector.shape_cast %38 : vector<16xf32> to vector<16x1xf32>
    %40 = tpu.reciprocal %39 {approx = true} : vector<16x1xf32> -> vector<16x1xf32>
    %41 = vector.broadcast %40 : vector<16x1xf32> to vector<16x16xf32>
    %42 = arith.mulf %37, %41 : vector<16x16xf32>
    %cst_19 = arith.constant dense<0.000000e+00> : vector<16x8xf32>
    %43 = tpu.matmul %42, %30, %cst_19 {dimension_numbers = #tpu.dot_dimension_numbers<[1], [0], [0], [1], [0, 0, 1, 1], [], []>} : vector<16x16xf32>, vector<16x8xf32>, vector<16x8xf32> -> vector<16x8xf32>
    %c0_20 = arith.constant 0 : index
    %c0_21 = arith.constant 0 : index
    %c0_22 = arith.constant 0 : index
    %44 = vector.load %arg6[%c0_20, %c0_21, %c0_22] : memref<1x32x32xf32, #tpu.memory_space<vmem>>, vector<1x8x32xf32>
    %45 = vector.shape_cast %44 : vector<1x8x32xf32> to vector<8x32xf32>
    %cst_23 = arith.constant dense<0.000000e+00> : vector<16x32xf32>
    %46 = tpu.matmul %43, %45, %cst_23 {dimension_numbers = #tpu.dot_dimension_numbers<[1], [0], [0], [1], [0, 0, 1, 1], [], []>} : vector<16x8xf32>, vector<8x32xf32>, vector<16x32xf32> -> vector<16x32xf32>
    %c0_24 = arith.constant 0 : index
    %c32 = arith.constant 32 : index
    %c0_25 = arith.constant 0 : index
    %47 = vector.load %arg5[%c0_24, %c32, %c0_25] : memref<1x384x8xbf16, #tpu.memory_space<vmem>>, vector<1x32x8xbf16>
    %48 = vector.shape_cast %47 : vector<1x32x8xbf16> to vector<32x8xbf16>
    %c0_26 = arith.constant 0 : index
    %c160 = arith.constant 160 : index
    %c0_27 = arith.constant 0 : index
    %49 = vector.load %arg5[%c0_26, %c160, %c0_27] : memref<1x384x8xbf16, #tpu.memory_space<vmem>>, vector<1x32x8xbf16>
    %50 = vector.shape_cast %49 : vector<1x32x8xbf16> to vector<32x8xbf16>
    %c0_28 = arith.constant 0 : index
    %c288 = arith.constant 288 : index
    %c0_29 = arith.constant 0 : index
    %51 = vector.load %arg5[%c0_28, %c288, %c0_29] : memref<1x384x8xbf16, #tpu.memory_space<vmem>>, vector<1x32x8xbf16>
    %52 = vector.shape_cast %51 : vector<1x32x8xbf16> to vector<32x8xbf16>
    %cst_30 = arith.constant dense<0.000000e+00> : vector<16x8xf32>
    %53 = tpu.matmul %11, %48, %cst_30 {dimension_numbers = #tpu.dot_dimension_numbers<[1], [0], [0], [1], [0, 0, 1, 1], [], []>} : vector<16x32xbf16>, vector<32x8xbf16>, vector<16x8xf32> -> vector<16x8xf32>
    %54 = vector.extract_strided_slice %6 {offsets = [0, 8], sizes = [1, 8], strides = [1, 1]} : vector<1x32xf32> to vector<1x8xf32>
    %55 = vector.broadcast %54 : vector<1x8xf32> to vector<16x8xf32>
    %56 = arith.addf %53, %55 : vector<16x8xf32>
    %cst_31 = arith.constant dense<0.000000e+00> : vector<16x8xf32>
    %57 = tpu.matmul %12, %50, %cst_31 {dimension_numbers = #tpu.dot_dimension_numbers<[1], [0], [0], [1], [0, 0, 1, 1], [], []>} : vector<16x32xbf16>, vector<32x8xbf16>, vector<16x8xf32> -> vector<16x8xf32>
    %58 = vector.extract_strided_slice %7 {offsets = [0, 8], sizes = [1, 8], strides = [1, 1]} : vector<1x32xf32> to vector<1x8xf32>
    %59 = vector.broadcast %58 : vector<1x8xf32> to vector<16x8xf32>
    %60 = arith.addf %57, %59 : vector<16x8xf32>
    %cst_32 = arith.constant dense<0.000000e+00> : vector<16x8xf32>
    %61 = tpu.matmul %12, %52, %cst_32 {dimension_numbers = #tpu.dot_dimension_numbers<[1], [0], [0], [1], [0, 0, 1, 1], [], []>} : vector<16x32xbf16>, vector<32x8xbf16>, vector<16x8xf32> -> vector<16x8xf32>
    %62 = vector.extract_strided_slice %8 {offsets = [0, 8], sizes = [1, 8], strides = [1, 1]} : vector<1x32xf32> to vector<1x8xf32>
    %63 = vector.broadcast %62 : vector<1x8xf32> to vector<16x8xf32>
    %64 = arith.addf %61, %63 : vector<16x8xf32>
    %cst_33 = arith.constant dense<0.000000e+00> : vector<16x16xf32>
    %65 = tpu.matmul %56, %60, %cst_33 {dimension_numbers = #tpu.dot_dimension_numbers<[1], [1], [0], [0], [0, 0, 1, 0], [], []>} : vector<16x8xf32>, vector<16x8xf32>, vector<16x16xf32> -> vector<16x16xf32>
    %66 = arith.addf %65, %10 : vector<16x16xf32>
    %cst_34 = arith.constant dense<0xFF800000> : vector<16xf32>
    %67 = vector.multi_reduction <maximumf>, %66, %cst_34 [1] : vector<16x16xf32> to vector<16xf32>
    %68 = vector.shape_cast %67 : vector<16xf32> to vector<16x1xf32>
    %69 = vector.broadcast %68 : vector<16x1xf32> to vector<16x16xf32>
    %70 = arith.subf %66, %69 : vector<16x16xf32>
    %71 = math.exp %70 : vector<16x16xf32>
    %cst_35 = arith.constant dense<0.000000e+00> : vector<16xf32>
    %72 = vector.multi_reduction <add>, %71, %cst_35 [1] : vector<16x16xf32> to vector<16xf32>
    %73 = vector.shape_cast %72 : vector<16xf32> to vector<16x1xf32>
    %74 = tpu.reciprocal %73 {approx = true} : vector<16x1xf32> -> vector<16x1xf32>
    %75 = vector.broadcast %74 : vector<16x1xf32> to vector<16x16xf32>
    %76 = arith.mulf %71, %75 : vector<16x16xf32>
    %cst_36 = arith.constant dense<0.000000e+00> : vector<16x8xf32>
    %77 = tpu.matmul %76, %64, %cst_36 {dimension_numbers = #tpu.dot_dimension_numbers<[1], [0], [0], [1], [0, 0, 1, 1], [], []>} : vector<16x16xf32>, vector<16x8xf32>, vector<16x8xf32> -> vector<16x8xf32>
    %c0_37 = arith.constant 0 : index
    %c8 = arith.constant 8 : index
    %c0_38 = arith.constant 0 : index
    %78 = vector.load %arg6[%c0_37, %c8, %c0_38] : memref<1x32x32xf32, #tpu.memory_space<vmem>>, vector<1x8x32xf32>
    %79 = vector.shape_cast %78 : vector<1x8x32xf32> to vector<8x32xf32>
    %cst_39 = arith.constant dense<0.000000e+00> : vector<16x32xf32>
    %80 = tpu.matmul %77, %79, %cst_39 {dimension_numbers = #tpu.dot_dimension_numbers<[1], [0], [0], [1], [0, 0, 1, 1], [], []>} : vector<16x8xf32>, vector<8x32xf32>, vector<16x32xf32> -> vector<16x32xf32>
    %81 = arith.addf %46, %80 : vector<16x32xf32>
    %c0_40 = arith.constant 0 : index
    %c64 = arith.constant 64 : index
    %c0_41 = arith.constant 0 : index
    %82 = vector.load %arg5[%c0_40, %c64, %c0_41] : memref<1x384x8xbf16, #tpu.memory_space<vmem>>, vector<1x32x8xbf16>
    %83 = vector.shape_cast %82 : vector<1x32x8xbf16> to vector<32x8xbf16>
    %c0_42 = arith.constant 0 : index
    %c192 = arith.constant 192 : index
    %c0_43 = arith.constant 0 : index
    %84 = vector.load %arg5[%c0_42, %c192, %c0_43] : memref<1x384x8xbf16, #tpu.memory_space<vmem>>, vector<1x32x8xbf16>
    %85 = vector.shape_cast %84 : vector<1x32x8xbf16> to vector<32x8xbf16>
    %c0_44 = arith.constant 0 : index
    %c320 = arith.constant 320 : index
    %c0_45 = arith.constant 0 : index
    %86 = vector.load %arg5[%c0_44, %c320, %c0_45] : memref<1x384x8xbf16, #tpu.memory_space<vmem>>, vector<1x32x8xbf16>
    %87 = vector.shape_cast %86 : vector<1x32x8xbf16> to vector<32x8xbf16>
    %cst_46 = arith.constant dense<0.000000e+00> : vector<16x8xf32>
    %88 = tpu.matmul %11, %83, %cst_46 {dimension_numbers = #tpu.dot_dimension_numbers<[1], [0], [0], [1], [0, 0, 1, 1], [], []>} : vector<16x32xbf16>, vector<32x8xbf16>, vector<16x8xf32> -> vector<16x8xf32>
    %89 = vector.extract_strided_slice %6 {offsets = [0, 16], sizes = [1, 8], strides = [1, 1]} : vector<1x32xf32> to vector<1x8xf32>
    %90 = vector.broadcast %89 : vector<1x8xf32> to vector<16x8xf32>
    %91 = arith.addf %88, %90 : vector<16x8xf32>
    %cst_47 = arith.constant dense<0.000000e+00> : vector<16x8xf32>
    %92 = tpu.matmul %12, %85, %cst_47 {dimension_numbers = #tpu.dot_dimension_numbers<[1], [0], [0], [1], [0, 0, 1, 1], [], []>} : vector<16x32xbf16>, vector<32x8xbf16>, vector<16x8xf32> -> vector<16x8xf32>
    %93 = vector.extract_strided_slice %7 {offsets = [0, 16], sizes = [1, 8], strides = [1, 1]} : vector<1x32xf32> to vector<1x8xf32>
    %94 = vector.broadcast %93 : vector<1x8xf32> to vector<16x8xf32>
    %95 = arith.addf %92, %94 : vector<16x8xf32>
    %cst_48 = arith.constant dense<0.000000e+00> : vector<16x8xf32>
    %96 = tpu.matmul %12, %87, %cst_48 {dimension_numbers = #tpu.dot_dimension_numbers<[1], [0], [0], [1], [0, 0, 1, 1], [], []>} : vector<16x32xbf16>, vector<32x8xbf16>, vector<16x8xf32> -> vector<16x8xf32>
    %97 = vector.extract_strided_slice %8 {offsets = [0, 16], sizes = [1, 8], strides = [1, 1]} : vector<1x32xf32> to vector<1x8xf32>
    %98 = vector.broadcast %97 : vector<1x8xf32> to vector<16x8xf32>
    %99 = arith.addf %96, %98 : vector<16x8xf32>
    %cst_49 = arith.constant dense<0.000000e+00> : vector<16x16xf32>
    %100 = tpu.matmul %91, %95, %cst_49 {dimension_numbers = #tpu.dot_dimension_numbers<[1], [1], [0], [0], [0, 0, 1, 0], [], []>} : vector<16x8xf32>, vector<16x8xf32>, vector<16x16xf32> -> vector<16x16xf32>
    %101 = arith.addf %100, %10 : vector<16x16xf32>
    %cst_50 = arith.constant dense<0xFF800000> : vector<16xf32>
    %102 = vector.multi_reduction <maximumf>, %101, %cst_50 [1] : vector<16x16xf32> to vector<16xf32>
    %103 = vector.shape_cast %102 : vector<16xf32> to vector<16x1xf32>
    %104 = vector.broadcast %103 : vector<16x1xf32> to vector<16x16xf32>
    %105 = arith.subf %101, %104 : vector<16x16xf32>
    %106 = math.exp %105 : vector<16x16xf32>
    %cst_51 = arith.constant dense<0.000000e+00> : vector<16xf32>
    %107 = vector.multi_reduction <add>, %106, %cst_51 [1] : vector<16x16xf32> to vector<16xf32>
    %108 = vector.shape_cast %107 : vector<16xf32> to vector<16x1xf32>
    %109 = tpu.reciprocal %108 {approx = true} : vector<16x1xf32> -> vector<16x1xf32>
    %110 = vector.broadcast %109 : vector<16x1xf32> to vector<16x16xf32>
    %111 = arith.mulf %106, %110 : vector<16x16xf32>
    %cst_52 = arith.constant dense<0.000000e+00> : vector<16x8xf32>
    %112 = tpu.matmul %111, %99, %cst_52 {dimension_numbers = #tpu.dot_dimension_numbers<[1], [0], [0], [1], [0, 0, 1, 1], [], []>} : vector<16x16xf32>, vector<16x8xf32>, vector<16x8xf32> -> vector<16x8xf32>
    %c0_53 = arith.constant 0 : index
    %c16 = arith.constant 16 : index
    %c0_54 = arith.constant 0 : index
    %113 = vector.load %arg6[%c0_53, %c16, %c0_54] : memref<1x32x32xf32, #tpu.memory_space<vmem>>, vector<1x8x32xf32>
    %114 = vector.shape_cast %113 : vector<1x8x32xf32> to vector<8x32xf32>
    %cst_55 = arith.constant dense<0.000000e+00> : vector<16x32xf32>
    %115 = tpu.matmul %112, %114, %cst_55 {dimension_numbers = #tpu.dot_dimension_numbers<[1], [0], [0], [1], [0, 0, 1, 1], [], []>} : vector<16x8xf32>, vector<8x32xf32>, vector<16x32xf32> -> vector<16x32xf32>
    %116 = arith.addf %81, %115 : vector<16x32xf32>
    %c0_56 = arith.constant 0 : index
    %c96 = arith.constant 96 : index
    %c0_57 = arith.constant 0 : index
    %117 = vector.load %arg5[%c0_56, %c96, %c0_57] : memref<1x384x8xbf16, #tpu.memory_space<vmem>>, vector<1x32x8xbf16>
    %118 = vector.shape_cast %117 : vector<1x32x8xbf16> to vector<32x8xbf16>
    %c0_58 = arith.constant 0 : index
    %c224 = arith.constant 224 : index
    %c0_59 = arith.constant 0 : index
    %119 = vector.load %arg5[%c0_58, %c224, %c0_59] : memref<1x384x8xbf16, #tpu.memory_space<vmem>>, vector<1x32x8xbf16>
    %120 = vector.shape_cast %119 : vector<1x32x8xbf16> to vector<32x8xbf16>
    %c0_60 = arith.constant 0 : index
    %c352 = arith.constant 352 : index
    %c0_61 = arith.constant 0 : index
    %121 = vector.load %arg5[%c0_60, %c352, %c0_61] : memref<1x384x8xbf16, #tpu.memory_space<vmem>>, vector<1x32x8xbf16>
    %122 = vector.shape_cast %121 : vector<1x32x8xbf16> to vector<32x8xbf16>
    %cst_62 = arith.constant dense<0.000000e+00> : vector<16x8xf32>
    %123 = tpu.matmul %11, %118, %cst_62 {dimension_numbers = #tpu.dot_dimension_numbers<[1], [0], [0], [1], [0, 0, 1, 1], [], []>} : vector<16x32xbf16>, vector<32x8xbf16>, vector<16x8xf32> -> vector<16x8xf32>
    %124 = vector.extract_strided_slice %6 {offsets = [0, 24], sizes = [1, 8], strides = [1, 1]} : vector<1x32xf32> to vector<1x8xf32>
    %125 = vector.broadcast %124 : vector<1x8xf32> to vector<16x8xf32>
    %126 = arith.addf %123, %125 : vector<16x8xf32>
    %cst_63 = arith.constant dense<0.000000e+00> : vector<16x8xf32>
    %127 = tpu.matmul %12, %120, %cst_63 {dimension_numbers = #tpu.dot_dimension_numbers<[1], [0], [0], [1], [0, 0, 1, 1], [], []>} : vector<16x32xbf16>, vector<32x8xbf16>, vector<16x8xf32> -> vector<16x8xf32>
    %128 = vector.extract_strided_slice %7 {offsets = [0, 24], sizes = [1, 8], strides = [1, 1]} : vector<1x32xf32> to vector<1x8xf32>
    %129 = vector.broadcast %128 : vector<1x8xf32> to vector<16x8xf32>
    %130 = arith.addf %127, %129 : vector<16x8xf32>
    %cst_64 = arith.constant dense<0.000000e+00> : vector<16x8xf32>
    %131 = tpu.matmul %12, %122, %cst_64 {dimension_numbers = #tpu.dot_dimension_numbers<[1], [0], [0], [1], [0, 0, 1, 1], [], []>} : vector<16x32xbf16>, vector<32x8xbf16>, vector<16x8xf32> -> vector<16x8xf32>
    %132 = vector.extract_strided_slice %8 {offsets = [0, 24], sizes = [1, 8], strides = [1, 1]} : vector<1x32xf32> to vector<1x8xf32>
    %133 = vector.broadcast %132 : vector<1x8xf32> to vector<16x8xf32>
    %134 = arith.addf %131, %133 : vector<16x8xf32>
    %cst_65 = arith.constant dense<0.000000e+00> : vector<16x16xf32>
    %135 = tpu.matmul %126, %130, %cst_65 {dimension_numbers = #tpu.dot_dimension_numbers<[1], [1], [0], [0], [0, 0, 1, 0], [], []>} : vector<16x8xf32>, vector<16x8xf32>, vector<16x16xf32> -> vector<16x16xf32>
    %136 = arith.addf %135, %10 : vector<16x16xf32>
    %cst_66 = arith.constant dense<0xFF800000> : vector<16xf32>
    %137 = vector.multi_reduction <maximumf>, %136, %cst_66 [1] : vector<16x16xf32> to vector<16xf32>
    %138 = vector.shape_cast %137 : vector<16xf32> to vector<16x1xf32>
    %139 = vector.broadcast %138 : vector<16x1xf32> to vector<16x16xf32>
    %140 = arith.subf %136, %139 : vector<16x16xf32>
    %141 = math.exp %140 : vector<16x16xf32>
    %cst_67 = arith.constant dense<0.000000e+00> : vector<16xf32>
    %142 = vector.multi_reduction <add>, %141, %cst_67 [1] : vector<16x16xf32> to vector<16xf32>
    %143 = vector.shape_cast %142 : vector<16xf32> to vector<16x1xf32>
    %144 = tpu.reciprocal %143 {approx = true} : vector<16x1xf32> -> vector<16x1xf32>
    %145 = vector.broadcast %144 : vector<16x1xf32> to vector<16x16xf32>
    %146 = arith.mulf %141, %145 : vector<16x16xf32>
    %cst_68 = arith.constant dense<0.000000e+00> : vector<16x8xf32>
    %147 = tpu.matmul %146, %134, %cst_68 {dimension_numbers = #tpu.dot_dimension_numbers<[1], [0], [0], [1], [0, 0, 1, 1], [], []>} : vector<16x16xf32>, vector<16x8xf32>, vector<16x8xf32> -> vector<16x8xf32>
    %c0_69 = arith.constant 0 : index
    %c24 = arith.constant 24 : index
    %c0_70 = arith.constant 0 : index
    %148 = vector.load %arg6[%c0_69, %c24, %c0_70] : memref<1x32x32xf32, #tpu.memory_space<vmem>>, vector<1x8x32xf32>
    %149 = vector.shape_cast %148 : vector<1x8x32xf32> to vector<8x32xf32>
    %cst_71 = arith.constant dense<0.000000e+00> : vector<16x32xf32>
    %150 = tpu.matmul %147, %149, %cst_71 {dimension_numbers = #tpu.dot_dimension_numbers<[1], [0], [0], [1], [0, 0, 1, 1], [], []>} : vector<16x8xf32>, vector<8x32xf32>, vector<16x32xf32> -> vector<16x32xf32>
    %151 = arith.addf %116, %150 : vector<16x32xf32>
    %152 = vector.broadcast %9 : vector<1x32xf32> to vector<16x32xf32>
    %153 = arith.addf %151, %152 : vector<16x32xf32>
    %154 = arith.addf %3, %153 : vector<16x32xf32>
    %155 = vector.extract_strided_slice %5 {offsets = [9, 0], sizes = [1, 32], strides = [1, 1]} : vector<16x32xf32> to vector<1x32xf32>
    %156 = vector.extract_strided_slice %5 {offsets = [10, 0], sizes = [1, 32], strides = [1, 1]} : vector<16x32xf32> to vector<1x32xf32>
    %cst_72 = arith.constant dense<0.000000e+00> : vector<16xf32>
    %157 = vector.multi_reduction <add>, %154, %cst_72 [1] : vector<16x32xf32> to vector<16xf32>
    %158 = vector.shape_cast %157 : vector<16xf32> to vector<16x1xf32>
    %cst_73 = arith.constant 3.200000e+01 : f32
    %159 = vector.broadcast %cst_73 : f32 to vector<16x1xf32>
    %160 = arith.divf %158, %159 : vector<16x1xf32>
    %161 = vector.broadcast %160 : vector<16x1xf32> to vector<16x32xf32>
    %162 = arith.subf %154, %161 : vector<16x32xf32>
    %163 = arith.mulf %162, %162 : vector<16x32xf32>
    %cst_74 = arith.constant dense<0.000000e+00> : vector<16xf32>
    %164 = vector.multi_reduction <add>, %163, %cst_74 [1] : vector<16x32xf32> to vector<16xf32>
    %165 = vector.shape_cast %164 : vector<16xf32> to vector<16x1xf32>
    %cst_75 = arith.constant 3.200000e+01 : f32
    %166 = vector.broadcast %cst_75 : f32 to vector<16x1xf32>
    %167 = arith.divf %165, %166 : vector<16x1xf32>
    %cst_76 = arith.constant 9.99999974E-6 : f32
    %168 = vector.broadcast %cst_76 : f32 to vector<16x1xf32>
    %169 = arith.addf %167, %168 : vector<16x1xf32>
    %170 = math.rsqrt %169 : vector<16x1xf32>
    %171 = vector.broadcast %170 : vector<16x1xf32> to vector<16x32xf32>
    %172 = arith.mulf %162, %171 : vector<16x32xf32>
    %173 = vector.broadcast %155 : vector<1x32xf32> to vector<16x32xf32>
    %174 = arith.mulf %172, %173 : vector<16x32xf32>
    %175 = vector.broadcast %156 : vector<1x32xf32> to vector<16x32xf32>
    %176 = arith.addf %174, %175 : vector<16x32xf32>
    %c0_77 = arith.constant 0 : index
    %c0_78 = arith.constant 0 : index
    %177 = vector.load %arg2[%c0_77, %c0_78] : memref<32x32xf32, #tpu.memory_space<vmem>>, vector<32x32xf32>
    %178 = vector.extract_strided_slice %5 {offsets = [4, 0], sizes = [1, 32], strides = [1, 1]} : vector<16x32xf32> to vector<1x32xf32>
    %179 = vector.extract_strided_slice %5 {offsets = [5, 0], sizes = [1, 32], strides = [1, 1]} : vector<16x32xf32> to vector<1x32xf32>
    %180 = vector.extract_strided_slice %5 {offsets = [6, 0], sizes = [1, 32], strides = [1, 1]} : vector<16x32xf32> to vector<1x32xf32>
    %181 = vector.extract_strided_slice %5 {offsets = [7, 0], sizes = [1, 32], strides = [1, 1]} : vector<16x32xf32> to vector<1x32xf32>
    %c0_79 = arith.constant 0 : index
    %c0_80 = arith.constant 0 : index
    %182 = vector.load %arg4[%c0_79, %c0_80] : memref<16x32xf32, #tpu.memory_space<vmem>>, vector<16x32xf32>
    %183 = vector.shape_cast %182 : vector<16x32xf32> to vector<16x32xf32>
    %184 = arith.truncf %176 : vector<16x32xf32> to vector<16x32xbf16>
    %185 = arith.truncf %177 : vector<32x32xf32> to vector<32x32xbf16>
    %c0_81 = arith.constant 0 : index
    %c0_82 = arith.constant 0 : index
    %c0_83 = arith.constant 0 : index
    %186 = vector.load %arg7[%c0_81, %c0_82, %c0_83] : memref<1x384x8xbf16, #tpu.memory_space<vmem>>, vector<1x32x8xbf16>
    %187 = vector.shape_cast %186 : vector<1x32x8xbf16> to vector<32x8xbf16>
    %c0_84 = arith.constant 0 : index
    %c128_85 = arith.constant 128 : index
    %c0_86 = arith.constant 0 : index
    %188 = vector.load %arg7[%c0_84, %c128_85, %c0_86] : memref<1x384x8xbf16, #tpu.memory_space<vmem>>, vector<1x32x8xbf16>
    %189 = vector.shape_cast %188 : vector<1x32x8xbf16> to vector<32x8xbf16>
    %c0_87 = arith.constant 0 : index
    %c256_88 = arith.constant 256 : index
    %c0_89 = arith.constant 0 : index
    %190 = vector.load %arg7[%c0_87, %c256_88, %c0_89] : memref<1x384x8xbf16, #tpu.memory_space<vmem>>, vector<1x32x8xbf16>
    %191 = vector.shape_cast %190 : vector<1x32x8xbf16> to vector<32x8xbf16>
    %cst_90 = arith.constant dense<0.000000e+00> : vector<16x8xf32>
    %192 = tpu.matmul %184, %187, %cst_90 {dimension_numbers = #tpu.dot_dimension_numbers<[1], [0], [0], [1], [0, 0, 1, 1], [], []>} : vector<16x32xbf16>, vector<32x8xbf16>, vector<16x8xf32> -> vector<16x8xf32>
    %193 = vector.extract_strided_slice %178 {offsets = [0, 0], sizes = [1, 8], strides = [1, 1]} : vector<1x32xf32> to vector<1x8xf32>
    %194 = vector.broadcast %193 : vector<1x8xf32> to vector<16x8xf32>
    %195 = arith.addf %192, %194 : vector<16x8xf32>
    %cst_91 = arith.constant dense<0.000000e+00> : vector<32x8xf32>
    %196 = tpu.matmul %185, %189, %cst_91 {dimension_numbers = #tpu.dot_dimension_numbers<[1], [0], [0], [1], [0, 0, 1, 1], [], []>} : vector<32x32xbf16>, vector<32x8xbf16>, vector<32x8xf32> -> vector<32x8xf32>
    %197 = vector.extract_strided_slice %179 {offsets = [0, 0], sizes = [1, 8], strides = [1, 1]} : vector<1x32xf32> to vector<1x8xf32>
    %198 = vector.broadcast %197 : vector<1x8xf32> to vector<32x8xf32>
    %199 = arith.addf %196, %198 : vector<32x8xf32>
    %cst_92 = arith.constant dense<0.000000e+00> : vector<32x8xf32>
    %200 = tpu.matmul %185, %191, %cst_92 {dimension_numbers = #tpu.dot_dimension_numbers<[1], [0], [0], [1], [0, 0, 1, 1], [], []>} : vector<32x32xbf16>, vector<32x8xbf16>, vector<32x8xf32> -> vector<32x8xf32>
    %201 = vector.extract_strided_slice %180 {offsets = [0, 0], sizes = [1, 8], strides = [1, 1]} : vector<1x32xf32> to vector<1x8xf32>
    %202 = vector.broadcast %201 : vector<1x8xf32> to vector<32x8xf32>
    %203 = arith.addf %200, %202 : vector<32x8xf32>
    %cst_93 = arith.constant dense<0.000000e+00> : vector<16x32xf32>
    %204 = tpu.matmul %195, %199, %cst_93 {dimension_numbers = #tpu.dot_dimension_numbers<[1], [1], [0], [0], [0, 0, 1, 0], [], []>} : vector<16x8xf32>, vector<32x8xf32>, vector<16x32xf32> -> vector<16x32xf32>
    %205 = arith.addf %204, %183 : vector<16x32xf32>
    %cst_94 = arith.constant dense<0xFF800000> : vector<16xf32>
    %206 = vector.multi_reduction <maximumf>, %205, %cst_94 [1] : vector<16x32xf32> to vector<16xf32>
    %207 = vector.shape_cast %206 : vector<16xf32> to vector<16x1xf32>
    %208 = vector.broadcast %207 : vector<16x1xf32> to vector<16x32xf32>
    %209 = arith.subf %205, %208 : vector<16x32xf32>
    %210 = math.exp %209 : vector<16x32xf32>
    %cst_95 = arith.constant dense<0.000000e+00> : vector<16xf32>
    %211 = vector.multi_reduction <add>, %210, %cst_95 [1] : vector<16x32xf32> to vector<16xf32>
    %212 = vector.shape_cast %211 : vector<16xf32> to vector<16x1xf32>
    %213 = tpu.reciprocal %212 {approx = true} : vector<16x1xf32> -> vector<16x1xf32>
    %214 = vector.broadcast %213 : vector<16x1xf32> to vector<16x32xf32>
    %215 = arith.mulf %210, %214 : vector<16x32xf32>
    %cst_96 = arith.constant dense<0.000000e+00> : vector<16x8xf32>
    %216 = tpu.matmul %215, %203, %cst_96 {dimension_numbers = #tpu.dot_dimension_numbers<[1], [0], [0], [1], [0, 0, 1, 1], [], []>} : vector<16x32xf32>, vector<32x8xf32>, vector<16x8xf32> -> vector<16x8xf32>
    %c0_97 = arith.constant 0 : index
    %c0_98 = arith.constant 0 : index
    %c0_99 = arith.constant 0 : index
    %217 = vector.load %arg8[%c0_97, %c0_98, %c0_99] : memref<1x32x32xf32, #tpu.memory_space<vmem>>, vector<1x8x32xf32>
    %218 = vector.shape_cast %217 : vector<1x8x32xf32> to vector<8x32xf32>
    %cst_100 = arith.constant dense<0.000000e+00> : vector<16x32xf32>
    %219 = tpu.matmul %216, %218, %cst_100 {dimension_numbers = #tpu.dot_dimension_numbers<[1], [0], [0], [1], [0, 0, 1, 1], [], []>} : vector<16x8xf32>, vector<8x32xf32>, vector<16x32xf32> -> vector<16x32xf32>
    %c0_101 = arith.constant 0 : index
    %c32_102 = arith.constant 32 : index
    %c0_103 = arith.constant 0 : index
    %220 = vector.load %arg7[%c0_101, %c32_102, %c0_103] : memref<1x384x8xbf16, #tpu.memory_space<vmem>>, vector<1x32x8xbf16>
    %221 = vector.shape_cast %220 : vector<1x32x8xbf16> to vector<32x8xbf16>
    %c0_104 = arith.constant 0 : index
    %c160_105 = arith.constant 160 : index
    %c0_106 = arith.constant 0 : index
    %222 = vector.load %arg7[%c0_104, %c160_105, %c0_106] : memref<1x384x8xbf16, #tpu.memory_space<vmem>>, vector<1x32x8xbf16>
    %223 = vector.shape_cast %222 : vector<1x32x8xbf16> to vector<32x8xbf16>
    %c0_107 = arith.constant 0 : index
    %c288_108 = arith.constant 288 : index
    %c0_109 = arith.constant 0 : index
    %224 = vector.load %arg7[%c0_107, %c288_108, %c0_109] : memref<1x384x8xbf16, #tpu.memory_space<vmem>>, vector<1x32x8xbf16>
    %225 = vector.shape_cast %224 : vector<1x32x8xbf16> to vector<32x8xbf16>
    %cst_110 = arith.constant dense<0.000000e+00> : vector<16x8xf32>
    %226 = tpu.matmul %184, %221, %cst_110 {dimension_numbers = #tpu.dot_dimension_numbers<[1], [0], [0], [1], [0, 0, 1, 1], [], []>} : vector<16x32xbf16>, vector<32x8xbf16>, vector<16x8xf32> -> vector<16x8xf32>
    %227 = vector.extract_strided_slice %178 {offsets = [0, 8], sizes = [1, 8], strides = [1, 1]} : vector<1x32xf32> to vector<1x8xf32>
    %228 = vector.broadcast %227 : vector<1x8xf32> to vector<16x8xf32>
    %229 = arith.addf %226, %228 : vector<16x8xf32>
    %cst_111 = arith.constant dense<0.000000e+00> : vector<32x8xf32>
    %230 = tpu.matmul %185, %223, %cst_111 {dimension_numbers = #tpu.dot_dimension_numbers<[1], [0], [0], [1], [0, 0, 1, 1], [], []>} : vector<32x32xbf16>, vector<32x8xbf16>, vector<32x8xf32> -> vector<32x8xf32>
    %231 = vector.extract_strided_slice %179 {offsets = [0, 8], sizes = [1, 8], strides = [1, 1]} : vector<1x32xf32> to vector<1x8xf32>
    %232 = vector.broadcast %231 : vector<1x8xf32> to vector<32x8xf32>
    %233 = arith.addf %230, %232 : vector<32x8xf32>
    %cst_112 = arith.constant dense<0.000000e+00> : vector<32x8xf32>
    %234 = tpu.matmul %185, %225, %cst_112 {dimension_numbers = #tpu.dot_dimension_numbers<[1], [0], [0], [1], [0, 0, 1, 1], [], []>} : vector<32x32xbf16>, vector<32x8xbf16>, vector<32x8xf32> -> vector<32x8xf32>
    %235 = vector.extract_strided_slice %180 {offsets = [0, 8], sizes = [1, 8], strides = [1, 1]} : vector<1x32xf32> to vector<1x8xf32>
    %236 = vector.broadcast %235 : vector<1x8xf32> to vector<32x8xf32>
    %237 = arith.addf %234, %236 : vector<32x8xf32>
    %cst_113 = arith.constant dense<0.000000e+00> : vector<16x32xf32>
    %238 = tpu.matmul %229, %233, %cst_113 {dimension_numbers = #tpu.dot_dimension_numbers<[1], [1], [0], [0], [0, 0, 1, 0], [], []>} : vector<16x8xf32>, vector<32x8xf32>, vector<16x32xf32> -> vector<16x32xf32>
    %239 = arith.addf %238, %183 : vector<16x32xf32>
    %cst_114 = arith.constant dense<0xFF800000> : vector<16xf32>
    %240 = vector.multi_reduction <maximumf>, %239, %cst_114 [1] : vector<16x32xf32> to vector<16xf32>
    %241 = vector.shape_cast %240 : vector<16xf32> to vector<16x1xf32>
    %242 = vector.broadcast %241 : vector<16x1xf32> to vector<16x32xf32>
    %243 = arith.subf %239, %242 : vector<16x32xf32>
    %244 = math.exp %243 : vector<16x32xf32>
    %cst_115 = arith.constant dense<0.000000e+00> : vector<16xf32>
    %245 = vector.multi_reduction <add>, %244, %cst_115 [1] : vector<16x32xf32> to vector<16xf32>
    %246 = vector.shape_cast %245 : vector<16xf32> to vector<16x1xf32>
    %247 = tpu.reciprocal %246 {approx = true} : vector<16x1xf32> -> vector<16x1xf32>
    %248 = vector.broadcast %247 : vector<16x1xf32> to vector<16x32xf32>
    %249 = arith.mulf %244, %248 : vector<16x32xf32>
    %cst_116 = arith.constant dense<0.000000e+00> : vector<16x8xf32>
    %250 = tpu.matmul %249, %237, %cst_116 {dimension_numbers = #tpu.dot_dimension_numbers<[1], [0], [0], [1], [0, 0, 1, 1], [], []>} : vector<16x32xf32>, vector<32x8xf32>, vector<16x8xf32> -> vector<16x8xf32>
    %c0_117 = arith.constant 0 : index
    %c8_118 = arith.constant 8 : index
    %c0_119 = arith.constant 0 : index
    %251 = vector.load %arg8[%c0_117, %c8_118, %c0_119] : memref<1x32x32xf32, #tpu.memory_space<vmem>>, vector<1x8x32xf32>
    %252 = vector.shape_cast %251 : vector<1x8x32xf32> to vector<8x32xf32>
    %cst_120 = arith.constant dense<0.000000e+00> : vector<16x32xf32>
    %253 = tpu.matmul %250, %252, %cst_120 {dimension_numbers = #tpu.dot_dimension_numbers<[1], [0], [0], [1], [0, 0, 1, 1], [], []>} : vector<16x8xf32>, vector<8x32xf32>, vector<16x32xf32> -> vector<16x32xf32>
    %254 = arith.addf %219, %253 : vector<16x32xf32>
    %c0_121 = arith.constant 0 : index
    %c64_122 = arith.constant 64 : index
    %c0_123 = arith.constant 0 : index
    %255 = vector.load %arg7[%c0_121, %c64_122, %c0_123] : memref<1x384x8xbf16, #tpu.memory_space<vmem>>, vector<1x32x8xbf16>
    %256 = vector.shape_cast %255 : vector<1x32x8xbf16> to vector<32x8xbf16>
    %c0_124 = arith.constant 0 : index
    %c192_125 = arith.constant 192 : index
    %c0_126 = arith.constant 0 : index
    %257 = vector.load %arg7[%c0_124, %c192_125, %c0_126] : memref<1x384x8xbf16, #tpu.memory_space<vmem>>, vector<1x32x8xbf16>
    %258 = vector.shape_cast %257 : vector<1x32x8xbf16> to vector<32x8xbf16>
    %c0_127 = arith.constant 0 : index
    %c320_128 = arith.constant 320 : index
    %c0_129 = arith.constant 0 : index
    %259 = vector.load %arg7[%c0_127, %c320_128, %c0_129] : memref<1x384x8xbf16, #tpu.memory_space<vmem>>, vector<1x32x8xbf16>
    %260 = vector.shape_cast %259 : vector<1x32x8xbf16> to vector<32x8xbf16>
    %cst_130 = arith.constant dense<0.000000e+00> : vector<16x8xf32>
    %261 = tpu.matmul %184, %256, %cst_130 {dimension_numbers = #tpu.dot_dimension_numbers<[1], [0], [0], [1], [0, 0, 1, 1], [], []>} : vector<16x32xbf16>, vector<32x8xbf16>, vector<16x8xf32> -> vector<16x8xf32>
    %262 = vector.extract_strided_slice %178 {offsets = [0, 16], sizes = [1, 8], strides = [1, 1]} : vector<1x32xf32> to vector<1x8xf32>
    %263 = vector.broadcast %262 : vector<1x8xf32> to vector<16x8xf32>
    %264 = arith.addf %261, %263 : vector<16x8xf32>
    %cst_131 = arith.constant dense<0.000000e+00> : vector<32x8xf32>
    %265 = tpu.matmul %185, %258, %cst_131 {dimension_numbers = #tpu.dot_dimension_numbers<[1], [0], [0], [1], [0, 0, 1, 1], [], []>} : vector<32x32xbf16>, vector<32x8xbf16>, vector<32x8xf32> -> vector<32x8xf32>
    %266 = vector.extract_strided_slice %179 {offsets = [0, 16], sizes = [1, 8], strides = [1, 1]} : vector<1x32xf32> to vector<1x8xf32>
    %267 = vector.broadcast %266 : vector<1x8xf32> to vector<32x8xf32>
    %268 = arith.addf %265, %267 : vector<32x8xf32>
    %cst_132 = arith.constant dense<0.000000e+00> : vector<32x8xf32>
    %269 = tpu.matmul %185, %260, %cst_132 {dimension_numbers = #tpu.dot_dimension_numbers<[1], [0], [0], [1], [0, 0, 1, 1], [], []>} : vector<32x32xbf16>, vector<32x8xbf16>, vector<32x8xf32> -> vector<32x8xf32>
    %270 = vector.extract_strided_slice %180 {offsets = [0, 16], sizes = [1, 8], strides = [1, 1]} : vector<1x32xf32> to vector<1x8xf32>
    %271 = vector.broadcast %270 : vector<1x8xf32> to vector<32x8xf32>
    %272 = arith.addf %269, %271 : vector<32x8xf32>
    %cst_133 = arith.constant dense<0.000000e+00> : vector<16x32xf32>
    %273 = tpu.matmul %264, %268, %cst_133 {dimension_numbers = #tpu.dot_dimension_numbers<[1], [1], [0], [0], [0, 0, 1, 0], [], []>} : vector<16x8xf32>, vector<32x8xf32>, vector<16x32xf32> -> vector<16x32xf32>
    %274 = arith.addf %273, %183 : vector<16x32xf32>
    %cst_134 = arith.constant dense<0xFF800000> : vector<16xf32>
    %275 = vector.multi_reduction <maximumf>, %274, %cst_134 [1] : vector<16x32xf32> to vector<16xf32>
    %276 = vector.shape_cast %275 : vector<16xf32> to vector<16x1xf32>
    %277 = vector.broadcast %276 : vector<16x1xf32> to vector<16x32xf32>
    %278 = arith.subf %274, %277 : vector<16x32xf32>
    %279 = math.exp %278 : vector<16x32xf32>
    %cst_135 = arith.constant dense<0.000000e+00> : vector<16xf32>
    %280 = vector.multi_reduction <add>, %279, %cst_135 [1] : vector<16x32xf32> to vector<16xf32>
    %281 = vector.shape_cast %280 : vector<16xf32> to vector<16x1xf32>
    %282 = tpu.reciprocal %281 {approx = true} : vector<16x1xf32> -> vector<16x1xf32>
    %283 = vector.broadcast %282 : vector<16x1xf32> to vector<16x32xf32>
    %284 = arith.mulf %279, %283 : vector<16x32xf32>
    %cst_136 = arith.constant dense<0.000000e+00> : vector<16x8xf32>
    %285 = tpu.matmul %284, %272, %cst_136 {dimension_numbers = #tpu.dot_dimension_numbers<[1], [0], [0], [1], [0, 0, 1, 1], [], []>} : vector<16x32xf32>, vector<32x8xf32>, vector<16x8xf32> -> vector<16x8xf32>
    %c0_137 = arith.constant 0 : index
    %c16_138 = arith.constant 16 : index
    %c0_139 = arith.constant 0 : index
    %286 = vector.load %arg8[%c0_137, %c16_138, %c0_139] : memref<1x32x32xf32, #tpu.memory_space<vmem>>, vector<1x8x32xf32>
    %287 = vector.shape_cast %286 : vector<1x8x32xf32> to vector<8x32xf32>
    %cst_140 = arith.constant dense<0.000000e+00> : vector<16x32xf32>
    %288 = tpu.matmul %285, %287, %cst_140 {dimension_numbers = #tpu.dot_dimension_numbers<[1], [0], [0], [1], [0, 0, 1, 1], [], []>} : vector<16x8xf32>, vector<8x32xf32>, vector<16x32xf32> -> vector<16x32xf32>
    %289 = arith.addf %254, %288 : vector<16x32xf32>
    %c0_141 = arith.constant 0 : index
    %c96_142 = arith.constant 96 : index
    %c0_143 = arith.constant 0 : index
    %290 = vector.load %arg7[%c0_141, %c96_142, %c0_143] : memref<1x384x8xbf16, #tpu.memory_space<vmem>>, vector<1x32x8xbf16>
    %291 = vector.shape_cast %290 : vector<1x32x8xbf16> to vector<32x8xbf16>
    %c0_144 = arith.constant 0 : index
    %c224_145 = arith.constant 224 : index
    %c0_146 = arith.constant 0 : index
    %292 = vector.load %arg7[%c0_144, %c224_145, %c0_146] : memref<1x384x8xbf16, #tpu.memory_space<vmem>>, vector<1x32x8xbf16>
    %293 = vector.shape_cast %292 : vector<1x32x8xbf16> to vector<32x8xbf16>
    %c0_147 = arith.constant 0 : index
    %c352_148 = arith.constant 352 : index
    %c0_149 = arith.constant 0 : index
    %294 = vector.load %arg7[%c0_147, %c352_148, %c0_149] : memref<1x384x8xbf16, #tpu.memory_space<vmem>>, vector<1x32x8xbf16>
    %295 = vector.shape_cast %294 : vector<1x32x8xbf16> to vector<32x8xbf16>
    %cst_150 = arith.constant dense<0.000000e+00> : vector<16x8xf32>
    %296 = tpu.matmul %184, %291, %cst_150 {dimension_numbers = #tpu.dot_dimension_numbers<[1], [0], [0], [1], [0, 0, 1, 1], [], []>} : vector<16x32xbf16>, vector<32x8xbf16>, vector<16x8xf32> -> vector<16x8xf32>
    %297 = vector.extract_strided_slice %178 {offsets = [0, 24], sizes = [1, 8], strides = [1, 1]} : vector<1x32xf32> to vector<1x8xf32>
    %298 = vector.broadcast %297 : vector<1x8xf32> to vector<16x8xf32>
    %299 = arith.addf %296, %298 : vector<16x8xf32>
    %cst_151 = arith.constant dense<0.000000e+00> : vector<32x8xf32>
    %300 = tpu.matmul %185, %293, %cst_151 {dimension_numbers = #tpu.dot_dimension_numbers<[1], [0], [0], [1], [0, 0, 1, 1], [], []>} : vector<32x32xbf16>, vector<32x8xbf16>, vector<32x8xf32> -> vector<32x8xf32>
    %301 = vector.extract_strided_slice %179 {offsets = [0, 24], sizes = [1, 8], strides = [1, 1]} : vector<1x32xf32> to vector<1x8xf32>
    %302 = vector.broadcast %301 : vector<1x8xf32> to vector<32x8xf32>
    %303 = arith.addf %300, %302 : vector<32x8xf32>
    %cst_152 = arith.constant dense<0.000000e+00> : vector<32x8xf32>
    %304 = tpu.matmul %185, %295, %cst_152 {dimension_numbers = #tpu.dot_dimension_numbers<[1], [0], [0], [1], [0, 0, 1, 1], [], []>} : vector<32x32xbf16>, vector<32x8xbf16>, vector<32x8xf32> -> vector<32x8xf32>
    %305 = vector.extract_strided_slice %180 {offsets = [0, 24], sizes = [1, 8], strides = [1, 1]} : vector<1x32xf32> to vector<1x8xf32>
    %306 = vector.broadcast %305 : vector<1x8xf32> to vector<32x8xf32>
    %307 = arith.addf %304, %306 : vector<32x8xf32>
    %cst_153 = arith.constant dense<0.000000e+00> : vector<16x32xf32>
    %308 = tpu.matmul %299, %303, %cst_153 {dimension_numbers = #tpu.dot_dimension_numbers<[1], [1], [0], [0], [0, 0, 1, 0], [], []>} : vector<16x8xf32>, vector<32x8xf32>, vector<16x32xf32> -> vector<16x32xf32>
    %309 = arith.addf %308, %183 : vector<16x32xf32>
    %cst_154 = arith.constant dense<0xFF800000> : vector<16xf32>
    %310 = vector.multi_reduction <maximumf>, %309, %cst_154 [1] : vector<16x32xf32> to vector<16xf32>
    %311 = vector.shape_cast %310 : vector<16xf32> to vector<16x1xf32>
    %312 = vector.broadcast %311 : vector<16x1xf32> to vector<16x32xf32>
    %313 = arith.subf %309, %312 : vector<16x32xf32>
    %314 = math.exp %313 : vector<16x32xf32>
    %cst_155 = arith.constant dense<0.000000e+00> : vector<16xf32>
    %315 = vector.multi_reduction <add>, %314, %cst_155 [1] : vector<16x32xf32> to vector<16xf32>
    %316 = vector.shape_cast %315 : vector<16xf32> to vector<16x1xf32>
    %317 = tpu.reciprocal %316 {approx = true} : vector<16x1xf32> -> vector<16x1xf32>
    %318 = vector.broadcast %317 : vector<16x1xf32> to vector<16x32xf32>
    %319 = arith.mulf %314, %318 : vector<16x32xf32>
    %cst_156 = arith.constant dense<0.000000e+00> : vector<16x8xf32>
    %320 = tpu.matmul %319, %307, %cst_156 {dimension_numbers = #tpu.dot_dimension_numbers<[1], [0], [0], [1], [0, 0, 1, 1], [], []>} : vector<16x32xf32>, vector<32x8xf32>, vector<16x8xf32> -> vector<16x8xf32>
    %c0_157 = arith.constant 0 : index
    %c24_158 = arith.constant 24 : index
    %c0_159 = arith.constant 0 : index
    %321 = vector.load %arg8[%c0_157, %c24_158, %c0_159] : memref<1x32x32xf32, #tpu.memory_space<vmem>>, vector<1x8x32xf32>
    %322 = vector.shape_cast %321 : vector<1x8x32xf32> to vector<8x32xf32>
    %cst_160 = arith.constant dense<0.000000e+00> : vector<16x32xf32>
    %323 = tpu.matmul %320, %322, %cst_160 {dimension_numbers = #tpu.dot_dimension_numbers<[1], [0], [0], [1], [0, 0, 1, 1], [], []>} : vector<16x8xf32>, vector<8x32xf32>, vector<16x32xf32> -> vector<16x32xf32>
    %324 = arith.addf %289, %323 : vector<16x32xf32>
    %325 = vector.broadcast %181 : vector<1x32xf32> to vector<16x32xf32>
    %326 = arith.addf %324, %325 : vector<16x32xf32>
    %327 = arith.addf %176, %326 : vector<16x32xf32>
    %328 = vector.extract_strided_slice %5 {offsets = [11, 0], sizes = [1, 32], strides = [1, 1]} : vector<16x32xf32> to vector<1x32xf32>
    %329 = vector.extract_strided_slice %5 {offsets = [12, 0], sizes = [1, 32], strides = [1, 1]} : vector<16x32xf32> to vector<1x32xf32>
    %cst_161 = arith.constant dense<0.000000e+00> : vector<16xf32>
    %330 = vector.multi_reduction <add>, %327, %cst_161 [1] : vector<16x32xf32> to vector<16xf32>
    %331 = vector.shape_cast %330 : vector<16xf32> to vector<16x1xf32>
    %cst_162 = arith.constant 3.200000e+01 : f32
    %332 = vector.broadcast %cst_162 : f32 to vector<16x1xf32>
    %333 = arith.divf %331, %332 : vector<16x1xf32>
    %334 = vector.broadcast %333 : vector<16x1xf32> to vector<16x32xf32>
    %335 = arith.subf %327, %334 : vector<16x32xf32>
    %336 = arith.mulf %335, %335 : vector<16x32xf32>
    %cst_163 = arith.constant dense<0.000000e+00> : vector<16xf32>
    %337 = vector.multi_reduction <add>, %336, %cst_163 [1] : vector<16x32xf32> to vector<16xf32>
    %338 = vector.shape_cast %337 : vector<16xf32> to vector<16x1xf32>
    %cst_164 = arith.constant 3.200000e+01 : f32
    %339 = vector.broadcast %cst_164 : f32 to vector<16x1xf32>
    %340 = arith.divf %338, %339 : vector<16x1xf32>
    %cst_165 = arith.constant 9.99999974E-6 : f32
    %341 = vector.broadcast %cst_165 : f32 to vector<16x1xf32>
    %342 = arith.addf %340, %341 : vector<16x1xf32>
    %343 = math.rsqrt %342 : vector<16x1xf32>
    %344 = vector.broadcast %343 : vector<16x1xf32> to vector<16x32xf32>
    %345 = arith.mulf %335, %344 : vector<16x32xf32>
    %346 = vector.broadcast %328 : vector<1x32xf32> to vector<16x32xf32>
    %347 = arith.mulf %345, %346 : vector<16x32xf32>
    %348 = vector.broadcast %329 : vector<1x32xf32> to vector<16x32xf32>
    %349 = arith.addf %347, %348 : vector<16x32xf32>
    %350 = arith.truncf %349 : vector<16x32xf32> to vector<16x32xbf16>
    %cst_166 = arith.constant 0.000000e+00 : f32
    %351 = vector.broadcast %cst_166 : f32 to vector<16x32xf32>
    %c0_167 = arith.constant 0 : index
    %c0_168 = arith.constant 0 : index
    %c0_169 = arith.constant 0 : index
    %352 = vector.load %arg9[%c0_167, %c0_168, %c0_169] : memref<1x32x2048xbf16, #tpu.memory_space<vmem>>, vector<1x32x512xbf16>
    %353 = vector.shape_cast %352 : vector<1x32x512xbf16> to vector<32x512xbf16>
    %cst_170 = arith.constant dense<0.000000e+00> : vector<16x512xf32>
    %354 = tpu.matmul %350, %353, %cst_170 {dimension_numbers = #tpu.dot_dimension_numbers<[1], [0], [0], [1], [0, 0, 1, 1], [], []>} : vector<16x32xbf16>, vector<32x512xbf16>, vector<16x512xf32> -> vector<16x512xf32>
    %c0_171 = arith.constant 0 : index
    %c0_172 = arith.constant 0 : index
    %c0_173 = arith.constant 0 : index
    %355 = vector.load %arg10[%c0_171, %c0_172, %c0_173] : memref<1x1x2048xf32, #tpu.memory_space<vmem>>, vector<1x1x512xf32>
    %356 = vector.shape_cast %355 : vector<1x1x512xf32> to vector<1x512xf32>
    %357 = vector.broadcast %356 : vector<1x512xf32> to vector<16x512xf32>
    %358 = arith.addf %354, %357 : vector<16x512xf32>
    %cst_174 = arith.constant 0.000000e+00 : f32
    %359 = vector.broadcast %cst_174 : f32 to vector<16x512xf32>
    %360 = arith.maximumf %358, %359 : vector<16x512xf32>
    %361 = arith.truncf %360 : vector<16x512xf32> to vector<16x512xbf16>
    %c0_175 = arith.constant 0 : index
    %c0_176 = arith.constant 0 : index
    %c0_177 = arith.constant 0 : index
    %362 = vector.load %arg11[%c0_175, %c0_176, %c0_177] : memref<1x2048x32xbf16, #tpu.memory_space<vmem>>, vector<1x512x32xbf16>
    %363 = vector.shape_cast %362 : vector<1x512x32xbf16> to vector<512x32xbf16>
    %cst_178 = arith.constant dense<0.000000e+00> : vector<16x32xf32>
    %364 = tpu.matmul %361, %363, %cst_178 {dimension_numbers = #tpu.dot_dimension_numbers<[1], [0], [0], [1], [0, 0, 1, 1], [], []>} : vector<16x512xbf16>, vector<512x32xbf16>, vector<16x32xf32> -> vector<16x32xf32>
    %365 = arith.addf %351, %364 : vector<16x32xf32>
    %c0_179 = arith.constant 0 : index
    %c0_180 = arith.constant 0 : index
    %c512 = arith.constant 512 : index
    %366 = vector.load %arg9[%c0_179, %c0_180, %c512] : memref<1x32x2048xbf16, #tpu.memory_space<vmem>>, vector<1x32x512xbf16>
    %367 = vector.shape_cast %366 : vector<1x32x512xbf16> to vector<32x512xbf16>
    %cst_181 = arith.constant dense<0.000000e+00> : vector<16x512xf32>
    %368 = tpu.matmul %350, %367, %cst_181 {dimension_numbers = #tpu.dot_dimension_numbers<[1], [0], [0], [1], [0, 0, 1, 1], [], []>} : vector<16x32xbf16>, vector<32x512xbf16>, vector<16x512xf32> -> vector<16x512xf32>
    %c0_182 = arith.constant 0 : index
    %c0_183 = arith.constant 0 : index
    %c512_184 = arith.constant 512 : index
    %369 = vector.load %arg10[%c0_182, %c0_183, %c512_184] : memref<1x1x2048xf32, #tpu.memory_space<vmem>>, vector<1x1x512xf32>
    %370 = vector.shape_cast %369 : vector<1x1x512xf32> to vector<1x512xf32>
    %371 = vector.broadcast %370 : vector<1x512xf32> to vector<16x512xf32>
    %372 = arith.addf %368, %371 : vector<16x512xf32>
    %cst_185 = arith.constant 0.000000e+00 : f32
    %373 = vector.broadcast %cst_185 : f32 to vector<16x512xf32>
    %374 = arith.maximumf %372, %373 : vector<16x512xf32>
    %375 = arith.truncf %374 : vector<16x512xf32> to vector<16x512xbf16>
    %c0_186 = arith.constant 0 : index
    %c512_187 = arith.constant 512 : index
    %c0_188 = arith.constant 0 : index
    %376 = vector.load %arg11[%c0_186, %c512_187, %c0_188] : memref<1x2048x32xbf16, #tpu.memory_space<vmem>>, vector<1x512x32xbf16>
    %377 = vector.shape_cast %376 : vector<1x512x32xbf16> to vector<512x32xbf16>
    %cst_189 = arith.constant dense<0.000000e+00> : vector<16x32xf32>
    %378 = tpu.matmul %375, %377, %cst_189 {dimension_numbers = #tpu.dot_dimension_numbers<[1], [0], [0], [1], [0, 0, 1, 1], [], []>} : vector<16x512xbf16>, vector<512x32xbf16>, vector<16x32xf32> -> vector<16x32xf32>
    %379 = arith.addf %365, %378 : vector<16x32xf32>
    %c0_190 = arith.constant 0 : index
    %c0_191 = arith.constant 0 : index
    %c1024 = arith.constant 1024 : index
    %380 = vector.load %arg9[%c0_190, %c0_191, %c1024] : memref<1x32x2048xbf16, #tpu.memory_space<vmem>>, vector<1x32x512xbf16>
    %381 = vector.shape_cast %380 : vector<1x32x512xbf16> to vector<32x512xbf16>
    %cst_192 = arith.constant dense<0.000000e+00> : vector<16x512xf32>
    %382 = tpu.matmul %350, %381, %cst_192 {dimension_numbers = #tpu.dot_dimension_numbers<[1], [0], [0], [1], [0, 0, 1, 1], [], []>} : vector<16x32xbf16>, vector<32x512xbf16>, vector<16x512xf32> -> vector<16x512xf32>
    %c0_193 = arith.constant 0 : index
    %c0_194 = arith.constant 0 : index
    %c1024_195 = arith.constant 1024 : index
    %383 = vector.load %arg10[%c0_193, %c0_194, %c1024_195] : memref<1x1x2048xf32, #tpu.memory_space<vmem>>, vector<1x1x512xf32>
    %384 = vector.shape_cast %383 : vector<1x1x512xf32> to vector<1x512xf32>
    %385 = vector.broadcast %384 : vector<1x512xf32> to vector<16x512xf32>
    %386 = arith.addf %382, %385 : vector<16x512xf32>
    %cst_196 = arith.constant 0.000000e+00 : f32
    %387 = vector.broadcast %cst_196 : f32 to vector<16x512xf32>
    %388 = arith.maximumf %386, %387 : vector<16x512xf32>
    %389 = arith.truncf %388 : vector<16x512xf32> to vector<16x512xbf16>
    %c0_197 = arith.constant 0 : index
    %c1024_198 = arith.constant 1024 : index
    %c0_199 = arith.constant 0 : index
    %390 = vector.load %arg11[%c0_197, %c1024_198, %c0_199] : memref<1x2048x32xbf16, #tpu.memory_space<vmem>>, vector<1x512x32xbf16>
    %391 = vector.shape_cast %390 : vector<1x512x32xbf16> to vector<512x32xbf16>
    %cst_200 = arith.constant dense<0.000000e+00> : vector<16x32xf32>
    %392 = tpu.matmul %389, %391, %cst_200 {dimension_numbers = #tpu.dot_dimension_numbers<[1], [0], [0], [1], [0, 0, 1, 1], [], []>} : vector<16x512xbf16>, vector<512x32xbf16>, vector<16x32xf32> -> vector<16x32xf32>
    %393 = arith.addf %379, %392 : vector<16x32xf32>
    %c0_201 = arith.constant 0 : index
    %c0_202 = arith.constant 0 : index
    %c1536 = arith.constant 1536 : index
    %394 = vector.load %arg9[%c0_201, %c0_202, %c1536] : memref<1x32x2048xbf16, #tpu.memory_space<vmem>>, vector<1x32x512xbf16>
    %395 = vector.shape_cast %394 : vector<1x32x512xbf16> to vector<32x512xbf16>
    %cst_203 = arith.constant dense<0.000000e+00> : vector<16x512xf32>
    %396 = tpu.matmul %350, %395, %cst_203 {dimension_numbers = #tpu.dot_dimension_numbers<[1], [0], [0], [1], [0, 0, 1, 1], [], []>} : vector<16x32xbf16>, vector<32x512xbf16>, vector<16x512xf32> -> vector<16x512xf32>
    %c0_204 = arith.constant 0 : index
    %c0_205 = arith.constant 0 : index
    %c1536_206 = arith.constant 1536 : index
    %397 = vector.load %arg10[%c0_204, %c0_205, %c1536_206] : memref<1x1x2048xf32, #tpu.memory_space<vmem>>, vector<1x1x512xf32>
    %398 = vector.shape_cast %397 : vector<1x1x512xf32> to vector<1x512xf32>
    %399 = vector.broadcast %398 : vector<1x512xf32> to vector<16x512xf32>
    %400 = arith.addf %396, %399 : vector<16x512xf32>
    %cst_207 = arith.constant 0.000000e+00 : f32
    %401 = vector.broadcast %cst_207 : f32 to vector<16x512xf32>
    %402 = arith.maximumf %400, %401 : vector<16x512xf32>
    %403 = arith.truncf %402 : vector<16x512xf32> to vector<16x512xbf16>
    %c0_208 = arith.constant 0 : index
    %c1536_209 = arith.constant 1536 : index
    %c0_210 = arith.constant 0 : index
    %404 = vector.load %arg11[%c0_208, %c1536_209, %c0_210] : memref<1x2048x32xbf16, #tpu.memory_space<vmem>>, vector<1x512x32xbf16>
    %405 = vector.shape_cast %404 : vector<1x512x32xbf16> to vector<512x32xbf16>
    %cst_211 = arith.constant dense<0.000000e+00> : vector<16x32xf32>
    %406 = tpu.matmul %403, %405, %cst_211 {dimension_numbers = #tpu.dot_dimension_numbers<[1], [0], [0], [1], [0, 0, 1, 1], [], []>} : vector<16x512xbf16>, vector<512x32xbf16>, vector<16x32xf32> -> vector<16x32xf32>
    %407 = arith.addf %393, %406 : vector<16x32xf32>
    %408 = vector.extract_strided_slice %5 {offsets = [8, 0], sizes = [1, 32], strides = [1, 1]} : vector<16x32xf32> to vector<1x32xf32>
    %409 = vector.broadcast %408 : vector<1x32xf32> to vector<16x32xf32>
    %410 = arith.addf %407, %409 : vector<16x32xf32>
    %411 = arith.addf %349, %410 : vector<16x32xf32>
    %412 = vector.extract_strided_slice %5 {offsets = [13, 0], sizes = [1, 32], strides = [1, 1]} : vector<16x32xf32> to vector<1x32xf32>
    %413 = vector.extract_strided_slice %5 {offsets = [14, 0], sizes = [1, 32], strides = [1, 1]} : vector<16x32xf32> to vector<1x32xf32>
    %cst_212 = arith.constant dense<0.000000e+00> : vector<16xf32>
    %414 = vector.multi_reduction <add>, %411, %cst_212 [1] : vector<16x32xf32> to vector<16xf32>
    %415 = vector.shape_cast %414 : vector<16xf32> to vector<16x1xf32>
    %cst_213 = arith.constant 3.200000e+01 : f32
    %416 = vector.broadcast %cst_213 : f32 to vector<16x1xf32>
    %417 = arith.divf %415, %416 : vector<16x1xf32>
    %418 = vector.broadcast %417 : vector<16x1xf32> to vector<16x32xf32>
    %419 = arith.subf %411, %418 : vector<16x32xf32>
    %420 = arith.mulf %419, %419 : vector<16x32xf32>
    %cst_214 = arith.constant dense<0.000000e+00> : vector<16xf32>
    %421 = vector.multi_reduction <add>, %420, %cst_214 [1] : vector<16x32xf32> to vector<16xf32>
    %422 = vector.shape_cast %421 : vector<16xf32> to vector<16x1xf32>
    %cst_215 = arith.constant 3.200000e+01 : f32
    %423 = vector.broadcast %cst_215 : f32 to vector<16x1xf32>
    %424 = arith.divf %422, %423 : vector<16x1xf32>
    %cst_216 = arith.constant 9.99999974E-6 : f32
    %425 = vector.broadcast %cst_216 : f32 to vector<16x1xf32>
    %426 = arith.addf %424, %425 : vector<16x1xf32>
    %427 = math.rsqrt %426 : vector<16x1xf32>
    %428 = vector.broadcast %427 : vector<16x1xf32> to vector<16x32xf32>
    %429 = arith.mulf %419, %428 : vector<16x32xf32>
    %430 = vector.broadcast %412 : vector<1x32xf32> to vector<16x32xf32>
    %431 = arith.mulf %429, %430 : vector<16x32xf32>
    %432 = vector.broadcast %413 : vector<1x32xf32> to vector<16x32xf32>
    %433 = arith.addf %431, %432 : vector<16x32xf32>
    %c0_217 = arith.constant 0 : index
    %c0_218 = arith.constant 0 : index
    %434 = vector.load %arg16[%c0_217, %c0_218] : memref<16x32xf32, #tpu.memory_space<vmem>>, vector<16x32xf32>
    tpu.vector_store %arg16[%c0_217, %c0_218], %433 {strides = array<i32>} : memref<16x32xf32, #tpu.memory_space<vmem>>, vector<16x32xf32>,
    %c1_i32 = arith.constant 1 : i32
    %435 = arith.cmpi eq, %arg0, %c1_i32 : i32
    %436 = arith.extui %435 : i1 to i32
    %c0_i32_219 = arith.constant 0 : i32
    %437 = arith.cmpi ne, %436, %c0_i32_219 : i32
    scf.if %437 {
      %438 = arith.truncf %433 : vector<16x32xf32> to vector<16x32xbf16>
      %c0_220 = arith.constant 0 : index
      %c0_221 = arith.constant 0 : index
      %439 = vector.load %arg13[%c0_220, %c0_221] : memref<32x128xbf16, #tpu.memory_space<vmem>>, vector<32x128xbf16>
      %cst_222 = arith.constant dense<0.000000e+00> : vector<16x128xf32>
      %440 = tpu.matmul %438, %439, %cst_222 {dimension_numbers = #tpu.dot_dimension_numbers<[1], [0], [0], [1], [0, 0, 1, 1], [], []>} : vector<16x32xbf16>, vector<32x128xbf16>, vector<16x128xf32> -> vector<16x128xf32>
      %c0_223 = arith.constant 0 : index
      %c0_224 = arith.constant 0 : index
      %441 = vector.load %arg14[%c0_223, %c0_224] : memref<1x128xf32, #tpu.memory_space<vmem>>, vector<1x128xf32>
      %442 = vector.broadcast %441 : vector<1x128xf32> to vector<16x128xf32>
      %443 = arith.addf %440, %442 : vector<16x128xf32>
      %c0_225 = arith.constant 0 : index
      %c0_226 = arith.constant 0 : index
      %444 = vector.load %arg15[%c0_225, %c0_226] : memref<16x128xf32, #tpu.memory_space<vmem>>, vector<16x128xf32>
      tpu.vector_store %arg15[%c0_225, %c0_226], %443 {strides = array<i32>} : memref<16x128xf32, #tpu.memory_space<vmem>>, vector<16x128xf32>,
    } else {
    }
    return
  }
  func.func @transform_0(%arg0: i32) -> (i32, i32) {
    %c0_i32 = arith.constant 0 : i32
    %c0_i32_0 = arith.constant 0 : i32
    %c0_i32_1 = arith.constant 0 : i32
    return %c0_i32, %c0_i32_0 : i32, i32
  }
  func.func @transform_1(%arg0: i32) -> (i32, i32) {
    %c0_i32 = arith.constant 0 : i32
    %c0_i32_0 = arith.constant 0 : i32
    %c0_i32_1 = arith.constant 0 : i32
    return %c0_i32, %c0_i32_0 : i32, i32
  }
  func.func @transform_2(%arg0: i32) -> (i32, i32) {
    %c0_i32 = arith.constant 0 : i32
    %c0_i32_0 = arith.constant 0 : i32
    %c0_i32_1 = arith.constant 0 : i32
    return %c0_i32, %c0_i32_0 : i32, i32
  }
  func.func @transform_3(%arg0: i32) -> (i32, i32) {
    %c0_i32 = arith.constant 0 : i32
    %c0_i32_0 = arith.constant 0 : i32
    %c0_i32_1 = arith.constant 0 : i32
    return %c0_i32, %c0_i32_0 : i32, i32
  }
  func.func @transform_4(%arg0: i32) -> (i32, i32, i32) {
    %c0_i32 = arith.constant 0 : i32
    %c0_i32_0 = arith.constant 0 : i32
    %c0_i32_1 = arith.constant 0 : i32
    return %arg0, %c0_i32, %c0_i32_0 : i32, i32, i32
  }
  func.func @transform_5(%arg0: i32) -> (i32, i32, i32) {
    %c0_i32 = arith.constant 0 : i32
    %c0_i32_0 = arith.constant 0 : i32
    %c0_i32_1 = arith.constant 0 : i32
    return %arg0, %c0_i32, %c0_i32_0 : i32, i32, i32
  }
  func.func @transform_6(%arg0: i32) -> (i32, i32, i32) {
    %c0_i32 = arith.constant 0 : i32
    %c0_i32_0 = arith.constant 0 : i32
    %c0_i32_1 = arith.constant 0 : i32
    return %arg0, %c0_i32, %c0_i32_0 : i32, i32, i32
  }
  func.func @transform_7(%arg0: i32) -> (i32, i32, i32) {
    %c0_i32 = arith.constant 0 : i32
    %c0_i32_0 = arith.constant 0 : i32
    %c0_i32_1 = arith.constant 0 : i32
    return %arg0, %c0_i32, %c0_i32_0 : i32, i32, i32
  }
  func.func @transform_8(%arg0: i32) -> (i32, i32, i32) {
    %c0_i32 = arith.constant 0 : i32
    %c0_i32_0 = arith.constant 0 : i32
    %c0_i32_1 = arith.constant 0 : i32
    return %arg0, %c0_i32, %c0_i32_0 : i32, i32, i32
  }
  func.func @transform_9(%arg0: i32) -> (i32, i32, i32) {
    %c0_i32 = arith.constant 0 : i32
    %c0_i32_0 = arith.constant 0 : i32
    %c0_i32_1 = arith.constant 0 : i32
    return %arg0, %c0_i32, %c0_i32_0 : i32, i32, i32
  }
  func.func @transform_10(%arg0: i32) -> (i32, i32, i32) {
    %c0_i32 = arith.constant 0 : i32
    %c0_i32_0 = arith.constant 0 : i32
    %c0_i32_1 = arith.constant 0 : i32
    return %arg0, %c0_i32, %c0_i32_0 : i32, i32, i32
  }
  func.func @transform_11(%arg0: i32) -> (i32, i32, i32) {
    %c0_i32 = arith.constant 0 : i32
    %c0_i32_0 = arith.constant 0 : i32
    %c0_i32_1 = arith.constant 0 : i32
    return %arg0, %c0_i32, %c0_i32_0 : i32, i32, i32
  }
  func.func @transform_12(%arg0: i32) -> (i32, i32) {
    %c0_i32 = arith.constant 0 : i32
    %c0_i32_0 = arith.constant 0 : i32
    %c0_i32_1 = arith.constant 0 : i32
    return %c0_i32, %c0_i32_0 : i32, i32
  }
  func.func @transform_13(%arg0: i32) -> (i32, i32) {
    %c0_i32 = arith.constant 0 : i32
    %c0_i32_0 = arith.constant 0 : i32
    %c0_i32_1 = arith.constant 0 : i32
    return %c0_i32, %c0_i32_0 : i32, i32
  }
  func.func @transform_14(%arg0: i32) -> (i32, i32) {
    %c0_i32 = arith.constant 0 : i32
    %c0_i32_0 = arith.constant 0 : i32
    %c0_i32_1 = arith.constant 0 : i32
    return %c0_i32, %c0_i32_0 : i32, i32
  }
}

</mosaic_0001>

<llo_original>
// kernel: transformer_decoder_forward.1
$region0: #{transformer_decoder_forward.1}
  #allocation0 [shape = 'u32[]', space=smem, size = 0x4, offset = 0x4, fixed_abs, tag = 'smem constant byte address 0x4 - core index']
  #allocation1 [shape = 'u32[72,128]{1,0:T(1,128)}', space=vmem, size = 0x9000, scoped, tag = 'internal scratch']
  #allocation2 [shape = 'f32[16,32]{1,0:T(8,128)}', space=vmem, size = 0x2000, scoped, tag = 'scratch operand']
  %s0 = inlined_call_operand.vmem [shape: f32[16,32], index: 0, kind: input, shape index: {}]
  %s1 = inlined_call_operand.vmem [shape: f32[32,32], index: 1, kind: input, shape index: {}]
  %s2 = inlined_call_operand.vmem [shape: f32[16,16], index: 2, kind: input, shape index: {}]
  %s3 = inlined_call_operand.vmem [shape: f32[16,32], index: 3, kind: input, shape index: {}]
  %s4 = inlined_call_operand.vmem [shape: bf16[2,384,8], index: 4, kind: input, shape index: {}]
  %s5 = inlined_call_operand.vmem [shape: f32[2,32,32], index: 5, kind: input, shape index: {}]
  %s6 = inlined_call_operand.vmem [shape: bf16[2,384,8], index: 6, kind: input, shape index: {}]
  %s7 = inlined_call_operand.vmem [shape: f32[2,32,32], index: 7, kind: input, shape index: {}]
  %s8 = inlined_call_operand.vmem [shape: bf16[2,32,2048], index: 8, kind: input, shape index: {}]
  %s9 = inlined_call_operand.vmem [shape: f32[2,1,2048], index: 9, kind: input, shape index: {}]
  %s10 = inlined_call_operand.vmem [shape: bf16[2,2048,32], index: 10, kind: input, shape index: {}]
  %s11 = inlined_call_operand.vmem [shape: f32[2,16,32], index: 11, kind: input, shape index: {}]
  %s12 = inlined_call_operand.vmem [shape: bf16[32,128], index: 12, kind: input, shape index: {}]
  %s13 = inlined_call_operand.vmem [shape: f32[1,128], index: 13, kind: input, shape index: {}]
  %s14 = inlined_call_operand.vmem [shape: f32[16,128], index: 14, kind: output, shape index: {}]
  %s15 = sld [smem:[#allocation0]]
  $region97: #{transformer_decoder_forward.1} parent=0
    _
  %s17 = ssub.s32 1, %s15
  %s18 = scalar_select 0, %s17, %s15
  loop: start=0, step=1, limit=4
  $region2: #{transformer_decoder_forward.1} parent=0 // loop_pre_header
    _
  $region3: #{transformer_decoder_forward.1} parent=0 // loop_header
    %s20 = sphi 0, %s24
    %p21 = scmp.ge.s32.totalorder %s20, 4
    %s28 = sphi 0, %s28
    %s30 = sphi 0, %s28
    %s31 = sphi 0, %s30
    %s45 = sphi 0, %s31
    %s49 = sphi 0, %s49
    %s51 = sphi 0, %s49
    %s52 = sphi 0, %s51
    %s66 = sphi 0, %s52
    %s70 = sphi 0, %s70
    %s72 = sphi 0, %s70
    %s73 = sphi 0, %s72
    %s87 = sphi 0, %s73
    %s91 = sphi 0, %s91
    %s93 = sphi 0, %s91
    %s94 = sphi 0, %s93
    %s108 = sphi 0, %s94
    %s114 = sphi 0, %s116
    %s117 = sphi 0, %s114
    %s118 = sphi 0, %s117
    %s134 = sphi 0, %s118
    %s140 = sphi 0, %s142
    %s143 = sphi 0, %s140
    %s144 = sphi 0, %s143
    %s160 = sphi 0, %s144
    %s166 = sphi 0, %s168
    %s169 = sphi 0, %s166
    %s170 = sphi 0, %s169
    %s186 = sphi 0, %s170
    %s192 = sphi 0, %s194
    %s195 = sphi 0, %s192
    %s196 = sphi 0, %s195
    %s212 = sphi 0, %s196
    %s218 = sphi 0, %s220
    %s221 = sphi 0, %s218
    %s222 = sphi 0, %s221
    %s238 = sphi 0, %s222
    %s244 = sphi 0, %s246
    %s247 = sphi 0, %s244
    %s248 = sphi 0, %s247
    %s264 = sphi 0, %s248
    %s270 = sphi 0, %s272
    %s273 = sphi 0, %s270
    %s274 = sphi 0, %s273
    %s290 = sphi 0, %s274
    %s296 = sphi 0, %s298
    %s299 = sphi 0, %s296
    %s300 = sphi 0, %s299
    %s316 = sphi 0, %s300
    %s320 = sphi 0, %s320
    %s322 = sphi 0, %s320
    %s323 = sphi 0, %s322
    %s337 = sphi 0, %s323
    %s341 = sphi 0, %s341
    %s343 = sphi 0, %s341
    %s344 = sphi 0, %s343
    %s358 = sphi 0, %s344
    %s362 = sphi 0, %s362
    %s364 = sphi 0, %s362
    %s365 = sphi 0, %s364
    %s379 = sphi 0, %s365
  $region4: #{transformer_decoder_forward.1} parent=0 // loop_header_branch
    %23 = sbr.rel (%p21) target = $region8
  $region5: #{transformer_decoder_forward.1} parent=0 // loop_body
    %s25 = ssub.s32 %s20, 1
    %s26 = ssub.s32 %s20, 2
    %s27 = sadd.s32 %s20, 1
    %s29 = sadd.s32 %s28, 1
    %p32 = scmp.eq.s32.totalorder %s20, 1
    %p33 = scmp.ne.s32.totalorder %s28, %s30
    %p34 = scmp.eq.s32.totalorder %s20, 0
    %p35 = por %p33, %p34
    %p36 = scmp.ne.s32.totalorder %s28, %s30
    %p37 = scmp.eq.s32.totalorder %s25, 1
    %p38 = por %p36, %p37
    %p39 = scmp.ne.s32.totalorder %s30, %s31
    %p40 = scmp.eq.s32.totalorder %s25, 0
    %p41 = por %p39, %p40
    %p42 = scmp.ne.s32.totalorder %s30, %s31
    %p43 = scmp.eq.s32.totalorder %s26, 1
    %p44 = por %p42, %p43
    %p46 = scmp.ne.s32.totalorder %s31, %s45
    %p47 = scmp.eq.s32.totalorder %s26, 0
    %p48 = por %p46, %p47
    %s50 = sadd.s32 %s49, 1
    %p53 = scmp.eq.s32.totalorder %s20, 1
    %p54 = scmp.ne.s32.totalorder %s49, %s51
    %p55 = scmp.eq.s32.totalorder %s20, 0
    %p56 = por %p54, %p55
    %p57 = scmp.ne.s32.totalorder %s49, %s51
    %p58 = scmp.eq.s32.totalorder %s25, 1
    %p59 = por %p57, %p58
    %p60 = scmp.ne.s32.totalorder %s51, %s52
    %p61 = scmp.eq.s32.totalorder %s25, 0
    %p62 = por %p60, %p61
    %p63 = scmp.ne.s32.totalorder %s51, %s52
    %p64 = scmp.eq.s32.totalorder %s26, 1
    %p65 = por %p63, %p64
    %p67 = scmp.ne.s32.totalorder %s52, %s66
    %p68 = scmp.eq.s32.totalorder %s26, 0
    %p69 = por %p67, %p68
    %s71 = sadd.s32 %s70, 1
    %p74 = scmp.eq.s32.totalorder %s20, 1
    %p75 = scmp.ne.s32.totalorder %s70, %s72
    %p76 = scmp.eq.s32.totalorder %s20, 0
    %p77 = por %p75, %p76
    %p78 = scmp.ne.s32.totalorder %s70, %s72
    %p79 = scmp.eq.s32.totalorder %s25, 1
    %p80 = por %p78, %p79
    %p81 = scmp.ne.s32.totalorder %s72, %s73
    %p82 = scmp.eq.s32.totalorder %s25, 0
    %p83 = por %p81, %p82
    %p84 = scmp.ne.s32.totalorder %s72, %s73
    %p85 = scmp.eq.s32.totalorder %s26, 1
    %p86 = por %p84, %p85
    %p88 = scmp.ne.s32.totalorder %s73, %s87
    %p89 = scmp.eq.s32.totalorder %s26, 0
    %p90 = por %p88, %p89
    %s92 = sadd.s32 %s91, 1
    %p95 = scmp.eq.s32.totalorder %s20, 1
    %p96 = scmp.ne.s32.totalorder %s91, %s93
    %p97 = scmp.eq.s32.totalorder %s20, 0
    %p98 = por %p96, %p97
    %p99 = scmp.ne.s32.totalorder %s91, %s93
    %p100 = scmp.eq.s32.totalorder %s25, 1
    %p101 = por %p99, %p100
    %p102 = scmp.ne.s32.totalorder %s93, %s94
    %p103 = scmp.eq.s32.totalorder %s25, 0
    %p104 = por %p102, %p103
    %p105 = scmp.ne.s32.totalorder %s93, %s94
    %p106 = scmp.eq.s32.totalorder %s26, 1
    %p107 = por %p105, %p106
    %p109 = scmp.ne.s32.totalorder %s94, %s108
    %p110 = scmp.eq.s32.totalorder %s26, 0
    %p111 = por %p109, %p110
    %s112 = ssub.s32 %s20, %s27
    %p113 = scmp.eq.s32.totalorder %s112, 0
    %s115 = sadd.s32 %s114, 1
    %s116 = scalar_select %p113, %s114, %s115
    %p119 = pneg %p113
    %p120 = scmp.eq.s32.totalorder %s20, 1
    %p121 = por %p119, %p120
    %p122 = scmp.ne.s32.totalorder %s114, %s117
    %p123 = scmp.eq.s32.totalorder %s20, 0
    %p124 = por %p122, %p123
    %p125 = scmp.ne.s32.totalorder %s114, %s117
    %p126 = scmp.eq.s32.totalorder %s25, 1
    %p127 = por %p125, %p126
    %p128 = scmp.ne.s32.totalorder %s117, %s118
    %p129 = scmp.eq.s32.totalorder %s25, 0
    %p130 = por %p128, %p129
    %p131 = scmp.ne.s32.totalorder %s117, %s118
    %p132 = scmp.eq.s32.totalorder %s26, 1
    %p133 = por %p131, %p132
    %p135 = scmp.ne.s32.totalorder %s118, %s134
    %p136 = scmp.eq.s32.totalorder %s26, 0
    %p137 = por %p135, %p136
    %s138 = ssub.s32 %s20, %s27
    %p139 = scmp.eq.s32.totalorder %s138, 0
    %s141 = sadd.s32 %s140, 1
    %s142 = scalar_select %p139, %s140, %s141
    %p145 = pneg %p139
    %p146 = scmp.eq.s32.totalorder %s20, 1
    %p147 = por %p145, %p146
    %p148 = scmp.ne.s32.totalorder %s140, %s143
    %p149 = scmp.eq.s32.totalorder %s20, 0
    %p150 = por %p148, %p149
    %p151 = scmp.ne.s32.totalorder %s140, %s143
    %p152 = scmp.eq.s32.totalorder %s25, 1
    %p153 = por %p151, %p152
    %p154 = scmp.ne.s32.totalorder %s143, %s144
    %p155 = scmp.eq.s32.totalorder %s25, 0
    %p156 = por %p154, %p155
    %p157 = scmp.ne.s32.totalorder %s143, %s144
    %p158 = scmp.eq.s32.totalorder %s26, 1
    %p159 = por %p157, %p158
    %p161 = scmp.ne.s32.totalorder %s144, %s160
    %p162 = scmp.eq.s32.totalorder %s26, 0
    %p163 = por %p161, %p162
    %s164 = ssub.s32 %s20, %s27
    %p165 = scmp.eq.s32.totalorder %s164, 0
    %s167 = sadd.s32 %s166, 1
    %s168 = scalar_select %p165, %s166, %s167
    %p171 = pneg %p165
    %p172 = scmp.eq.s32.totalorder %s20, 1
    %p173 = por %p171, %p172
    %p174 = scmp.ne.s32.totalorder %s166, %s169
    %p175 = scmp.eq.s32.totalorder %s20, 0
    %p176 = por %p174, %p175
    %p177 = scmp.ne.s32.totalorder %s166, %s169
    %p178 = scmp.eq.s32.totalorder %s25, 1
    %p179 = por %p177, %p178
    %p180 = scmp.ne.s32.totalorder %s169, %s170
    %p181 = scmp.eq.s32.totalorder %s25, 0
    %p182 = por %p180, %p181
    %p183 = scmp.ne.s32.totalorder %s169, %s170
    %p184 = scmp.eq.s32.totalorder %s26, 1
    %p185 = por %p183, %p184
    %p187 = scmp.ne.s32.totalorder %s170, %s186
    %p188 = scmp.eq.s32.totalorder %s26, 0
    %p189 = por %p187, %p188
    %s190 = ssub.s32 %s20, %s27
    %p191 = scmp.eq.s32.totalorder %s190, 0
    %s193 = sadd.s32 %s192, 1
    %s194 = scalar_select %p191, %s192, %s193
    %p197 = pneg %p191
    %p198 = scmp.eq.s32.totalorder %s20, 1
    %p199 = por %p197, %p198
    %p200 = scmp.ne.s32.totalorder %s192, %s195
    %p201 = scmp.eq.s32.totalorder %s20, 0
    %p202 = por %p200, %p201
    %p203 = scmp.ne.s32.totalorder %s192, %s195
    %p204 = scmp.eq.s32.totalorder %s25, 1
    %p205 = por %p203, %p204
    %p206 = scmp.ne.s32.totalorder %s195, %s196
    %p207 = scmp.eq.s32.totalorder %s25, 0
    %p208 = por %p206, %p207
    %p209 = scmp.ne.s32.totalorder %s195, %s196
    %p210 = scmp.eq.s32.totalorder %s26, 1
    %p211 = por %p209, %p210
    %p213 = scmp.ne.s32.totalorder %s196, %s212
    %p214 = scmp.eq.s32.totalorder %s26, 0
    %p215 = por %p213, %p214
    %s216 = ssub.s32 %s20, %s27
    %p217 = scmp.eq.s32.totalorder %s216, 0
    %s219 = sadd.s32 %s218, 1
    %s220 = scalar_select %p217, %s218, %s219
    %p223 = pneg %p217
    %p224 = scmp.eq.s32.totalorder %s20, 1
    %p225 = por %p223, %p224
    %p226 = scmp.ne.s32.totalorder %s218, %s221
    %p227 = scmp.eq.s32.totalorder %s20, 0
    %p228 = por %p226, %p227
    %p229 = scmp.ne.s32.totalorder %s218, %s221
    %p230 = scmp.eq.s32.totalorder %s25, 1
    %p231 = por %p229, %p230
    %p232 = scmp.ne.s32.totalorder %s221, %s222
    %p233 = scmp.eq.s32.totalorder %s25, 0
    %p234 = por %p232, %p233
    %p235 = scmp.ne.s32.totalorder %s221, %s222
    %p236 = scmp.eq.s32.totalorder %s26, 1
    %p237 = por %p235, %p236
    %p239 = scmp.ne.s32.totalorder %s222, %s238
    %p240 = scmp.eq.s32.totalorder %s26, 0
    %p241 = por %p239, %p240
    %s242 = ssub.s32 %s20, %s27
    %p243 = scmp.eq.s32.totalorder %s242, 0
    %s245 = sadd.s32 %s244, 1
    %s246 = scalar_select %p243, %s244, %s245
    %p249 = pneg %p243
    %p250 = scmp.eq.s32.totalorder %s20, 1
    %p251 = por %p249, %p250
    %p252 = scmp.ne.s32.totalorder %s244, %s247
    %p253 = scmp.eq.s32.totalorder %s20, 0
    %p254 = por %p252, %p253
    %p255 = scmp.ne.s32.totalorder %s244, %s247
    %p256 = scmp.eq.s32.totalorder %s25, 1
    %p257 = por %p255, %p256
    %p258 = scmp.ne.s32.totalorder %s247, %s248
    %p259 = scmp.eq.s32.totalorder %s25, 0
    %p260 = por %p258, %p259
    %p261 = scmp.ne.s32.totalorder %s247, %s248
    %p262 = scmp.eq.s32.totalorder %s26, 1
    %p263 = por %p261, %p262
    %p265 = scmp.ne.s32.totalorder %s248, %s264
    %p266 = scmp.eq.s32.totalorder %s26, 0
    %p267 = por %p265, %p266
    %s268 = ssub.s32 %s20, %s27
    %p269 = scmp.eq.s32.totalorder %s268, 0
    %s271 = sadd.s32 %s270, 1
    %s272 = scalar_select %p269, %s270, %s271
    %p275 = pneg %p269
    %p276 = scmp.eq.s32.totalorder %s20, 1
    %p277 = por %p275, %p276
    %p278 = scmp.ne.s32.totalorder %s270, %s273
    %p279 = scmp.eq.s32.totalorder %s20, 0
    %p280 = por %p278, %p279
    %p281 = scmp.ne.s32.totalorder %s270, %s273
    %p282 = scmp.eq.s32.totalorder %s25, 1
    %p283 = por %p281, %p282
    %p284 = scmp.ne.s32.totalorder %s273, %s274
    %p285 = scmp.eq.s32.totalorder %s25, 0
    %p286 = por %p284, %p285
    %p287 = scmp.ne.s32.totalorder %s273, %s274
    %p288 = scmp.eq.s32.totalorder %s26, 1
    %p289 = por %p287, %p288
    %p291 = scmp.ne.s32.totalorder %s274, %s290
    %p292 = scmp.eq.s32.totalorder %s26, 0
    %p293 = por %p291, %p292
    %s294 = ssub.s32 %s20, %s27
    %p295 = scmp.eq.s32.totalorder %s294, 0
    %s297 = sadd.s32 %s296, 1
    %s298 = scalar_select %p295, %s296, %s297
    %p301 = pneg %p295
    %p302 = scmp.eq.s32.totalorder %s20, 1
    %p303 = por %p301, %p302
    %p304 = scmp.ne.s32.totalorder %s296, %s299
    %p305 = scmp.eq.s32.totalorder %s20, 0
    %p306 = por %p304, %p305
    %p307 = scmp.ne.s32.totalorder %s296, %s299
    %p308 = scmp.eq.s32.totalorder %s25, 1
    %p309 = por %p307, %p308
    %p310 = scmp.ne.s32.totalorder %s299, %s300
    %p311 = scmp.eq.s32.totalorder %s25, 0
    %p312 = por %p310, %p311
    %p313 = scmp.ne.s32.totalorder %s299, %s300
    %p314 = scmp.eq.s32.totalorder %s26, 1
    %p315 = por %p313, %p314
    %p317 = scmp.ne.s32.totalorder %s300, %s316
    %p318 = scmp.eq.s32.totalorder %s26, 0
    %p319 = por %p317, %p318
    %s321 = sadd.s32 %s320, 1
    %p324 = scmp.eq.s32.totalorder %s20, 1
    %p325 = scmp.ne.s32.totalorder %s320, %s322
    %p326 = scmp.eq.s32.totalorder %s20, 0
    %p327 = por %p325, %p326
    %p328 = scmp.ne.s32.totalorder %s320, %s322
    %p329 = scmp.eq.s32.totalorder %s25, 1
    %p330 = por %p328, %p329
    %p331 = scmp.ne.s32.totalorder %s322, %s323
    %p332 = scmp.eq.s32.totalorder %s25, 0
    %p333 = por %p331, %p332
    %p334 = scmp.ne.s32.totalorder %s322, %s323
    %p335 = scmp.eq.s32.totalorder %s26, 1
    %p336 = por %p334, %p335
    %p338 = scmp.ne.s32.totalorder %s323, %s337
    %p339 = scmp.eq.s32.totalorder %s26, 0
    %p340 = por %p338, %p339
    %s342 = sadd.s32 %s341, 1
    %p345 = scmp.eq.s32.totalorder %s20, 1
    %p346 = scmp.ne.s32.totalorder %s341, %s343
    %p347 = scmp.eq.s32.totalorder %s20, 0
    %p348 = por %p346, %p347
    %p349 = scmp.ne.s32.totalorder %s341, %s343
    %p350 = scmp.eq.s32.totalorder %s25, 1
    %p351 = por %p349, %p350
    %p352 = scmp.ne.s32.totalorder %s343, %s344
    %p353 = scmp.eq.s32.totalorder %s25, 0
    %p354 = por %p352, %p353
    %p355 = scmp.ne.s32.totalorder %s343, %s344
    %p356 = scmp.eq.s32.totalorder %s26, 1
    %p357 = por %p355, %p356
    %p359 = scmp.ne.s32.totalorder %s344, %s358
    %p360 = scmp.eq.s32.totalorder %s26, 0
    %p361 = por %p359, %p360
    %s363 = sadd.s32 %s362, 1
    %p366 = scmp.eq.s32.totalorder %s20, 1
    %p367 = scmp.ne.s32.totalorder %s362, %s364
    %p368 = scmp.eq.s32.totalorder %s20, 0
    %p369 = por %p367, %p368
    %p370 = scmp.ne.s32.totalorder %s362, %s364
    %p371 = scmp.eq.s32.totalorder %s25, 1
    %p372 = por %p370, %p371
    %p373 = scmp.ne.s32.totalorder %s364, %s365
    %p374 = scmp.eq.s32.totalorder %s25, 0
    %p375 = por %p373, %p374
    %p376 = scmp.ne.s32.totalorder %s364, %s365
    %p377 = scmp.eq.s32.totalorder %s26, 1
    %p378 = por %p376, %p377
    %p380 = scmp.ne.s32.totalorder %s365, %s379
    %p381 = scmp.eq.s32.totalorder %s26, 0
    %p382 = por %p380, %p381
    %p383 = scmp.le.s32.totalorder 1, %s20
    %p384 = scmp.lt.s32.totalorder %s20, 3
    %p385 = pnand %p383, %p384
    %p386 = pneg %p385
    // Predicated region
    $region9: #{transformer_decoder_forward.1} parent=5 // pred_check
      _
    $region10: #{transformer_decoder_forward.1} parent=5 // pred_check_branch
      %388 = sbr.rel (%p385) target = $region12
    $region11: #{transformer_decoder_forward.1} parent=5 // pred_region
      %s389 = ssub.s32 %s20, 1
      // Predicated region
      $region13: #{transformer_decoder_forward.1} parent=11 // pred_check
        %p390 = pneg %p41
      $region14: #{transformer_decoder_forward.1} parent=11 // pred_check_branch
        %392 = sbr.rel (%p390) target = $region16
      $region15: #{transformer_decoder_forward.1} parent=11 // pred_region
        _
      $region16: #{transformer_decoder_forward.1} parent=11 // pred_fallthru
        _
      // Predicated region
      $region17: #{transformer_decoder_forward.1} parent=11 // pred_check
        %p393 = pneg %p62
      $region18: #{transformer_decoder_forward.1} parent=11 // pred_check_branch
        %395 = sbr.rel (%p393) target = $region20
      $region19: #{transformer_decoder_forward.1} parent=11 // pred_region
        _
      $region20: #{transformer_decoder_forward.1} parent=11 // pred_fallthru
        _
      // Predicated region
      $region21: #{transformer_decoder_forward.1} parent=11 // pred_check
        %p396 = pneg %p83
      $region22: #{transformer_decoder_forward.1} parent=11 // pred_check_branch
        %398 = sbr.rel (%p396) target = $region24
      $region23: #{transformer_decoder_forward.1} parent=11 // pred_region
        _
      $region24: #{transformer_decoder_forward.1} parent=11 // pred_fallthru
        _
      // Predicated region
      $region25: #{transformer_decoder_forward.1} parent=11 // pred_check
        %p399 = pneg %p104
      $region26: #{transformer_decoder_forward.1} parent=11 // pred_check_branch
        %401 = sbr.rel (%p399) target = $region28
      $region27: #{transformer_decoder_forward.1} parent=11 // pred_region
        _
      $region28: #{transformer_decoder_forward.1} parent=11 // pred_fallthru
        _
      // Predicated region
      $region29: #{transformer_decoder_forward.1} parent=11 // pred_check
        %p402 = pneg %p333
      $region30: #{transformer_decoder_forward.1} parent=11 // pred_check_branch
        %404 = sbr.rel (%p402) target = $region32
      $region31: #{transformer_decoder_forward.1} parent=11 // pred_region
        _
      $region32: #{transformer_decoder_forward.1} parent=11 // pred_fallthru
        _
      // Predicated region
      $region33: #{transformer_decoder_forward.1} parent=11 // pred_check
        %p405 = pneg %p354
      $region34: #{transformer_decoder_forward.1} parent=11 // pred_check_branch
        %407 = sbr.rel (%p405) target = $region36
      $region35: #{transformer_decoder_forward.1} parent=11 // pred_region
        _
      $region36: #{transformer_decoder_forward.1} parent=11 // pred_fallthru
        _
    $region12: #{transformer_decoder_forward.1} parent=5 // pred_fallthru
      _
    %p408 = scmp.lt.s32.totalorder %s20, 2
    // Predicated region
    $region37: #{transformer_decoder_forward.1} parent=5 // pred_check
      %p409 = pneg %p408
    $region38: #{transformer_decoder_forward.1} parent=5 // pred_check_branch
      %411 = sbr.rel (%p409) target = $region40
    $region39: #{transformer_decoder_forward.1} parent=5 // pred_region
      // Predicated region
      $region41: #{transformer_decoder_forward.1} parent=39 // pred_check
        %p412 = pneg %p124
      $region42: #{transformer_decoder_forward.1} parent=39 // pred_check_branch
        %414 = sbr.rel (%p412) target = $region44
      $region43: #{transformer_decoder_forward.1} parent=39 // pred_region
        %p415 = scmp.lt.s32.totalorder %s20, 1
        %s416 = scalar_select %p415, %s20, 1
        %s417 = smul.addr %s416, 48
        %s418 = smul.addr %s417, 4
        %s419 = scalar_lea.vmem %s4, %s418
      $region44: #{transformer_decoder_forward.1} parent=39 // pred_fallthru
        _
      // Predicated region
      $region45: #{transformer_decoder_forward.1} parent=39 // pred_check
        %p420 = pneg %p150
      $region46: #{transformer_decoder_forward.1} parent=39 // pred_check_branch
        %422 = sbr.rel (%p420) target = $region48
      $region47: #{transformer_decoder_forward.1} parent=39 // pred_region
        %p423 = scmp.lt.s32.totalorder %s20, 1
        %s424 = scalar_select %p423, %s20, 1
        %s425 = smul.addr %s424, 4
        %s426 = smul.addr %s425, 8
        %s427 = scalar_lea.vmem %s5, %s426
      $region48: #{transformer_decoder_forward.1} parent=39 // pred_fallthru
        _
      // Predicated region
      $region49: #{transformer_decoder_forward.1} parent=39 // pred_check
        %p428 = pneg %p176
      $region50: #{transformer_decoder_forward.1} parent=39 // pred_check_branch
        %430 = sbr.rel (%p428) target = $region52
      $region51: #{transformer_decoder_forward.1} parent=39 // pred_region
        %p431 = scmp.lt.s32.totalorder %s20, 1
        %s432 = scalar_select %p431, %s20, 1
        %s433 = smul.addr %s432, 48
        %s434 = smul.addr %s433, 4
        %s435 = scalar_lea.vmem %s6, %s434
      $region52: #{transformer_decoder_forward.1} parent=39 // pred_fallthru
        _
      // Predicated region
      $region53: #{transformer_decoder_forward.1} parent=39 // pred_check
        %p436 = pneg %p202
      $region54: #{transformer_decoder_forward.1} parent=39 // pred_check_branch
        %438 = sbr.rel (%p436) target = $region56
      $region55: #{transformer_decoder_forward.1} parent=39 // pred_region
        %p439 = scmp.lt.s32.totalorder %s20, 1
        %s440 = scalar_select %p439, %s20, 1
        %s441 = smul.addr %s440, 4
        %s442 = smul.addr %s441, 8
        %s443 = scalar_lea.vmem %s7, %s442
      $region56: #{transformer_decoder_forward.1} parent=39 // pred_fallthru
        _
      // Predicated region
      $region57: #{transformer_decoder_forward.1} parent=39 // pred_check
        %p444 = pneg %p228
      $region58: #{transformer_decoder_forward.1} parent=39 // pred_check_branch
        %446 = sbr.rel (%p444) target = $region60
      $region59: #{transformer_decoder_forward.1} parent=39 // pred_region
        %p447 = scmp.lt.s32.totalorder %s20, 1
        %s448 = scalar_select %p447, %s20, 1
        %s449 = smul.addr %s448, 64
        %s450 = smul.addr %s449, 4
        %s451 = scalar_lea.vmem %s8, %s450
      $region60: #{transformer_decoder_forward.1} parent=39 // pred_fallthru
        _
      // Predicated region
      $region61: #{transformer_decoder_forward.1} parent=39 // pred_check
        %p452 = pneg %p254
      $region62: #{transformer_decoder_forward.1} parent=39 // pred_check_branch
        %454 = sbr.rel (%p452) target = $region64
      $region63: #{transformer_decoder_forward.1} parent=39 // pred_region
        %p455 = scmp.lt.s32.totalorder %s20, 1
        %s456 = scalar_select %p455, %s20, 1
        %s457 = smul.addr %s456, 16
        %s458 = scalar_lea.vmem %s9, %s457
      $region64: #{transformer_decoder_forward.1} parent=39 // pred_fallthru
        _
      // Predicated region
      $region65: #{transformer_decoder_forward.1} parent=39 // pred_check
        %p459 = pneg %p280
      $region66: #{transformer_decoder_forward.1} parent=39 // pred_check_branch
        %461 = sbr.rel (%p459) target = $region68
      $region67: #{transformer_decoder_forward.1} parent=39 // pred_region
        %p462 = scmp.lt.s32.totalorder %s20, 1
        %s463 = scalar_select %p462, %s20, 1
        %s464 = smul.addr %s463, 256
        %s465 = smul.addr %s464, 4
        %s466 = scalar_lea.vmem %s10, %s465
      $region68: #{transformer_decoder_forward.1} parent=39 // pred_fallthru
        _
      // Predicated region
      $region69: #{transformer_decoder_forward.1} parent=39 // pred_check
        %p467 = pneg %p306
      $region70: #{transformer_decoder_forward.1} parent=39 // pred_check_branch
        %469 = sbr.rel (%p467) target = $region72
      $region71: #{transformer_decoder_forward.1} parent=39 // pred_region
        %p470 = scmp.lt.s32.totalorder %s20, 1
        %s471 = scalar_select %p470, %s20, 1
        %s472 = smul.addr %s471, 2
        %s473 = smul.addr %s472, 8
        %s474 = scalar_lea.vmem %s11, %s473
      $region72: #{transformer_decoder_forward.1} parent=39 // pred_fallthru
        _
    $region40: #{transformer_decoder_forward.1} parent=5 // pred_fallthru
      _
    %p475 = scmp.le.s32.totalorder 1, %s20
    %p476 = scmp.lt.s32.totalorder %s20, 3
    %p477 = pnand %p475, %p476
    %p478 = pneg %p477
    // Predicated region
    $region73: #{transformer_decoder_forward.1} parent=5 // pred_check
      _
    $region74: #{transformer_decoder_forward.1} parent=5 // pred_check_branch
      %480 = sbr.rel (%p477) target = $region76
    $region75: #{transformer_decoder_forward.1} parent=5 // pred_region
      %s481 = ssub.s32 %s20, 1
      %p482 = pneg %p41
      %p483 = pneg %p38
      %p484 = pneg %p62
      %p485 = pneg %p59
      %p486 = pneg %p83
      %p487 = pneg %p80
      %p488 = pneg %p104
      %p489 = pneg %p101
      %p490 = scmp.lt.s32.totalorder %s25, 1
      %s491 = scalar_select %p490, %s25, 1
      %s492 = smul.addr %s491, 48
      %s493 = smul.addr %s492, 4
      %s494 = scalar_lea.vmem %s4, %s493
      %p495 = pneg %p130
      %p496 = pneg %p127
      %p497 = scmp.lt.s32.totalorder %s25, 1
      %s498 = scalar_select %p497, %s25, 1
      %s499 = smul.addr %s498, 4
      %s500 = smul.addr %s499, 8
      %s501 = scalar_lea.vmem %s5, %s500
      %p502 = pneg %p156
      %p503 = pneg %p153
      %p504 = scmp.lt.s32.totalorder %s25, 1
      %s505 = scalar_select %p504, %s25, 1
      %s506 = smul.addr %s505, 48
      %s507 = smul.addr %s506, 4
      %s508 = scalar_lea.vmem %s6, %s507
      %p509 = pneg %p182
      %p510 = pneg %p179
      %p511 = scmp.lt.s32.totalorder %s25, 1
      %s512 = scalar_select %p511, %s25, 1
      %s513 = smul.addr %s512, 4
      %s514 = smul.addr %s513, 8
      %s515 = scalar_lea.vmem %s7, %s514
      %p516 = pneg %p208
      %p517 = pneg %p205
      %p518 = scmp.lt.s32.totalorder %s25, 1
      %s519 = scalar_select %p518, %s25, 1
      %s520 = smul.addr %s519, 64
      %s521 = smul.addr %s520, 4
      %s522 = scalar_lea.vmem %s8, %s521
      %p523 = pneg %p234
      %p524 = pneg %p231
      %p525 = scmp.lt.s32.totalorder %s25, 1
      %s526 = scalar_select %p525, %s25, 1
      %s527 = smul.addr %s526, 16
      %s528 = scalar_lea.vmem %s9, %s527
      %p529 = pneg %p260
      %p530 = pneg %p257
      %p531 = scmp.lt.s32.totalorder %s25, 1
      %s532 = scalar_select %p531, %s25, 1
      %s533 = smul.addr %s532, 256
      %s534 = smul.addr %s533, 4
      %s535 = scalar_lea.vmem %s10, %s534
      %p536 = pneg %p286
      %p537 = pneg %p283
      %p538 = scmp.lt.s32.totalorder %s25, 1
      %s539 = scalar_select %p538, %s25, 1
      %s540 = smul.addr %s539, 2
      %s541 = smul.addr %s540, 8
      %s542 = scalar_lea.vmem %s11, %s541
      %p543 = pneg %p312
      %p544 = pneg %p309
      %p545 = pneg %p333
      %p546 = pneg %p330
      %p547 = pneg %p354
      %p548 = pneg %p351
      %p549 = pneg %p375
      %p550 = pneg %p372
      %p551 = scmp.lt.s32.totalorder %s25, 1
      %s552 = scalar_select %p551, %s25, 1
      %s553 = smul.addr %s552, 48
      %s554 = smul.addr %s553, 4
      %s555 = scalar_lea.vmem %s4, %s554
      %p556 = scmp.lt.s32.totalorder %s25, 1
      %s557 = scalar_select %p556, %s25, 1
      %s558 = smul.addr %s557, 4
      %s559 = smul.addr %s558, 8
      %s560 = scalar_lea.vmem %s5, %s559
      %p561 = scmp.lt.s32.totalorder %s25, 1
      %s562 = scalar_select %p561, %s25, 1
      %s563 = smul.addr %s562, 48
      %s564 = smul.addr %s563, 4
      %s565 = scalar_lea.vmem %s6, %s564
      %p566 = scmp.lt.s32.totalorder %s25, 1
      %s567 = scalar_select %p566, %s25, 1
      %s568 = smul.addr %s567, 4
      %s569 = smul.addr %s568, 8
      %s570 = scalar_lea.vmem %s7, %s569
      %p571 = scmp.lt.s32.totalorder %s25, 1
      %s572 = scalar_select %p571, %s25, 1
      %s573 = smul.addr %s572, 64
      %s574 = smul.addr %s573, 4
      %s575 = scalar_lea.vmem %s8, %s574
      %p576 = scmp.lt.s32.totalorder %s25, 1
      %s577 = scalar_select %p576, %s25, 1
      %s578 = smul.addr %s577, 16
      %s579 = scalar_lea.vmem %s9, %s578
      %p580 = scmp.lt.s32.totalorder %s25, 1
      %s581 = scalar_select %p580, %s25, 1
      %s582 = smul.addr %s581, 256
      %s583 = smul.addr %s582, 4
      %s584 = scalar_lea.vmem %s10, %s583
      %p585 = scmp.lt.s32.totalorder %s25, 1
      %s586 = scalar_select %p585, %s25, 1
      %s587 = smul.addr %s586, 2
      %s588 = smul.addr %s587, 8
      %s589 = scalar_lea.vmem %s11, %s588
      %p591 = scmp.eq.s32.totalorder %s25, 0
      // Predicated region
      $region77: #{transformer_decoder_forward.1} parent=75 // pred_check
        %p592 = pneg %p591
      $region78: #{transformer_decoder_forward.1} parent=75 // pred_check_branch
        %594 = sbr.rel (%p592) target = $region80
      $region79: #{transformer_decoder_forward.1} parent=75 // pred_region
        %v595 = vld [vmem:[%s0] sm:$0xff]
        %v596 = vld [vmem:[%s0 + $0x8] sm:$0xff]
        %vm597 = vcmask 261120
        %598 = vst.msk [vmem:[#allocation2] sm:$0xff] %vm597, %v595
        %599 = vst.msk [vmem:[#allocation2 + $0x8] sm:$0xff] %vm597, %v596
      $region80: #{transformer_decoder_forward.1} parent=75 // pred_fallthru
        _
      %v600 = vld [vmem:[#allocation2] sm:$0xff]
      %v601 = vld [vmem:[#allocation2 + $0x8] sm:$0xff]
      %v602 = vld [vmem:[%s589] sm:$0xff]
      %v603 = vld [vmem:[%s589 + $0x8] sm:$0xff]
      %v604 = vld [vmem:[%s2] sm:$0xff]
      %v605 = vld [vmem:[%s2 + $0x8] sm:$0xff]
      %v606 = vpack.c.bf16 %v601, %v600
      %v607 = vld [vmem:[%s555] sm:$0xf]
      %v608 = vld [vmem:[%s555 + $0x4] sm:$0xf]
      %v609 = vld [vmem:[%s555 + $0x8] sm:$0xf]
      %v610 = vld [vmem:[%s555 + $0xc] sm:$0xf]
      %v611 = vld [vmem:[%s555 + $0x40] sm:$0xf]
      %v612 = vld [vmem:[%s555 + $0x44] sm:$0xf]
      %v613 = vld [vmem:[%s555 + $0x48] sm:$0xf]
      %v614 = vld [vmem:[%s555 + $0x4c] sm:$0xf]
      %v615 = vld [vmem:[%s555 + $0x80] sm:$0xf]
      %v616 = vld [vmem:[%s555 + $0x84] sm:$0xf]
      %v617 = vld [vmem:[%s555 + $0x88] sm:$0xf]
      %v618 = vld [vmem:[%s555 + $0x8c] sm:$0xf]
      %v619 = vperm.slane %v602, 0
      %v624 = vunpack.c.l.b16 %v607
      %v625 = vunpack.c.l.b16 %v608
      %v626 = vunpack.c.l.b16 %v609
      %v627 = vunpack.c.l.b16 %v610
      %v628 = vpack.c.b16 %v625, %v624
      %v629 = vpack.c.b16 %v627, %v626
      %vm632 = vcmask 261120
      %v634 = vsel %vm632, %v606, 0
      %636 = vmatpush.bf16.msra.mxu0 0
      %637 = vmatpush.bf16.msra.mxu0 0
      %638 = vmatpush.bf16.msra.mxu0 0
      %639 = vmatpush.bf16.msra.mxu0 0
      %640 = vmatpush.bf16.msra.mxu0 0
      %641 = vmatpush.bf16.msra.mxu0 0
      %642 = vmatpush.bf16.msra.mxu0 %v629
      %643 = vmatpush.bf16.msra.mxu0 %v628
      %644 = vmatmul.bf16.gmra.mxu0 %v634
      %v645 = vpop.f32.mrf.mxu0
      %v646 = vadd.f32 %v619, %v645
      %v647 = vpop.f32.mrf.mxu0
      %v648 = vadd.f32 %v619, %v647
      %649 = vdwg.mxu0
      %v650 = vperm.slane %v602, 1
      %v655 = vunpack.c.l.b16 %v611
      %v656 = vunpack.c.l.b16 %v612
      %v657 = vunpack.c.l.b16 %v613
      %v658 = vunpack.c.l.b16 %v614
      %v659 = vpack.c.b16 %v656, %v655
      %v660 = vpack.c.b16 %v658, %v657
      %663 = vmatpush.bf16.msra.mxu0 0
      %664 = vmatpush.bf16.msra.mxu0 0
      %665 = vmatpush.bf16.msra.mxu0 0
      %666 = vmatpush.bf16.msra.mxu0 0
      %667 = vmatpush.bf16.msra.mxu0 0
      %668 = vmatpush.bf16.msra.mxu0 0
      %669 = vmatpush.bf16.msra.mxu0 %v660
      %670 = vmatpush.bf16.msra.mxu0 %v659
      %671 = vmatmul.bf16.gmra.mxu0 %v634
      %v672 = vpop.f32.mrf.mxu0
      %v673 = vadd.f32 %v650, %v672
      %v674 = vpop.f32.mrf.mxu0
      %v675 = vadd.f32 %v650, %v674
      %676 = vdwg.mxu0
      %v677 = vperm.slane %v602, 2
      %v682 = vunpack.c.l.b16 %v615
      %v683 = vunpack.c.l.b16 %v616
      %v684 = vunpack.c.l.b16 %v617
      %v685 = vunpack.c.l.b16 %v618
      %v686 = vpack.c.b16 %v683, %v682
      %v687 = vpack.c.b16 %v685, %v684
      %690 = vmatpush.bf16.msra.mxu0 0
      %691 = vmatpush.bf16.msra.mxu0 0
      %692 = vmatpush.bf16.msra.mxu0 0
      %693 = vmatpush.bf16.msra.mxu0 0
      %694 = vmatpush.bf16.msra.mxu0 0
      %695 = vmatpush.bf16.msra.mxu0 0
      %696 = vmatpush.bf16.msra.mxu0 %v687
      %697 = vmatpush.bf16.msra.mxu0 %v686
      %698 = vmatmul.bf16.gmra.mxu0 %v634
      %v699 = vpop.f32.mrf.mxu0
      %v700 = vadd.f32 %v677, %v699
      %v701 = vpop.f32.mrf.mxu0
      %v702 = vadd.f32 %v677, %v701
      %703 = vdwg.mxu0
      %vm704 = vcmask 64512
      %v706 = vsel %vm704, %v646, 0
      %v709 = vsel %vm704, %v648, 0
      %v712 = vsel %vm704, %v673, 0
      %v715 = vsel %vm704, %v675, 0
      %717 = vmatpush.xpose.msra.mxu0 0.0
      %718 = vmatpush.xpose.msra.mxu0 0.0
      %719 = vmatpush.xpose.msra.mxu0 0.0
      %720 = vmatpush.xpose.msra.mxu0 0.0
      %721 = vmatpush.xpose.msra.mxu0 0.0
      %722 = vmatpush.xpose.msra.mxu0 0.0
      %723 = vmatpush.xpose.msra.mxu0 0.0
      %724 = vmatpush.xpose.msra.mxu0 0.0
      %725 = vmatpush.xpose.msra.mxu0 0.0
      %726 = vmatpush.xpose.msra.mxu0 0.0
      %727 = vmatpush.xpose.msra.mxu0 0.0
      %728 = vmatpush.xpose.msra.mxu0 0.0
      %729 = vmatpush.xpose.msra.mxu0 0.0
      %730 = vmatpush.xpose.msra.mxu0 0.0
      %731 = vmatpush.xpose.msra.mxu0 %v715
      %732 = vmatpush.xpose.msra.mxu0 %v712
      %733 = vmatmul.f32.gmra.mxu0 %v706
      %v734 = vpop.f32.mrf.mxu0
      %v735 = vadd.f32 %v604, %v734
      %736 = vmatmul.f32.gmra.mxu0 %v709
      %v737 = vpop.f32.mrf.mxu0
      %v738 = vadd.f32 %v605, %v737
      %739 = vdwg.mxu0
      %vm740 = vcmask 130048
      %v741 = vsel %vm740, %v735, -inf
      %742 = vmax.xlane.f32.xlu0 %v741
      %v743 = vpop.xlane.xlu0 %742
      %v744 = vsel %vm740, %v738, -inf
      %745 = vmax.xlane.f32.xlu0 %v744
      %v746 = vpop.xlane.xlu0 %745
      %v747 = vsub.f32 %v735, %v743
      %v748 = vsub.f32 %v738, %v746
      %v749 = vmul.f32 %v747, 1.442695
      %v750 = vpow.pop %v749
      %v751 = vmul.f32 %v748, 1.442695
      %v752 = vpow.pop %v751
      %v753 = vsel %vm740, %v750, 0.0
      %754 = vadd.xlane.f32.xlu0 %v753
      %v755 = vpop.xlane.xlu0 %754
      %v756 = vsel %vm740, %v752, 0.0
      %757 = vadd.xlane.f32.xlu0 %v756
      %v758 = vpop.xlane.xlu0 %757
      %v759 = vrcp.pop %v755
      %v760 = vrcp.pop %v758
      %v761 = vmul.f32 %v750, %v759
      %v762 = vmul.f32 %v752, %v760
      %v764 = vsel %vm740, %v761, 0
      %v767 = vsel %vm740, %v762, 0
      %769 = vmatpush.msra.mxu0 0.0
      %770 = vmatpush.msra.mxu0 0.0
      %771 = vmatpush.msra.mxu0 0.0
      %772 = vmatpush.msra.mxu0 0.0
      %773 = vmatpush.msra.mxu0 0.0
      %774 = vmatpush.msra.mxu0 0.0
      %775 = vmatpush.msra.mxu0 0.0
      %776 = vmatpush.msra.mxu0 0.0
      %777 = vmatpush.msra.mxu0 0.0
      %778 = vmatpush.msra.mxu0 0.0
      %779 = vmatpush.msra.mxu0 0.0
      %780 = vmatpush.msra.mxu0 0.0
      %781 = vmatpush.msra.mxu0 0.0
      %782 = vmatpush.msra.mxu0 0.0
      %783 = vmatpush.msra.mxu0 %v702
      %784 = vmatpush.msra.mxu0 %v700
      %785 = vmatmul.f32.gmra.mxu0 %v764
      %v786 = vpop.f32.mrf.mxu0
      %v787 = vadd.f32 0.0, %v786
      %788 = vmatmul.f32.gmra.mxu0 %v767
      %v789 = vpop.f32.mrf.mxu0
      %v790 = vadd.f32 0.0, %v789
      %791 = vdwg.mxu0
      %v792 = vld [vmem:[%s560] sm:$0xff]
      %v793 = vld [vmem:[%s555 + $0x10] sm:$0xf]
      %v794 = vld [vmem:[%s555 + $0x14] sm:$0xf]
      %v795 = vld [vmem:[%s555 + $0x18] sm:$0xf]
      %v796 = vld [vmem:[%s555 + $0x1c] sm:$0xf]
      %v797 = vld [vmem:[%s555 + $0x50] sm:$0xf]
      %v798 = vld [vmem:[%s555 + $0x54] sm:$0xf]
      %v799 = vld [vmem:[%s555 + $0x58] sm:$0xf]
      %v800 = vld [vmem:[%s555 + $0x5c] sm:$0xf]
      %v801 = vld [vmem:[%s555 + $0x90] sm:$0xf]
      %v802 = vld [vmem:[%s555 + $0x94] sm:$0xf]
      %v803 = vld [vmem:[%s555 + $0x98] sm:$0xf]
      %v804 = vld [vmem:[%s555 + $0x9c] sm:$0xf]
      %v809 = vunpack.c.l.b16 %v793
      %v810 = vunpack.c.l.b16 %v794
      %v811 = vunpack.c.l.b16 %v795
      %v812 = vunpack.c.l.b16 %v796
      %v813 = vpack.c.b16 %v810, %v809
      %v814 = vpack.c.b16 %v812, %v811
      %818 = vrot.lane.b32.xlu0 %v619, 120
      %v819 = vpop.permute.xlu0 %818
      %821 = vmatpush.bf16.msra.mxu0 0
      %822 = vmatpush.bf16.msra.mxu0 0
      %823 = vmatpush.bf16.msra.mxu0 0
      %824 = vmatpush.bf16.msra.mxu0 0
      %825 = vmatpush.bf16.msra.mxu0 0
      %826 = vmatpush.bf16.msra.mxu0 0
      %827 = vmatpush.bf16.msra.mxu0 %v814
      %828 = vmatpush.bf16.msra.mxu0 %v813
      %829 = vmatmul.bf16.gmra.mxu0 %v634
      %v830 = vpop.f32.mrf.mxu0
      %v831 = vadd.f32 %v819, %v830
      %v832 = vpop.f32.mrf.mxu0
      %v833 = vadd.f32 %v819, %v832
      %834 = vdwg.mxu0
      %v839 = vunpack.c.l.b16 %v797
      %v840 = vunpack.c.l.b16 %v798
      %v841 = vunpack.c.l.b16 %v799
      %v842 = vunpack.c.l.b16 %v800
      %v843 = vpack.c.b16 %v840, %v839
      %v844 = vpack.c.b16 %v842, %v841
      %848 = vrot.lane.b32.xlu0 %v650, 120
      %v849 = vpop.permute.xlu0 %848
      %851 = vmatpush.bf16.msra.mxu0 0
      %852 = vmatpush.bf16.msra.mxu0 0
      %853 = vmatpush.bf16.msra.mxu0 0
      %854 = vmatpush.bf16.msra.mxu0 0
      %855 = vmatpush.bf16.msra.mxu0 0
      %856 = vmatpush.bf16.msra.mxu0 0
      %857 = vmatpush.bf16.msra.mxu0 %v844
      %858 = vmatpush.bf16.msra.mxu0 %v843
      %859 = vmatmul.bf16.gmra.mxu0 %v634
      %v860 = vpop.f32.mrf.mxu0
      %v861 = vadd.f32 %v849, %v860
      %v862 = vpop.f32.mrf.mxu0
      %v863 = vadd.f32 %v849, %v862
      %864 = vdwg.mxu0
      %v869 = vunpack.c.l.b16 %v801
      %v870 = vunpack.c.l.b16 %v802
      %v871 = vunpack.c.l.b16 %v803
      %v872 = vunpack.c.l.b16 %v804
      %v873 = vpack.c.b16 %v870, %v869
      %v874 = vpack.c.b16 %v872, %v871
      %878 = vrot.lane.b32.xlu0 %v677, 120
      %v879 = vpop.permute.xlu0 %878
      %881 = vmatpush.bf16.msra.mxu0 0
      %882 = vmatpush.bf16.msra.mxu0 0
      %883 = vmatpush.bf16.msra.mxu0 0
      %884 = vmatpush.bf16.msra.mxu0 0
      %885 = vmatpush.bf16.msra.mxu0 0
      %886 = vmatpush.bf16.msra.mxu0 0
      %887 = vmatpush.bf16.msra.mxu0 %v874
      %888 = vmatpush.bf16.msra.mxu0 %v873
      %889 = vmatmul.bf16.gmra.mxu0 %v634
      %v890 = vpop.f32.mrf.mxu0
      %v891 = vadd.f32 %v879, %v890
      %v892 = vpop.f32.mrf.mxu0
      %v893 = vadd.f32 %v879, %v892
      %894 = vdwg.mxu0
      %v896 = vsel %vm704, %v831, 0
      %v899 = vsel %vm704, %v833, 0
      %v902 = vsel %vm704, %v861, 0
      %v905 = vsel %vm704, %v863, 0
      %907 = vmatpush.xpose.msra.mxu0 0.0
      %908 = vmatpush.xpose.msra.mxu0 0.0
      %909 = vmatpush.xpose.msra.mxu0 0.0
      %910 = vmatpush.xpose.msra.mxu0 0.0
      %911 = vmatpush.xpose.msra.mxu0 0.0
      %912 = vmatpush.xpose.msra.mxu0 0.0
      %913 = vmatpush.xpose.msra.mxu0 0.0
      %914 = vmatpush.xpose.msra.mxu0 0.0
      %915 = vmatpush.xpose.msra.mxu0 0.0
      %916 = vmatpush.xpose.msra.mxu0 0.0
      %917 = vmatpush.xpose.msra.mxu0 0.0
      %918 = vmatpush.xpose.msra.mxu0 0.0
      %919 = vmatpush.xpose.msra.mxu0 0.0
      %920 = vmatpush.xpose.msra.mxu0 0.0
      %921 = vmatpush.xpose.msra.mxu0 %v905
      %922 = vmatpush.xpose.msra.mxu0 %v902
      %923 = vmatmul.f32.gmra.mxu0 %v896
      %v924 = vpop.f32.mrf.mxu0
      %v925 = vadd.f32 %v604, %v924
      %926 = vmatmul.f32.gmra.mxu0 %v899
      %v927 = vpop.f32.mrf.mxu0
      %v928 = vadd.f32 %v605, %v927
      %929 = vdwg.mxu0
      %v930 = vsel %vm740, %v925, -inf
      %931 = vmax.xlane.f32.xlu0 %v930
      %v932 = vpop.xlane.xlu0 %931
      %v933 = vsel %vm740, %v928, -inf
      %934 = vmax.xlane.f32.xlu0 %v933
      %v935 = vpop.xlane.xlu0 %934
      %v936 = vsub.f32 %v925, %v932
      %v937 = vsub.f32 %v928, %v935
      %v938 = vmul.f32 %v936, 1.442695
      %v939 = vpow.pop %v938
      %v940 = vmul.f32 %v937, 1.442695
      %v941 = vpow.pop %v940
      %v942 = vsel %vm740, %v939, 0.0
      %943 = vadd.xlane.f32.xlu0 %v942
      %v944 = vpop.xlane.xlu0 %943
      %v945 = vsel %vm740, %v941, 0.0
      %946 = vadd.xlane.f32.xlu0 %v945
      %v947 = vpop.xlane.xlu0 %946
      %v948 = vrcp.pop %v944
      %v949 = vrcp.pop %v947
      %v950 = vmul.f32 %v939, %v948
      %v951 = vmul.f32 %v941, %v949
      %v953 = vsel %vm740, %v950, 0
      %v956 = vsel %vm740, %v951, 0
      %958 = vmatpush.msra.mxu0 0.0
      %959 = vmatpush.msra.mxu0 0.0
      %960 = vmatpush.msra.mxu0 0.0
      %961 = vmatpush.msra.mxu0 0.0
      %962 = vmatpush.msra.mxu0 0.0
      %963 = vmatpush.msra.mxu0 0.0
      %964 = vmatpush.msra.mxu0 0.0
      %965 = vmatpush.msra.mxu0 0.0
      %966 = vmatpush.msra.mxu0 0.0
      %967 = vmatpush.msra.mxu0 0.0
      %968 = vmatpush.msra.mxu0 0.0
      %969 = vmatpush.msra.mxu0 0.0
      %970 = vmatpush.msra.mxu0 0.0
      %971 = vmatpush.msra.mxu0 0.0
      %972 = vmatpush.msra.mxu0 %v893
      %973 = vmatpush.msra.mxu0 %v891
      %974 = vmatmul.f32.gmra.mxu0 %v953
      %v975 = vpop.f32.mrf.mxu0
      %v976 = vadd.f32 0.0, %v975
      %977 = vmatmul.f32.gmra.mxu0 %v956
      %v978 = vpop.f32.mrf.mxu0
      %v979 = vadd.f32 0.0, %v978
      %980 = vdwg.mxu0
      %v981 = vld [vmem:[%s560 + $0x8] sm:$0xff]
      %v983 = vsel %vm704, %v976, 0
      %v986 = vsel %vm704, %v979, 0
      %988 = vmatpush.msra.mxu0 0.0
      %989 = vmatpush.msra.mxu0 0.0
      %990 = vmatpush.msra.mxu0 0.0
      %991 = vmatpush.msra.mxu0 0.0
      %992 = vmatpush.msra.mxu0 0.0
      %993 = vmatpush.msra.mxu0 0.0
      %994 = vmatpush.msra.mxu0 0.0
      %995 = vmatpush.msra.mxu0 0.0
      %996 = vmatpush.msra.mxu0 0.0
      %997 = vmatpush.msra.mxu0 0.0
      %998 = vmatpush.msra.mxu0 0.0
      %999 = vmatpush.msra.mxu0 0.0
      %1000 = vmatpush.msra.mxu0 0.0
      %1001 = vmatpush.msra.mxu0 0.0
      %1002 = vmatpush.msra.mxu0 0.0
      %1003 = vmatpush.msra.mxu0 %v981
      %1004 = vmatmul.f32.gmra.mxu0 %v983
      %v1005 = vpop.f32.mrf.mxu0
      %v1006 = vadd.f32 0.0, %v1005
      %1007 = vmatmul.f32.gmra.mxu0 %v986
      %v1008 = vpop.f32.mrf.mxu0
      %v1009 = vadd.f32 0.0, %v1008
      %1010 = vdwg.mxu0
      %v1012 = vsel %vm704, %v787, 0
      %v1015 = vsel %vm704, %v790, 0
      %1017 = vmatpush.msra.mxu0 0.0
      %1018 = vmatpush.msra.mxu0 0.0
      %1019 = vmatpush.msra.mxu0 0.0
      %1020 = vmatpush.msra.mxu0 0.0
      %1021 = vmatpush.msra.mxu0 0.0
      %1022 = vmatpush.msra.mxu0 0.0
      %1023 = vmatpush.msra.mxu0 0.0
      %1024 = vmatpush.msra.mxu0 0.0
      %1025 = vmatpush.msra.mxu0 0.0
      %1026 = vmatpush.msra.mxu0 0.0
      %1027 = vmatpush.msra.mxu0 0.0
      %1028 = vmatpush.msra.mxu0 0.0
      %1029 = vmatpush.msra.mxu0 0.0
      %1030 = vmatpush.msra.mxu0 0.0
      %1031 = vmatpush.msra.mxu0 0.0
      %1032 = vmatpush.msra.mxu0 %v792
      %1033 = vmatmul.f32.gmra.mxu0 %v1012
      %v1034 = vpop.f32.mrf.mxu0
      %v1035 = vadd.f32 %v1006, %v1034
      %1036 = vmatmul.f32.gmra.mxu0 %v1015
      %v1037 = vpop.f32.mrf.mxu0
      %v1038 = vadd.f32 %v1009, %v1037
      %1039 = vdwg.mxu0
      %v1040 = vld [vmem:[%s555 + $0x20] sm:$0xf]
      %v1041 = vld [vmem:[%s555 + $0x24] sm:$0xf]
      %v1042 = vld [vmem:[%s555 + $0x28] sm:$0xf]
      %v1043 = vld [vmem:[%s555 + $0x2c] sm:$0xf]
      %v1044 = vld [vmem:[%s555 + $0x60] sm:$0xf]
      %v1045 = vld [vmem:[%s555 + $0x64] sm:$0xf]
      %v1046 = vld [vmem:[%s555 + $0x68] sm:$0xf]
      %v1047 = vld [vmem:[%s555 + $0x6c] sm:$0xf]
      %v1048 = vld [vmem:[%s555 + $0xa0] sm:$0xf]
      %v1049 = vld [vmem:[%s555 + $0xa4] sm:$0xf]
      %v1050 = vld [vmem:[%s555 + $0xa8] sm:$0xf]
      %v1051 = vld [vmem:[%s555 + $0xac] sm:$0xf]
      %v1056 = vunpack.c.l.b16 %v1040
      %v1057 = vunpack.c.l.b16 %v1041
      %v1058 = vunpack.c.l.b16 %v1042
      %v1059 = vunpack.c.l.b16 %v1043
      %v1060 = vpack.c.b16 %v1057, %v1056
      %v1061 = vpack.c.b16 %v1059, %v1058
      %1064 = vrot.lane.b32.xlu0 %v619, 112
      %v1065 = vpop.permute.xlu0 %1064
      %1067 = vmatpush.bf16.msra.mxu0 0
      %1068 = vmatpush.bf16.msra.mxu0 0
      %1069 = vmatpush.bf16.msra.mxu0 0
      %1070 = vmatpush.bf16.msra.mxu0 0
      %1071 = vmatpush.bf16.msra.mxu0 0
      %1072 = vmatpush.bf16.msra.mxu0 0
      %1073 = vmatpush.bf16.msra.mxu0 %v1061
      %1074 = vmatpush.bf16.msra.mxu0 %v1060
      %1075 = vmatmul.bf16.gmra.mxu0 %v634
      %v1076 = vpop.f32.mrf.mxu0
      %v1077 = vadd.f32 %v1065, %v1076
      %v1078 = vpop.f32.mrf.mxu0
      %v1079 = vadd.f32 %v1065, %v1078
      %1080 = vdwg.mxu0
      %v1085 = vunpack.c.l.b16 %v1044
      %v1086 = vunpack.c.l.b16 %v1045
      %v1087 = vunpack.c.l.b16 %v1046
      %v1088 = vunpack.c.l.b16 %v1047
      %v1089 = vpack.c.b16 %v1086, %v1085
      %v1090 = vpack.c.b16 %v1088, %v1087
      %1093 = vrot.lane.b32.xlu0 %v650, 112
      %v1094 = vpop.permute.xlu0 %1093
      %1096 = vmatpush.bf16.msra.mxu0 0
      %1097 = vmatpush.bf16.msra.mxu0 0
      %1098 = vmatpush.bf16.msra.mxu0 0
      %1099 = vmatpush.bf16.msra.mxu0 0
      %1100 = vmatpush.bf16.msra.mxu0 0
      %1101 = vmatpush.bf16.msra.mxu0 0
      %1102 = vmatpush.bf16.msra.mxu0 %v1090
      %1103 = vmatpush.bf16.msra.mxu0 %v1089
      %1104 = vmatmul.bf16.gmra.mxu0 %v634
      %v1105 = vpop.f32.mrf.mxu0
      %v1106 = vadd.f32 %v1094, %v1105
      %v1107 = vpop.f32.mrf.mxu0
      %v1108 = vadd.f32 %v1094, %v1107
      %1109 = vdwg.mxu0
      %v1114 = vunpack.c.l.b16 %v1048
      %v1115 = vunpack.c.l.b16 %v1049
      %v1116 = vunpack.c.l.b16 %v1050
      %v1117 = vunpack.c.l.b16 %v1051
      %v1118 = vpack.c.b16 %v1115, %v1114
      %v1119 = vpack.c.b16 %v1117, %v1116
      %1122 = vrot.lane.b32.xlu0 %v677, 112
      %v1123 = vpop.permute.xlu0 %1122
      %1125 = vmatpush.bf16.msra.mxu0 0
      %1126 = vmatpush.bf16.msra.mxu0 0
      %1127 = vmatpush.bf16.msra.mxu0 0
      %1128 = vmatpush.bf16.msra.mxu0 0
      %1129 = vmatpush.bf16.msra.mxu0 0
      %1130 = vmatpush.bf16.msra.mxu0 0
      %1131 = vmatpush.bf16.msra.mxu0 %v1119
      %1132 = vmatpush.bf16.msra.mxu0 %v1118
      %1133 = vmatmul.bf16.gmra.mxu0 %v634
      %v1134 = vpop.f32.mrf.mxu0
      %v1135 = vadd.f32 %v1123, %v1134
      %v1136 = vpop.f32.mrf.mxu0
      %v1137 = vadd.f32 %v1123, %v1136
      %1138 = vdwg.mxu0
      %v1140 = vsel %vm704, %v1077, 0
      %v1143 = vsel %vm704, %v1079, 0
      %v1146 = vsel %vm704, %v1106, 0
      %v1149 = vsel %vm704, %v1108, 0
      %1151 = vmatpush.xpose.msra.mxu0 0.0
      %1152 = vmatpush.xpose.msra.mxu0 0.0
      %1153 = vmatpush.xpose.msra.mxu0 0.0
      %1154 = vmatpush.xpose.msra.mxu0 0.0
      %1155 = vmatpush.xpose.msra.mxu0 0.0
      %1156 = vmatpush.xpose.msra.mxu0 0.0
      %1157 = vmatpush.xpose.msra.mxu0 0.0
      %1158 = vmatpush.xpose.msra.mxu0 0.0
      %1159 = vmatpush.xpose.msra.mxu0 0.0
      %1160 = vmatpush.xpose.msra.mxu0 0.0
      %1161 = vmatpush.xpose.msra.mxu0 0.0
      %1162 = vmatpush.xpose.msra.mxu0 0.0
      %1163 = vmatpush.xpose.msra.mxu0 0.0
      %1164 = vmatpush.xpose.msra.mxu0 0.0
      %1165 = vmatpush.xpose.msra.mxu0 %v1149
      %1166 = vmatpush.xpose.msra.mxu0 %v1146
      %1167 = vmatmul.f32.gmra.mxu0 %v1140
      %v1168 = vpop.f32.mrf.mxu0
      %v1169 = vadd.f32 %v604, %v1168
      %1170 = vmatmul.f32.gmra.mxu0 %v1143
      %v1171 = vpop.f32.mrf.mxu0
      %v1172 = vadd.f32 %v605, %v1171
      %1173 = vdwg.mxu0
      %v1174 = vsel %vm740, %v1169, -inf
      %1175 = vmax.xlane.f32.xlu0 %v1174
      %v1176 = vpop.xlane.xlu0 %1175
      %v1177 = vsel %vm740, %v1172, -inf
      %1178 = vmax.xlane.f32.xlu0 %v1177
      %v1179 = vpop.xlane.xlu0 %1178
      %v1180 = vsub.f32 %v1169, %v1176
      %v1181 = vsub.f32 %v1172, %v1179
      %v1182 = vmul.f32 %v1180, 1.442695
      %v1183 = vpow.pop %v1182
      %v1184 = vmul.f32 %v1181, 1.442695
      %v1185 = vpow.pop %v1184
      %v1186 = vsel %vm740, %v1183, 0.0
      %1187 = vadd.xlane.f32.xlu0 %v1186
      %v1188 = vpop.xlane.xlu0 %1187
      %v1189 = vsel %vm740, %v1185, 0.0
      %1190 = vadd.xlane.f32.xlu0 %v1189
      %v1191 = vpop.xlane.xlu0 %1190
      %v1192 = vrcp.pop %v1188
      %v1193 = vrcp.pop %v1191
      %v1194 = vmul.f32 %v1183, %v1192
      %v1195 = vmul.f32 %v1185, %v1193
      %v1197 = vsel %vm740, %v1194, 0
      %v1200 = vsel %vm740, %v1195, 0
      %1202 = vmatpush.msra.mxu0 0.0
      %1203 = vmatpush.msra.mxu0 0.0
      %1204 = vmatpush.msra.mxu0 0.0
      %1205 = vmatpush.msra.mxu0 0.0
      %1206 = vmatpush.msra.mxu0 0.0
      %1207 = vmatpush.msra.mxu0 0.0
      %1208 = vmatpush.msra.mxu0 0.0
      %1209 = vmatpush.msra.mxu0 0.0
      %1210 = vmatpush.msra.mxu0 0.0
      %1211 = vmatpush.msra.mxu0 0.0
      %1212 = vmatpush.msra.mxu0 0.0
      %1213 = vmatpush.msra.mxu0 0.0
      %1214 = vmatpush.msra.mxu0 0.0
      %1215 = vmatpush.msra.mxu0 0.0
      %1216 = vmatpush.msra.mxu0 %v1137
      %1217 = vmatpush.msra.mxu0 %v1135
      %1218 = vmatmul.f32.gmra.mxu0 %v1197
      %v1219 = vpop.f32.mrf.mxu0
      %v1220 = vadd.f32 0.0, %v1219
      %1221 = vmatmul.f32.gmra.mxu0 %v1200
      %v1222 = vpop.f32.mrf.mxu0
      %v1223 = vadd.f32 0.0, %v1222
      %1224 = vdwg.mxu0
      %v1225 = vld [vmem:[%s560 + $0x10] sm:$0xff]
      %v1227 = vsel %vm704, %v1220, 0
      %v1230 = vsel %vm704, %v1223, 0
      %1232 = vmatpush.msra.mxu0 0.0
      %1233 = vmatpush.msra.mxu0 0.0
      %1234 = vmatpush.msra.mxu0 0.0
      %1235 = vmatpush.msra.mxu0 0.0
      %1236 = vmatpush.msra.mxu0 0.0
      %1237 = vmatpush.msra.mxu0 0.0
      %1238 = vmatpush.msra.mxu0 0.0
      %1239 = vmatpush.msra.mxu0 0.0
      %1240 = vmatpush.msra.mxu0 0.0
      %1241 = vmatpush.msra.mxu0 0.0
      %1242 = vmatpush.msra.mxu0 0.0
      %1243 = vmatpush.msra.mxu0 0.0
      %1244 = vmatpush.msra.mxu0 0.0
      %1245 = vmatpush.msra.mxu0 0.0
      %1246 = vmatpush.msra.mxu0 0.0
      %1247 = vmatpush.msra.mxu0 %v1225
      %1248 = vmatmul.f32.gmra.mxu0 %v1227
      %v1249 = vpop.f32.mrf.mxu0
      %v1250 = vadd.f32 0.0, %v1249
      %1251 = vmatmul.f32.gmra.mxu0 %v1230
      %v1252 = vpop.f32.mrf.mxu0
      %v1253 = vadd.f32 0.0, %v1252
      %1254 = vdwg.mxu0
      %v1255 = vadd.f32 %v1035, %v1250
      %v1256 = vadd.f32 %v1038, %v1253
      %v1257 = vld [vmem:[%s555 + $0x30] sm:$0xf]
      %v1258 = vld [vmem:[%s555 + $0x34] sm:$0xf]
      %v1259 = vld [vmem:[%s555 + $0x38] sm:$0xf]
      %v1260 = vld [vmem:[%s555 + $0x3c] sm:$0xf]
      %v1261 = vld [vmem:[%s555 + $0x70] sm:$0xf]
      %v1262 = vld [vmem:[%s555 + $0x74] sm:$0xf]
      %v1263 = vld [vmem:[%s555 + $0x78] sm:$0xf]
      %v1264 = vld [vmem:[%s555 + $0x7c] sm:$0xf]
      %v1265 = vld [vmem:[%s555 + $0xb0] sm:$0xf]
      %v1266 = vld [vmem:[%s555 + $0xb4] sm:$0xf]
      %v1267 = vld [vmem:[%s555 + $0xb8] sm:$0xf]
      %v1268 = vld [vmem:[%s555 + $0xbc] sm:$0xf]
      %v1273 = vunpack.c.l.b16 %v1257
      %v1274 = vunpack.c.l.b16 %v1258
      %v1275 = vunpack.c.l.b16 %v1259
      %v1276 = vunpack.c.l.b16 %v1260
      %v1277 = vpack.c.b16 %v1274, %v1273
      %v1278 = vpack.c.b16 %v1276, %v1275
      %1281 = vrot.lane.b32.xlu0 %v619, 104
      %v1282 = vpop.permute.xlu0 %1281
      %1284 = vmatpush.bf16.msra.mxu0 0
      %1285 = vmatpush.bf16.msra.mxu0 0
      %1286 = vmatpush.bf16.msra.mxu0 0
      %1287 = vmatpush.bf16.msra.mxu0 0
      %1288 = vmatpush.bf16.msra.mxu0 0
      %1289 = vmatpush.bf16.msra.mxu0 0
      %1290 = vmatpush.bf16.msra.mxu0 %v1278
      %1291 = vmatpush.bf16.msra.mxu0 %v1277
      %1292 = vmatmul.bf16.gmra.mxu0 %v634
      %v1293 = vpop.f32.mrf.mxu0
      %v1294 = vadd.f32 %v1282, %v1293
      %v1295 = vpop.f32.mrf.mxu0
      %v1296 = vadd.f32 %v1282, %v1295
      %1297 = vdwg.mxu0
      %v1302 = vunpack.c.l.b16 %v1261
      %v1303 = vunpack.c.l.b16 %v1262
      %v1304 = vunpack.c.l.b16 %v1263
      %v1305 = vunpack.c.l.b16 %v1264
      %v1306 = vpack.c.b16 %v1303, %v1302
      %v1307 = vpack.c.b16 %v1305, %v1304
      %1310 = vrot.lane.b32.xlu0 %v650, 104
      %v1311 = vpop.permute.xlu0 %1310
      %1313 = vmatpush.bf16.msra.mxu0 0
      %1314 = vmatpush.bf16.msra.mxu0 0
      %1315 = vmatpush.bf16.msra.mxu0 0
      %1316 = vmatpush.bf16.msra.mxu0 0
      %1317 = vmatpush.bf16.msra.mxu0 0
      %1318 = vmatpush.bf16.msra.mxu0 0
      %1319 = vmatpush.bf16.msra.mxu0 %v1307
      %1320 = vmatpush.bf16.msra.mxu0 %v1306
      %1321 = vmatmul.bf16.gmra.mxu0 %v634
      %v1322 = vpop.f32.mrf.mxu0
      %v1323 = vadd.f32 %v1311, %v1322
      %v1324 = vpop.f32.mrf.mxu0
      %v1325 = vadd.f32 %v1311, %v1324
      %1326 = vdwg.mxu0
      %v1331 = vunpack.c.l.b16 %v1265
      %v1332 = vunpack.c.l.b16 %v1266
      %v1333 = vunpack.c.l.b16 %v1267
      %v1334 = vunpack.c.l.b16 %v1268
      %v1335 = vpack.c.b16 %v1332, %v1331
      %v1336 = vpack.c.b16 %v1334, %v1333
      %1339 = vrot.lane.b32.xlu0 %v677, 104
      %v1340 = vpop.permute.xlu0 %1339
      %1342 = vmatpush.bf16.msra.mxu0 0
      %1343 = vmatpush.bf16.msra.mxu0 0
      %1344 = vmatpush.bf16.msra.mxu0 0
      %1345 = vmatpush.bf16.msra.mxu0 0
      %1346 = vmatpush.bf16.msra.mxu0 0
      %1347 = vmatpush.bf16.msra.mxu0 0
      %1348 = vmatpush.bf16.msra.mxu0 %v1336
      %1349 = vmatpush.bf16.msra.mxu0 %v1335
      %1350 = vmatmul.bf16.gmra.mxu0 %v634
      %v1351 = vpop.f32.mrf.mxu0
      %v1352 = vadd.f32 %v1340, %v1351
      %v1353 = vpop.f32.mrf.mxu0
      %v1354 = vadd.f32 %v1340, %v1353
      %1355 = vdwg.mxu0
      %v1357 = vsel %vm704, %v1294, 0
      %v1360 = vsel %vm704, %v1296, 0
      %v1363 = vsel %vm704, %v1323, 0
      %v1366 = vsel %vm704, %v1325, 0
      %1368 = vmatpush.xpose.msra.mxu0 0.0
      %1369 = vmatpush.xpose.msra.mxu0 0.0
      %1370 = vmatpush.xpose.msra.mxu0 0.0
      %1371 = vmatpush.xpose.msra.mxu0 0.0
      %1372 = vmatpush.xpose.msra.mxu0 0.0
      %1373 = vmatpush.xpose.msra.mxu0 0.0
      %1374 = vmatpush.xpose.msra.mxu0 0.0
      %1375 = vmatpush.xpose.msra.mxu0 0.0
      %1376 = vmatpush.xpose.msra.mxu0 0.0
      %1377 = vmatpush.xpose.msra.mxu0 0.0
      %1378 = vmatpush.xpose.msra.mxu0 0.0
      %1379 = vmatpush.xpose.msra.mxu0 0.0
      %1380 = vmatpush.xpose.msra.mxu0 0.0
      %1381 = vmatpush.xpose.msra.mxu0 0.0
      %1382 = vmatpush.xpose.msra.mxu0 %v1366
      %1383 = vmatpush.xpose.msra.mxu0 %v1363
      %1384 = vmatmul.f32.gmra.mxu0 %v1357
      %v1385 = vpop.f32.mrf.mxu0
      %v1386 = vadd.f32 %v604, %v1385
      %1387 = vmatmul.f32.gmra.mxu0 %v1360
      %v1388 = vpop.f32.mrf.mxu0
      %v1389 = vadd.f32 %v605, %v1388
      %1390 = vdwg.mxu0
      %v1391 = vsel %vm740, %v1386, -inf
      %1392 = vmax.xlane.f32.xlu0 %v1391
      %v1393 = vpop.xlane.xlu0 %1392
      %v1394 = vsel %vm740, %v1389, -inf
      %1395 = vmax.xlane.f32.xlu0 %v1394
      %v1396 = vpop.xlane.xlu0 %1395
      %v1397 = vsub.f32 %v1386, %v1393
      %v1398 = vsub.f32 %v1389, %v1396
      %v1399 = vmul.f32 %v1397, 1.442695
      %v1400 = vpow.pop %v1399
      %v1401 = vmul.f32 %v1398, 1.442695
      %v1402 = vpow.pop %v1401
      %v1403 = vsel %vm740, %v1400, 0.0
      %1404 = vadd.xlane.f32.xlu0 %v1403
      %v1405 = vpop.xlane.xlu0 %1404
      %v1406 = vsel %vm740, %v1402, 0.0
      %1407 = vadd.xlane.f32.xlu0 %v1406
      %v1408 = vpop.xlane.xlu0 %1407
      %v1409 = vrcp.pop %v1405
      %v1410 = vrcp.pop %v1408
      %v1411 = vmul.f32 %v1400, %v1409
      %v1412 = vmul.f32 %v1402, %v1410
      %v1414 = vsel %vm740, %v1411, 0
      %v1417 = vsel %vm740, %v1412, 0
      %1419 = vmatpush.msra.mxu0 0.0
      %1420 = vmatpush.msra.mxu0 0.0
      %1421 = vmatpush.msra.mxu0 0.0
      %1422 = vmatpush.msra.mxu0 0.0
      %1423 = vmatpush.msra.mxu0 0.0
      %1424 = vmatpush.msra.mxu0 0.0
      %1425 = vmatpush.msra.mxu0 0.0
      %1426 = vmatpush.msra.mxu0 0.0
      %1427 = vmatpush.msra.mxu0 0.0
      %1428 = vmatpush.msra.mxu0 0.0
      %1429 = vmatpush.msra.mxu0 0.0
      %1430 = vmatpush.msra.mxu0 0.0
      %1431 = vmatpush.msra.mxu0 0.0
      %1432 = vmatpush.msra.mxu0 0.0
      %1433 = vmatpush.msra.mxu0 %v1354
      %1434 = vmatpush.msra.mxu0 %v1352
      %1435 = vmatmul.f32.gmra.mxu0 %v1414
      %v1436 = vpop.f32.mrf.mxu0
      %v1437 = vadd.f32 0.0, %v1436
      %1438 = vmatmul.f32.gmra.mxu0 %v1417
      %v1439 = vpop.f32.mrf.mxu0
      %v1440 = vadd.f32 0.0, %v1439
      %1441 = vdwg.mxu0
      %v1442 = vld [vmem:[%s560 + $0x18] sm:$0xff]
      %v1444 = vsel %vm704, %v1437, 0
      %v1447 = vsel %vm704, %v1440, 0
      %1449 = vmatpush.msra.mxu0 0.0
      %1450 = vmatpush.msra.mxu0 0.0
      %1451 = vmatpush.msra.mxu0 0.0
      %1452 = vmatpush.msra.mxu0 0.0
      %1453 = vmatpush.msra.mxu0 0.0
      %1454 = vmatpush.msra.mxu0 0.0
      %1455 = vmatpush.msra.mxu0 0.0
      %1456 = vmatpush.msra.mxu0 0.0
      %1457 = vmatpush.msra.mxu0 0.0
      %1458 = vmatpush.msra.mxu0 0.0
      %1459 = vmatpush.msra.mxu0 0.0
      %1460 = vmatpush.msra.mxu0 0.0
      %1461 = vmatpush.msra.mxu0 0.0
      %1462 = vmatpush.msra.mxu0 0.0
      %1463 = vmatpush.msra.mxu0 0.0
      %1464 = vmatpush.msra.mxu0 %v1442
      %1465 = vmatmul.f32.gmra.mxu0 %v1444
      %v1466 = vpop.f32.mrf.mxu0
      %v1467 = vadd.f32 0.0, %v1466
      %1468 = vmatmul.f32.gmra.mxu0 %v1447
      %v1469 = vpop.f32.mrf.mxu0
      %v1470 = vadd.f32 0.0, %v1469
      %1471 = vdwg.mxu0
      %v1472 = vadd.f32 %v1255, %v1467
      %v1473 = vadd.f32 %v1256, %v1470
      %v1474 = vperm.slane %v602, 3
      %v1475 = vadd.f32 %v1472, %v1474
      %v1476 = vadd.f32 %v1473, %v1474
      %v1477 = vadd.f32 %v600, %v1475
      %v1478 = vadd.f32 %v601, %v1476
      %v1479 = vsel %vm632, %v1477, 0.0
      %1480 = vadd.xlane.f32.xlu0 %v1479
      %v1481 = vpop.xlane.xlu0 %1480
      %v1482 = vsel %vm632, %v1478, 0.0
      %1483 = vadd.xlane.f32.xlu0 %v1482
      %v1484 = vpop.xlane.xlu0 %1483
      %v1485 = vrcp.pop 32.0
      %v1486 = vmul.f32 32.0, %v1485
      %v1487 = vsub.f32 1.0, %v1486
      %v1488 = vmul.f32 %v1485, %v1487
      %v1489 = vadd.f32 %v1485, %v1488
      %vm1490 = vweird.f32 %v1485
      %v1491 = vsel %vm1490, %v1485, %v1489
      %v1492 = vmul.f32 %v1481, %v1491
      %v1493 = vmul.f32 %v1484, %v1491
      %v1494 = vsub.f32 %v1477, %v1492
      %v1495 = vsub.f32 %v1478, %v1493
      %v1496 = vmul.f32 %v1494, %v1494
      %v1497 = vmul.f32 %v1495, %v1495
      %v1498 = vsel %vm632, %v1496, 0.0
      %1499 = vadd.xlane.f32.xlu0 %v1498
      %v1500 = vpop.xlane.xlu0 %1499
      %v1501 = vsel %vm632, %v1497, 0.0
      %1502 = vadd.xlane.f32.xlu0 %v1501
      %v1503 = vpop.xlane.xlu0 %1502
      %v1504 = vmul.f32 %v1500, %v1491
      %v1505 = vmul.f32 %v1503, %v1491
      %v1506 = vadd.f32 %v1504, 1e-05
      %v1507 = vadd.f32 %v1505, 1e-05
      %v1508 = vrsqrt.pop %v1506
      %v1509 = vmul.f32 %v1508, %v1506
      %v1510 = vmul.f32 %v1509, %v1508
      %v1511 = vmul.f32 0.5, %v1510
      %v1512 = vsub.f32 1.5, %v1511
      %v1513 = vmul.f32 %v1508, %v1512
      %vm1514 = vweird.f32 %v1506
      %vm1515 = vweird.f32 %v1508
      %vm1516 = vmor %vm1514, %vm1515
      %v1517 = vsel %vm1516, %v1508, %v1513
      %v1518 = vrsqrt.pop %v1507
      %v1519 = vmul.f32 %v1518, %v1507
      %v1520 = vmul.f32 %v1519, %v1518
      %v1521 = vmul.f32 0.5, %v1520
      %v1522 = vsub.f32 1.5, %v1521
      %v1523 = vmul.f32 %v1518, %v1522
      %vm1524 = vweird.f32 %v1507
      %vm1525 = vweird.f32 %v1518
      %vm1526 = vmor %vm1524, %vm1525
      %v1527 = vsel %vm1526, %v1518, %v1523
      %v1528 = vmul.f32 %v1494, %v1517
      %v1529 = vmul.f32 %v1495, %v1527
      %v1530 = vperm.slane %v603, 1
      %v1531 = vmul.f32 %v1528, %v1530
      %v1532 = vmul.f32 %v1529, %v1530
      %v1533 = vperm.slane %v603, 2
      %v1534 = vadd.f32 %v1531, %v1533
      %v1535 = vadd.f32 %v1532, %v1533
      %v1536 = vld [vmem:[%s1] sm:$0xff]
      %v1537 = vld [vmem:[%s1 + $0x8] sm:$0xff]
      %v1538 = vld [vmem:[%s1 + $0x10] sm:$0xff]
      %v1539 = vld [vmem:[%s1 + $0x18] sm:$0xff]
      %v1540 = vld [vmem:[%s3] sm:$0xff]
      %v1541 = vld [vmem:[%s3 + $0x8] sm:$0xff]
      %v1542 = vpack.c.bf16 %v1535, %v1534
      %v1543 = vpack.c.bf16 %v1537, %v1536
      %v1544 = vpack.c.bf16 %v1539, %v1538
      %v1545 = vld [vmem:[%s565] sm:$0xf]
      %v1546 = vld [vmem:[%s565 + $0x4] sm:$0xf]
      %v1547 = vld [vmem:[%s565 + $0x8] sm:$0xf]
      %v1548 = vld [vmem:[%s565 + $0xc] sm:$0xf]
      %v1549 = vld [vmem:[%s565 + $0x40] sm:$0xf]
      %v1550 = vld [vmem:[%s565 + $0x44] sm:$0xf]
      %v1551 = vld [vmem:[%s565 + $0x48] sm:$0xf]
      %v1552 = vld [vmem:[%s565 + $0x4c] sm:$0xf]
      %v1553 = vld [vmem:[%s565 + $0x80] sm:$0xf]
      %v1554 = vld [vmem:[%s565 + $0x84] sm:$0xf]
      %v1555 = vld [vmem:[%s565 + $0x88] sm:$0xf]
      %v1556 = vld [vmem:[%s565 + $0x8c] sm:$0xf]
      %v1557 = vperm.slane %v602, 4
      %v1562 = vunpack.c.l.b16 %v1545
      %v1563 = vunpack.c.l.b16 %v1546
      %v1564 = vunpack.c.l.b16 %v1547
      %v1565 = vunpack.c.l.b16 %v1548
      %v1566 = vpack.c.b16 %v1563, %v1562
      %v1567 = vpack.c.b16 %v1565, %v1564
      %v1571 = vsel %vm632, %v1542, 0
      %1573 = vmatpush.bf16.msra.mxu0 0
      %1574 = vmatpush.bf16.msra.mxu0 0
      %1575 = vmatpush.bf16.msra.mxu0 0
      %1576 = vmatpush.bf16.msra.mxu0 0
      %1577 = vmatpush.bf16.msra.mxu0 0
      %1578 = vmatpush.bf16.msra.mxu0 0
      %1579 = vmatpush.bf16.msra.mxu0 %v1567
      %1580 = vmatpush.bf16.msra.mxu0 %v1566
      %1581 = vmatmul.bf16.gmra.mxu0 %v1571
      %v1582 = vpop.f32.mrf.mxu0
      %v1583 = vadd.f32 %v1557, %v1582
      %v1584 = vpop.f32.mrf.mxu0
      %v1585 = vadd.f32 %v1557, %v1584
      %1586 = vdwg.mxu0
      %v1587 = vperm.slane %v602, 5
      %v1592 = vunpack.c.l.b16 %v1549
      %v1593 = vunpack.c.l.b16 %v1550
      %v1594 = vunpack.c.l.b16 %v1551
      %v1595 = vunpack.c.l.b16 %v1552
      %v1596 = vpack.c.b16 %v1593, %v1592
      %v1597 = vpack.c.b16 %v1595, %v1594
      %v1601 = vsel %vm632, %v1543, 0
      %v1604 = vsel %vm632, %v1544, 0
      %1606 = vmatpush.bf16.msra.mxu0 0
      %1607 = vmatpush.bf16.msra.mxu0 0
      %1608 = vmatpush.bf16.msra.mxu0 0
      %1609 = vmatpush.bf16.msra.mxu0 0
      %1610 = vmatpush.bf16.msra.mxu0 0
      %1611 = vmatpush.bf16.msra.mxu0 0
      %1612 = vmatpush.bf16.msra.mxu0 %v1597
      %1613 = vmatpush.bf16.msra.mxu0 %v1596
      %1614 = vmatmul.bf16.gmra.mxu0 %v1601
      %v1615 = vpop.f32.mrf.mxu0
      %v1616 = vadd.f32 %v1587, %v1615
      %v1617 = vpop.f32.mrf.mxu0
      %v1618 = vadd.f32 %v1587, %v1617
      %1619 = vmatmul.bf16.gmra.mxu0 %v1604
      %v1620 = vpop.f32.mrf.mxu0
      %v1621 = vadd.f32 %v1587, %v1620
      %v1622 = vpop.f32.mrf.mxu0
      %v1623 = vadd.f32 %v1587, %v1622
      %1624 = vdwg.mxu0
      %v1625 = vperm.slane %v602, 6
      %v1630 = vunpack.c.l.b16 %v1553
      %v1631 = vunpack.c.l.b16 %v1554
      %v1632 = vunpack.c.l.b16 %v1555
      %v1633 = vunpack.c.l.b16 %v1556
      %v1634 = vpack.c.b16 %v1631, %v1630
      %v1635 = vpack.c.b16 %v1633, %v1632
      %1638 = vmatpush.bf16.msra.mxu0 0
      %1639 = vmatpush.bf16.msra.mxu0 0
      %1640 = vmatpush.bf16.msra.mxu0 0
      %1641 = vmatpush.bf16.msra.mxu0 0
      %1642 = vmatpush.bf16.msra.mxu0 0
      %1643 = vmatpush.bf16.msra.mxu0 0
      %1644 = vmatpush.bf16.msra.mxu0 %v1635
      %1645 = vmatpush.bf16.msra.mxu0 %v1634
      %1646 = vmatmul.bf16.gmra.mxu0 %v1601
      %v1647 = vpop.f32.mrf.mxu0
      %v1648 = vadd.f32 %v1625, %v1647
      %v1649 = vpop.f32.mrf.mxu0
      %v1650 = vadd.f32 %v1625, %v1649
      %1651 = vmatmul.bf16.gmra.mxu0 %v1604
      %v1652 = vpop.f32.mrf.mxu0
      %v1653 = vadd.f32 %v1625, %v1652
      %v1654 = vpop.f32.mrf.mxu0
      %v1655 = vadd.f32 %v1625, %v1654
      %1656 = vdwg.mxu0
      %v1658 = vsel %vm704, %v1583, 0
      %v1661 = vsel %vm704, %v1585, 0
      %v1664 = vsel %vm704, %v1616, 0
      %v1667 = vsel %vm704, %v1618, 0
      %v1670 = vsel %vm704, %v1621, 0
      %v1673 = vsel %vm704, %v1623, 0
      %1675 = vmatpush.xpose.msra.mxu0 0.0
      %1676 = vmatpush.xpose.msra.mxu0 0.0
      %1677 = vmatpush.xpose.msra.mxu0 0.0
      %1678 = vmatpush.xpose.msra.mxu0 0.0
      %1679 = vmatpush.xpose.msra.mxu0 0.0
      %1680 = vmatpush.xpose.msra.mxu0 0.0
      %1681 = vmatpush.xpose.msra.mxu0 0.0
      %1682 = vmatpush.xpose.msra.mxu0 0.0
      %1683 = vmatpush.xpose.msra.mxu0 0.0
      %1684 = vmatpush.xpose.msra.mxu0 0.0
      %1685 = vmatpush.xpose.msra.mxu0 0.0
      %1686 = vmatpush.xpose.msra.mxu0 0.0
      %1687 = vmatpush.xpose.msra.mxu0 %v1673
      %1688 = vmatpush.xpose.msra.mxu0 %v1670
      %1689 = vmatpush.xpose.msra.mxu0 %v1667
      %1690 = vmatpush.xpose.msra.mxu0 %v1664
      %1691 = vmatmul.f32.gmra.mxu0 %v1658
      %v1692 = vpop.f32.mrf.mxu0
      %v1693 = vadd.f32 %v1540, %v1692
      %1694 = vmatmul.f32.gmra.mxu0 %v1661
      %v1695 = vpop.f32.mrf.mxu0
      %v1696 = vadd.f32 %v1541, %v1695
      %1697 = vdwg.mxu0
      %v1698 = vsel %vm632, %v1693, -inf
      %1699 = vmax.xlane.f32.xlu0 %v1698
      %v1700 = vpop.xlane.xlu0 %1699
      %v1701 = vsel %vm632, %v1696, -inf
      %1702 = vmax.xlane.f32.xlu0 %v1701
      %v1703 = vpop.xlane.xlu0 %1702
      %v1704 = vsub.f32 %v1693, %v1700
      %v1705 = vsub.f32 %v1696, %v1703
      %v1706 = vmul.f32 %v1704, 1.442695
      %v1707 = vpow.pop %v1706
      %v1708 = vmul.f32 %v1705, 1.442695
      %v1709 = vpow.pop %v1708
      %v1710 = vsel %vm632, %v1707, 0.0
      %1711 = vadd.xlane.f32.xlu0 %v1710
      %v1712 = vpop.xlane.xlu0 %1711
      %v1713 = vsel %vm632, %v1709, 0.0
      %1714 = vadd.xlane.f32.xlu0 %v1713
      %v1715 = vpop.xlane.xlu0 %1714
      %v1716 = vrcp.pop %v1712
      %v1717 = vrcp.pop %v1715
      %v1718 = vmul.f32 %v1707, %v1716
      %v1719 = vmul.f32 %v1709, %v1717
      %v1721 = vsel %vm632, %v1718, 0
      %v1724 = vsel %vm632, %v1719, 0
      %1726 = vmatpush.msra.mxu0 0.0
      %1727 = vmatpush.msra.mxu0 0.0
      %1728 = vmatpush.msra.mxu0 0.0
      %1729 = vmatpush.msra.mxu0 0.0
      %1730 = vmatpush.msra.mxu0 0.0
      %1731 = vmatpush.msra.mxu0 0.0
      %1732 = vmatpush.msra.mxu0 0.0
      %1733 = vmatpush.msra.mxu0 0.0
      %1734 = vmatpush.msra.mxu0 0.0
      %1735 = vmatpush.msra.mxu0 0.0
      %1736 = vmatpush.msra.mxu0 0.0
      %1737 = vmatpush.msra.mxu0 0.0
      %1738 = vmatpush.msra.mxu0 %v1655
      %1739 = vmatpush.msra.mxu0 %v1653
      %1740 = vmatpush.msra.mxu0 %v1650
      %1741 = vmatpush.msra.mxu0 %v1648
      %1742 = vmatmul.f32.gmra.mxu0 %v1721
      %v1743 = vpop.f32.mrf.mxu0
      %v1744 = vadd.f32 0.0, %v1743
      %1745 = vmatmul.f32.gmra.mxu0 %v1724
      %v1746 = vpop.f32.mrf.mxu0
      %v1747 = vadd.f32 0.0, %v1746
      %1748 = vdwg.mxu0
      %v1749 = vld [vmem:[%s570] sm:$0xff]
      %v1750 = vld [vmem:[%s565 + $0x10] sm:$0xf]
      %v1751 = vld [vmem:[%s565 + $0x14] sm:$0xf]
      %v1752 = vld [vmem:[%s565 + $0x18] sm:$0xf]
      %v1753 = vld [vmem:[%s565 + $0x1c] sm:$0xf]
      %v1754 = vld [vmem:[%s565 + $0x50] sm:$0xf]
      %v1755 = vld [vmem:[%s565 + $0x54] sm:$0xf]
      %v1756 = vld [vmem:[%s565 + $0x58] sm:$0xf]
      %v1757 = vld [vmem:[%s565 + $0x5c] sm:$0xf]
      %v1758 = vld [vmem:[%s565 + $0x90] sm:$0xf]
      %v1759 = vld [vmem:[%s565 + $0x94] sm:$0xf]
      %v1760 = vld [vmem:[%s565 + $0x98] sm:$0xf]
      %v1761 = vld [vmem:[%s565 + $0x9c] sm:$0xf]
      %v1766 = vunpack.c.l.b16 %v1750
      %v1767 = vunpack.c.l.b16 %v1751
      %v1768 = vunpack.c.l.b16 %v1752
      %v1769 = vunpack.c.l.b16 %v1753
      %v1770 = vpack.c.b16 %v1767, %v1766
      %v1771 = vpack.c.b16 %v1769, %v1768
      %1775 = vrot.lane.b32.xlu0 %v1557, 120
      %v1776 = vpop.permute.xlu0 %1775
      %1778 = vmatpush.bf16.msra.mxu0 0
      %1779 = vmatpush.bf16.msra.mxu0 0
      %1780 = vmatpush.bf16.msra.mxu0 0
      %1781 = vmatpush.bf16.msra.mxu0 0
      %1782 = vmatpush.bf16.msra.mxu0 0
      %1783 = vmatpush.bf16.msra.mxu0 0
      %1784 = vmatpush.bf16.msra.mxu0 %v1771
      %1785 = vmatpush.bf16.msra.mxu0 %v1770
      %1786 = vmatmul.bf16.gmra.mxu0 %v1571
      %v1787 = vpop.f32.mrf.mxu0
      %v1788 = vadd.f32 %v1776, %v1787
      %v1789 = vpop.f32.mrf.mxu0
      %v1790 = vadd.f32 %v1776, %v1789
      %1791 = vdwg.mxu0
      %v1796 = vunpack.c.l.b16 %v1754
      %v1797 = vunpack.c.l.b16 %v1755
      %v1798 = vunpack.c.l.b16 %v1756
      %v1799 = vunpack.c.l.b16 %v1757
      %v1800 = vpack.c.b16 %v1797, %v1796
      %v1801 = vpack.c.b16 %v1799, %v1798
      %1805 = vrot.lane.b32.xlu0 %v1587, 120
      %v1806 = vpop.permute.xlu0 %1805
      %1808 = vmatpush.bf16.msra.mxu0 0
      %1809 = vmatpush.bf16.msra.mxu0 0
      %1810 = vmatpush.bf16.msra.mxu0 0
      %1811 = vmatpush.bf16.msra.mxu0 0
      %1812 = vmatpush.bf16.msra.mxu0 0
      %1813 = vmatpush.bf16.msra.mxu0 0
      %1814 = vmatpush.bf16.msra.mxu0 %v1801
      %1815 = vmatpush.bf16.msra.mxu0 %v1800
      %1816 = vmatmul.bf16.gmra.mxu0 %v1601
      %v1817 = vpop.f32.mrf.mxu0
      %v1818 = vadd.f32 %v1806, %v1817
      %v1819 = vpop.f32.mrf.mxu0
      %v1820 = vadd.f32 %v1806, %v1819
      %1821 = vmatmul.bf16.gmra.mxu0 %v1604
      %v1822 = vpop.f32.mrf.mxu0
      %v1823 = vadd.f32 %v1806, %v1822
      %v1824 = vpop.f32.mrf.mxu0
      %v1825 = vadd.f32 %v1806, %v1824
      %1826 = vdwg.mxu0
      %v1831 = vunpack.c.l.b16 %v1758
      %v1832 = vunpack.c.l.b16 %v1759
      %v1833 = vunpack.c.l.b16 %v1760
      %v1834 = vunpack.c.l.b16 %v1761
      %v1835 = vpack.c.b16 %v1832, %v1831
      %v1836 = vpack.c.b16 %v1834, %v1833
      %1840 = vrot.lane.b32.xlu0 %v1625, 120
      %v1841 = vpop.permute.xlu0 %1840
      %1843 = vmatpush.bf16.msra.mxu0 0
      %1844 = vmatpush.bf16.msra.mxu0 0
      %1845 = vmatpush.bf16.msra.mxu0 0
      %1846 = vmatpush.bf16.msra.mxu0 0
      %1847 = vmatpush.bf16.msra.mxu0 0
      %1848 = vmatpush.bf16.msra.mxu0 0
      %1849 = vmatpush.bf16.msra.mxu0 %v1836
      %1850 = vmatpush.bf16.msra.mxu0 %v1835
      %1851 = vmatmul.bf16.gmra.mxu0 %v1601
      %v1852 = vpop.f32.mrf.mxu0
      %v1853 = vadd.f32 %v1841, %v1852
      %v1854 = vpop.f32.mrf.mxu0
      %v1855 = vadd.f32 %v1841, %v1854
      %1856 = vmatmul.bf16.gmra.mxu0 %v1604
      %v1857 = vpop.f32.mrf.mxu0
      %v1858 = vadd.f32 %v1841, %v1857
      %v1859 = vpop.f32.mrf.mxu0
      %v1860 = vadd.f32 %v1841, %v1859
      %1861 = vdwg.mxu0
      %v1863 = vsel %vm704, %v1788, 0
      %v1866 = vsel %vm704, %v1790, 0
      %v1869 = vsel %vm704, %v1818, 0
      %v1872 = vsel %vm704, %v1820, 0
      %v1875 = vsel %vm704, %v1823, 0
      %v1878 = vsel %vm704, %v1825, 0
      %1880 = vmatpush.xpose.msra.mxu0 0.0
      %1881 = vmatpush.xpose.msra.mxu0 0.0
      %1882 = vmatpush.xpose.msra.mxu0 0.0
      %1883 = vmatpush.xpose.msra.mxu0 0.0
      %1884 = vmatpush.xpose.msra.mxu0 0.0
      %1885 = vmatpush.xpose.msra.mxu0 0.0
      %1886 = vmatpush.xpose.msra.mxu0 0.0
      %1887 = vmatpush.xpose.msra.mxu0 0.0
      %1888 = vmatpush.xpose.msra.mxu0 0.0
      %1889 = vmatpush.xpose.msra.mxu0 0.0
      %1890 = vmatpush.xpose.msra.mxu0 0.0
      %1891 = vmatpush.xpose.msra.mxu0 0.0
      %1892 = vmatpush.xpose.msra.mxu0 %v1878
      %1893 = vmatpush.xpose.msra.mxu0 %v1875
      %1894 = vmatpush.xpose.msra.mxu0 %v1872
      %1895 = vmatpush.xpose.msra.mxu0 %v1869
      %1896 = vmatmul.f32.gmra.mxu0 %v1863
      %v1897 = vpop.f32.mrf.mxu0
      %v1898 = vadd.f32 %v1540, %v1897
      %1899 = vmatmul.f32.gmra.mxu0 %v1866
      %v1900 = vpop.f32.mrf.mxu0
      %v1901 = vadd.f32 %v1541, %v1900
      %1902 = vdwg.mxu0
      %v1903 = vsel %vm632, %v1898, -inf
      %1904 = vmax.xlane.f32.xlu0 %v1903
      %v1905 = vpop.xlane.xlu0 %1904
      %v1906 = vsel %vm632, %v1901, -inf
      %1907 = vmax.xlane.f32.xlu0 %v1906
      %v1908 = vpop.xlane.xlu0 %1907
      %v1909 = vsub.f32 %v1898, %v1905
      %v1910 = vsub.f32 %v1901, %v1908
      %v1911 = vmul.f32 %v1909, 1.442695
      %v1912 = vpow.pop %v1911
      %v1913 = vmul.f32 %v1910, 1.442695
      %v1914 = vpow.pop %v1913
      %v1915 = vsel %vm632, %v1912, 0.0
      %1916 = vadd.xlane.f32.xlu0 %v1915
      %v1917 = vpop.xlane.xlu0 %1916
      %v1918 = vsel %vm632, %v1914, 0.0
      %1919 = vadd.xlane.f32.xlu0 %v1918
      %v1920 = vpop.xlane.xlu0 %1919
      %v1921 = vrcp.pop %v1917
      %v1922 = vrcp.pop %v1920
      %v1923 = vmul.f32 %v1912, %v1921
      %v1924 = vmul.f32 %v1914, %v1922
      %v1926 = vsel %vm632, %v1923, 0
      %v1929 = vsel %vm632, %v1924, 0
      %1931 = vmatpush.msra.mxu0 0.0
      %1932 = vmatpush.msra.mxu0 0.0
      %1933 = vmatpush.msra.mxu0 0.0
      %1934 = vmatpush.msra.mxu0 0.0
      %1935 = vmatpush.msra.mxu0 0.0
      %1936 = vmatpush.msra.mxu0 0.0
      %1937 = vmatpush.msra.mxu0 0.0
      %1938 = vmatpush.msra.mxu0 0.0
      %1939 = vmatpush.msra.mxu0 0.0
      %1940 = vmatpush.msra.mxu0 0.0
      %1941 = vmatpush.msra.mxu0 0.0
      %1942 = vmatpush.msra.mxu0 0.0
      %1943 = vmatpush.msra.mxu0 %v1860
      %1944 = vmatpush.msra.mxu0 %v1858
      %1945 = vmatpush.msra.mxu0 %v1855
      %1946 = vmatpush.msra.mxu0 %v1853
      %1947 = vmatmul.f32.gmra.mxu0 %v1926
      %v1948 = vpop.f32.mrf.mxu0
      %v1949 = vadd.f32 0.0, %v1948
      %1950 = vmatmul.f32.gmra.mxu0 %v1929
      %v1951 = vpop.f32.mrf.mxu0
      %v1952 = vadd.f32 0.0, %v1951
      %1953 = vdwg.mxu0
      %v1954 = vld [vmem:[%s570 + $0x8] sm:$0xff]
      %v1956 = vsel %vm704, %v1949, 0
      %v1959 = vsel %vm704, %v1952, 0
      %1961 = vmatpush.msra.mxu0 0.0
      %1962 = vmatpush.msra.mxu0 0.0
      %1963 = vmatpush.msra.mxu0 0.0
      %1964 = vmatpush.msra.mxu0 0.0
      %1965 = vmatpush.msra.mxu0 0.0
      %1966 = vmatpush.msra.mxu0 0.0
      %1967 = vmatpush.msra.mxu0 0.0
      %1968 = vmatpush.msra.mxu0 0.0
      %1969 = vmatpush.msra.mxu0 0.0
      %1970 = vmatpush.msra.mxu0 0.0
      %1971 = vmatpush.msra.mxu0 0.0
      %1972 = vmatpush.msra.mxu0 0.0
      %1973 = vmatpush.msra.mxu0 0.0
      %1974 = vmatpush.msra.mxu0 0.0
      %1975 = vmatpush.msra.mxu0 0.0
      %1976 = vmatpush.msra.mxu0 %v1954
      %1977 = vmatmul.f32.gmra.mxu0 %v1956
      %v1978 = vpop.f32.mrf.mxu0
      %v1979 = vadd.f32 0.0, %v1978
      %1980 = vmatmul.f32.gmra.mxu0 %v1959
      %v1981 = vpop.f32.mrf.mxu0
      %v1982 = vadd.f32 0.0, %v1981
      %1983 = vdwg.mxu0
      %v1985 = vsel %vm704, %v1744, 0
      %v1988 = vsel %vm704, %v1747, 0
      %1990 = vmatpush.msra.mxu0 0.0
      %1991 = vmatpush.msra.mxu0 0.0
      %1992 = vmatpush.msra.mxu0 0.0
      %1993 = vmatpush.msra.mxu0 0.0
      %1994 = vmatpush.msra.mxu0 0.0
      %1995 = vmatpush.msra.mxu0 0.0
      %1996 = vmatpush.msra.mxu0 0.0
      %1997 = vmatpush.msra.mxu0 0.0
      %1998 = vmatpush.msra.mxu0 0.0
      %1999 = vmatpush.msra.mxu0 0.0
      %2000 = vmatpush.msra.mxu0 0.0
      %2001 = vmatpush.msra.mxu0 0.0
      %2002 = vmatpush.msra.mxu0 0.0
      %2003 = vmatpush.msra.mxu0 0.0
      %2004 = vmatpush.msra.mxu0 0.0
      %2005 = vmatpush.msra.mxu0 %v1749
      %2006 = vmatmul.f32.gmra.mxu0 %v1985
      %v2007 = vpop.f32.mrf.mxu0
      %v2008 = vadd.f32 %v1979, %v2007
      %2009 = vmatmul.f32.gmra.mxu0 %v1988
      %v2010 = vpop.f32.mrf.mxu0
      %v2011 = vadd.f32 %v1982, %v2010
      %2012 = vdwg.mxu0
      %v2013 = vld [vmem:[%s565 + $0x20] sm:$0xf]
      %v2014 = vld [vmem:[%s565 + $0x24] sm:$0xf]
      %v2015 = vld [vmem:[%s565 + $0x28] sm:$0xf]
      %v2016 = vld [vmem:[%s565 + $0x2c] sm:$0xf]
      %v2017 = vld [vmem:[%s565 + $0x60] sm:$0xf]
      %v2018 = vld [vmem:[%s565 + $0x64] sm:$0xf]
      %v2019 = vld [vmem:[%s565 + $0x68] sm:$0xf]
      %v2020 = vld [vmem:[%s565 + $0x6c] sm:$0xf]
      %v2021 = vld [vmem:[%s565 + $0xa0] sm:$0xf]
      %v2022 = vld [vmem:[%s565 + $0xa4] sm:$0xf]
      %v2023 = vld [vmem:[%s565 + $0xa8] sm:$0xf]
      %v2024 = vld [vmem:[%s565 + $0xac] sm:$0xf]
      %v2029 = vunpack.c.l.b16 %v2013
      %v2030 = vunpack.c.l.b16 %v2014
      %v2031 = vunpack.c.l.b16 %v2015
      %v2032 = vunpack.c.l.b16 %v2016
      %v2033 = vpack.c.b16 %v2030, %v2029
      %v2034 = vpack.c.b16 %v2032, %v2031
      %2037 = vrot.lane.b32.xlu0 %v1557, 112
      %v2038 = vpop.permute.xlu0 %2037
      %2040 = vmatpush.bf16.msra.mxu0 0
      %2041 = vmatpush.bf16.msra.mxu0 0
      %2042 = vmatpush.bf16.msra.mxu0 0
      %2043 = vmatpush.bf16.msra.mxu0 0
      %2044 = vmatpush.bf16.msra.mxu0 0
      %2045 = vmatpush.bf16.msra.mxu0 0
      %2046 = vmatpush.bf16.msra.mxu0 %v2034
      %2047 = vmatpush.bf16.msra.mxu0 %v2033
      %2048 = vmatmul.bf16.gmra.mxu0 %v1571
      %v2049 = vpop.f32.mrf.mxu0
      %v2050 = vadd.f32 %v2038, %v2049
      %v2051 = vpop.f32.mrf.mxu0
      %v2052 = vadd.f32 %v2038, %v2051
      %2053 = vdwg.mxu0
      %v2058 = vunpack.c.l.b16 %v2017
      %v2059 = vunpack.c.l.b16 %v2018
      %v2060 = vunpack.c.l.b16 %v2019
      %v2061 = vunpack.c.l.b16 %v2020
      %v2062 = vpack.c.b16 %v2059, %v2058
      %v2063 = vpack.c.b16 %v2061, %v2060
      %2066 = vrot.lane.b32.xlu0 %v1587, 112
      %v2067 = vpop.permute.xlu0 %2066
      %2069 = vmatpush.bf16.msra.mxu0 0
      %2070 = vmatpush.bf16.msra.mxu0 0
      %2071 = vmatpush.bf16.msra.mxu0 0
      %2072 = vmatpush.bf16.msra.mxu0 0
      %2073 = vmatpush.bf16.msra.mxu0 0
      %2074 = vmatpush.bf16.msra.mxu0 0
      %2075 = vmatpush.bf16.msra.mxu0 %v2063
      %2076 = vmatpush.bf16.msra.mxu0 %v2062
      %2077 = vmatmul.bf16.gmra.mxu0 %v1601
      %v2078 = vpop.f32.mrf.mxu0
      %v2079 = vadd.f32 %v2067, %v2078
      %v2080 = vpop.f32.mrf.mxu0
      %v2081 = vadd.f32 %v2067, %v2080
      %2082 = vmatmul.bf16.gmra.mxu0 %v1604
      %v2083 = vpop.f32.mrf.mxu0
      %v2084 = vadd.f32 %v2067, %v2083
      %v2085 = vpop.f32.mrf.mxu0
      %v2086 = vadd.f32 %v2067, %v2085
      %2087 = vdwg.mxu0
      %v2092 = vunpack.c.l.b16 %v2021
      %v2093 = vunpack.c.l.b16 %v2022
      %v2094 = vunpack.c.l.b16 %v2023
      %v2095 = vunpack.c.l.b16 %v2024
      %v2096 = vpack.c.b16 %v2093, %v2092
      %v2097 = vpack.c.b16 %v2095, %v2094
      %2100 = vrot.lane.b32.xlu0 %v1625, 112
      %v2101 = vpop.permute.xlu0 %2100
      %2103 = vmatpush.bf16.msra.mxu0 0
      %2104 = vmatpush.bf16.msra.mxu0 0
      %2105 = vmatpush.bf16.msra.mxu0 0
      %2106 = vmatpush.bf16.msra.mxu0 0
      %2107 = vmatpush.bf16.msra.mxu0 0
      %2108 = vmatpush.bf16.msra.mxu0 0
      %2109 = vmatpush.bf16.msra.mxu0 %v2097
      %2110 = vmatpush.bf16.msra.mxu0 %v2096
      %2111 = vmatmul.bf16.gmra.mxu0 %v1601
      %v2112 = vpop.f32.mrf.mxu0
      %v2113 = vadd.f32 %v2101, %v2112
      %v2114 = vpop.f32.mrf.mxu0
      %v2115 = vadd.f32 %v2101, %v2114
      %2116 = vmatmul.bf16.gmra.mxu0 %v1604
      %v2117 = vpop.f32.mrf.mxu0
      %v2118 = vadd.f32 %v2101, %v2117
      %v2119 = vpop.f32.mrf.mxu0
      %v2120 = vadd.f32 %v2101, %v2119
      %2121 = vdwg.mxu0
      %v2123 = vsel %vm704, %v2050, 0
      %v2126 = vsel %vm704, %v2052, 0
      %v2129 = vsel %vm704, %v2079, 0
      %v2132 = vsel %vm704, %v2081, 0
      %v2135 = vsel %vm704, %v2084, 0
      %v2138 = vsel %vm704, %v2086, 0
      %2140 = vmatpush.xpose.msra.mxu0 0.0
      %2141 = vmatpush.xpose.msra.mxu0 0.0
      %2142 = vmatpush.xpose.msra.mxu0 0.0
      %2143 = vmatpush.xpose.msra.mxu0 0.0
      %2144 = vmatpush.xpose.msra.mxu0 0.0
      %2145 = vmatpush.xpose.msra.mxu0 0.0
      %2146 = vmatpush.xpose.msra.mxu0 0.0
      %2147 = vmatpush.xpose.msra.mxu0 0.0
      %2148 = vmatpush.xpose.msra.mxu0 0.0
      %2149 = vmatpush.xpose.msra.mxu0 0.0
      %2150 = vmatpush.xpose.msra.mxu0 0.0
      %2151 = vmatpush.xpose.msra.mxu0 0.0
      %2152 = vmatpush.xpose.msra.mxu0 %v2138
      %2153 = vmatpush.xpose.msra.mxu0 %v2135
      %2154 = vmatpush.xpose.msra.mxu0 %v2132
      %2155 = vmatpush.xpose.msra.mxu0 %v2129
      %2156 = vmatmul.f32.gmra.mxu0 %v2123
      %v2157 = vpop.f32.mrf.mxu0
      %v2158 = vadd.f32 %v1540, %v2157
      %2159 = vmatmul.f32.gmra.mxu0 %v2126
      %v2160 = vpop.f32.mrf.mxu0
      %v2161 = vadd.f32 %v1541, %v2160
      %2162 = vdwg.mxu0
      %v2163 = vsel %vm632, %v2158, -inf
      %2164 = vmax.xlane.f32.xlu0 %v2163
      %v2165 = vpop.xlane.xlu0 %2164
      %v2166 = vsel %vm632, %v2161, -inf
      %2167 = vmax.xlane.f32.xlu0 %v2166
      %v2168 = vpop.xlane.xlu0 %2167
      %v2169 = vsub.f32 %v2158, %v2165
      %v2170 = vsub.f32 %v2161, %v2168
      %v2171 = vmul.f32 %v2169, 1.442695
      %v2172 = vpow.pop %v2171
      %v2173 = vmul.f32 %v2170, 1.442695
      %v2174 = vpow.pop %v2173
      %v2175 = vsel %vm632, %v2172, 0.0
      %2176 = vadd.xlane.f32.xlu0 %v2175
      %v2177 = vpop.xlane.xlu0 %2176
      %v2178 = vsel %vm632, %v2174, 0.0
      %2179 = vadd.xlane.f32.xlu0 %v2178
      %v2180 = vpop.xlane.xlu0 %2179
      %v2181 = vrcp.pop %v2177
      %v2182 = vrcp.pop %v2180
      %v2183 = vmul.f32 %v2172, %v2181
      %v2184 = vmul.f32 %v2174, %v2182
      %v2186 = vsel %vm632, %v2183, 0
      %v2189 = vsel %vm632, %v2184, 0
      %2191 = vmatpush.msra.mxu0 0.0
      %2192 = vmatpush.msra.mxu0 0.0
      %2193 = vmatpush.msra.mxu0 0.0
      %2194 = vmatpush.msra.mxu0 0.0
      %2195 = vmatpush.msra.mxu0 0.0
      %2196 = vmatpush.msra.mxu0 0.0
      %2197 = vmatpush.msra.mxu0 0.0
      %2198 = vmatpush.msra.mxu0 0.0
      %2199 = vmatpush.msra.mxu0 0.0
      %2200 = vmatpush.msra.mxu0 0.0
      %2201 = vmatpush.msra.mxu0 0.0
      %2202 = vmatpush.msra.mxu0 0.0
      %2203 = vmatpush.msra.mxu0 %v2120
      %2204 = vmatpush.msra.mxu0 %v2118
      %2205 = vmatpush.msra.mxu0 %v2115
      %2206 = vmatpush.msra.mxu0 %v2113
      %2207 = vmatmul.f32.gmra.mxu0 %v2186
      %v2208 = vpop.f32.mrf.mxu0
      %v2209 = vadd.f32 0.0, %v2208
      %2210 = vmatmul.f32.gmra.mxu0 %v2189
      %v2211 = vpop.f32.mrf.mxu0
      %v2212 = vadd.f32 0.0, %v2211
      %2213 = vdwg.mxu0
      %v2214 = vld [vmem:[%s570 + $0x10] sm:$0xff]
      %v2216 = vsel %vm704, %v2209, 0
      %v2219 = vsel %vm704, %v2212, 0
      %2221 = vmatpush.msra.mxu0 0.0
      %2222 = vmatpush.msra.mxu0 0.0
      %2223 = vmatpush.msra.mxu0 0.0
      %2224 = vmatpush.msra.mxu0 0.0
      %2225 = vmatpush.msra.mxu0 0.0
      %2226 = vmatpush.msra.mxu0 0.0
      %2227 = vmatpush.msra.mxu0 0.0
      %2228 = vmatpush.msra.mxu0 0.0
      %2229 = vmatpush.msra.mxu0 0.0
      %2230 = vmatpush.msra.mxu0 0.0
      %2231 = vmatpush.msra.mxu0 0.0
      %2232 = vmatpush.msra.mxu0 0.0
      %2233 = vmatpush.msra.mxu0 0.0
      %2234 = vmatpush.msra.mxu0 0.0
      %2235 = vmatpush.msra.mxu0 0.0
      %2236 = vmatpush.msra.mxu0 %v2214
      %2237 = vmatmul.f32.gmra.mxu0 %v2216
      %v2238 = vpop.f32.mrf.mxu0
      %v2239 = vadd.f32 0.0, %v2238
      %2240 = vmatmul.f32.gmra.mxu0 %v2219
      %v2241 = vpop.f32.mrf.mxu0
      %v2242 = vadd.f32 0.0, %v2241
      %2243 = vdwg.mxu0
      %v2244 = vadd.f32 %v2008, %v2239
      %v2245 = vadd.f32 %v2011, %v2242
      %v2246 = vld [vmem:[%s565 + $0x30] sm:$0xf]
      %v2247 = vld [vmem:[%s565 + $0x34] sm:$0xf]
      %v2248 = vld [vmem:[%s565 + $0x38] sm:$0xf]
      %v2249 = vld [vmem:[%s565 + $0x3c] sm:$0xf]
      %v2250 = vld [vmem:[%s565 + $0x70] sm:$0xf]
      %v2251 = vld [vmem:[%s565 + $0x74] sm:$0xf]
      %v2252 = vld [vmem:[%s565 + $0x78] sm:$0xf]
      %v2253 = vld [vmem:[%s565 + $0x7c] sm:$0xf]
      %v2254 = vld [vmem:[%s565 + $0xb0] sm:$0xf]
      %v2255 = vld [vmem:[%s565 + $0xb4] sm:$0xf]
      %v2256 = vld [vmem:[%s565 + $0xb8] sm:$0xf]
      %v2257 = vld [vmem:[%s565 + $0xbc] sm:$0xf]
      %v2262 = vunpack.c.l.b16 %v2246
      %v2263 = vunpack.c.l.b16 %v2247
      %v2264 = vunpack.c.l.b16 %v2248
      %v2265 = vunpack.c.l.b16 %v2249
      %v2266 = vpack.c.b16 %v2263, %v2262
      %v2267 = vpack.c.b16 %v2265, %v2264
      %2270 = vrot.lane.b32.xlu0 %v1557, 104
      %v2271 = vpop.permute.xlu0 %2270
      %2273 = vmatpush.bf16.msra.mxu0 0
      %2274 = vmatpush.bf16.msra.mxu0 0
      %2275 = vmatpush.bf16.msra.mxu0 0
      %2276 = vmatpush.bf16.msra.mxu0 0
      %2277 = vmatpush.bf16.msra.mxu0 0
      %2278 = vmatpush.bf16.msra.mxu0 0
      %2279 = vmatpush.bf16.msra.mxu0 %v2267
      %2280 = vmatpush.bf16.msra.mxu0 %v2266
      %2281 = vmatmul.bf16.gmra.mxu0 %v1571
      %v2282 = vpop.f32.mrf.mxu0
      %v2283 = vadd.f32 %v2271, %v2282
      %v2284 = vpop.f32.mrf.mxu0
      %v2285 = vadd.f32 %v2271, %v2284
      %2286 = vdwg.mxu0
      %v2291 = vunpack.c.l.b16 %v2250
      %v2292 = vunpack.c.l.b16 %v2251
      %v2293 = vunpack.c.l.b16 %v2252
      %v2294 = vunpack.c.l.b16 %v2253
      %v2295 = vpack.c.b16 %v2292, %v2291
      %v2296 = vpack.c.b16 %v2294, %v2293
      %2299 = vrot.lane.b32.xlu0 %v1587, 104
      %v2300 = vpop.permute.xlu0 %2299
      %2302 = vmatpush.bf16.msra.mxu0 0
      %2303 = vmatpush.bf16.msra.mxu0 0
      %2304 = vmatpush.bf16.msra.mxu0 0
      %2305 = vmatpush.bf16.msra.mxu0 0
      %2306 = vmatpush.bf16.msra.mxu0 0
      %2307 = vmatpush.bf16.msra.mxu0 0
      %2308 = vmatpush.bf16.msra.mxu0 %v2296
      %2309 = vmatpush.bf16.msra.mxu0 %v2295
      %2310 = vmatmul.bf16.gmra.mxu0 %v1601
      %v2311 = vpop.f32.mrf.mxu0
      %v2312 = vadd.f32 %v2300, %v2311
      %v2313 = vpop.f32.mrf.mxu0
      %v2314 = vadd.f32 %v2300, %v2313
      %2315 = vmatmul.bf16.gmra.mxu0 %v1604
      %v2316 = vpop.f32.mrf.mxu0
      %v2317 = vadd.f32 %v2300, %v2316
      %v2318 = vpop.f32.mrf.mxu0
      %v2319 = vadd.f32 %v2300, %v2318
      %2320 = vdwg.mxu0
      %v2325 = vunpack.c.l.b16 %v2254
      %v2326 = vunpack.c.l.b16 %v2255
      %v2327 = vunpack.c.l.b16 %v2256
      %v2328 = vunpack.c.l.b16 %v2257
      %v2329 = vpack.c.b16 %v2326, %v2325
      %v2330 = vpack.c.b16 %v2328, %v2327
      %2333 = vrot.lane.b32.xlu0 %v1625, 104
      %v2334 = vpop.permute.xlu0 %2333
      %2336 = vmatpush.bf16.msra.mxu0 0
      %2337 = vmatpush.bf16.msra.mxu0 0
      %2338 = vmatpush.bf16.msra.mxu0 0
      %2339 = vmatpush.bf16.msra.mxu0 0
      %2340 = vmatpush.bf16.msra.mxu0 0
      %2341 = vmatpush.bf16.msra.mxu0 0
      %2342 = vmatpush.bf16.msra.mxu0 %v2330
      %2343 = vmatpush.bf16.msra.mxu0 %v2329
      %2344 = vmatmul.bf16.gmra.mxu0 %v1601
      %v2345 = vpop.f32.mrf.mxu0
      %v2346 = vadd.f32 %v2334, %v2345
      %v2347 = vpop.f32.mrf.mxu0
      %v2348 = vadd.f32 %v2334, %v2347
      %2349 = vmatmul.bf16.gmra.mxu0 %v1604
      %v2350 = vpop.f32.mrf.mxu0
      %v2351 = vadd.f32 %v2334, %v2350
      %v2352 = vpop.f32.mrf.mxu0
      %v2353 = vadd.f32 %v2334, %v2352
      %2354 = vdwg.mxu0
      %v2356 = vsel %vm704, %v2283, 0
      %v2359 = vsel %vm704, %v2285, 0
      %v2362 = vsel %vm704, %v2312, 0
      %v2365 = vsel %vm704, %v2314, 0
      %v2368 = vsel %vm704, %v2317, 0
      %v2371 = vsel %vm704, %v2319, 0
      %2373 = vmatpush.xpose.msra.mxu0 0.0
      %2374 = vmatpush.xpose.msra.mxu0 0.0
      %2375 = vmatpush.xpose.msra.mxu0 0.0
      %2376 = vmatpush.xpose.msra.mxu0 0.0
      %2377 = vmatpush.xpose.msra.mxu0 0.0
      %2378 = vmatpush.xpose.msra.mxu0 0.0
      %2379 = vmatpush.xpose.msra.mxu0 0.0
      %2380 = vmatpush.xpose.msra.mxu0 0.0
      %2381 = vmatpush.xpose.msra.mxu0 0.0
      %2382 = vmatpush.xpose.msra.mxu0 0.0
      %2383 = vmatpush.xpose.msra.mxu0 0.0
      %2384 = vmatpush.xpose.msra.mxu0 0.0
      %2385 = vmatpush.xpose.msra.mxu0 %v2371
      %2386 = vmatpush.xpose.msra.mxu0 %v2368
      %2387 = vmatpush.xpose.msra.mxu0 %v2365
      %2388 = vmatpush.xpose.msra.mxu0 %v2362
      %2389 = vmatmul.f32.gmra.mxu0 %v2356
      %v2390 = vpop.f32.mrf.mxu0
      %v2391 = vadd.f32 %v1540, %v2390
      %2392 = vmatmul.f32.gmra.mxu0 %v2359
      %v2393 = vpop.f32.mrf.mxu0
      %v2394 = vadd.f32 %v1541, %v2393
      %2395 = vdwg.mxu0
      %v2396 = vsel %vm632, %v2391, -inf
      %2397 = vmax.xlane.f32.xlu0 %v2396
      %v2398 = vpop.xlane.xlu0 %2397
      %v2399 = vsel %vm632, %v2394, -inf
      %2400 = vmax.xlane.f32.xlu0 %v2399
      %v2401 = vpop.xlane.xlu0 %2400
      %v2402 = vsub.f32 %v2391, %v2398
      %v2403 = vsub.f32 %v2394, %v2401
      %v2404 = vmul.f32 %v2402, 1.442695
      %v2405 = vpow.pop %v2404
      %v2406 = vmul.f32 %v2403, 1.442695
      %v2407 = vpow.pop %v2406
      %v2408 = vsel %vm632, %v2405, 0.0
      %2409 = vadd.xlane.f32.xlu0 %v2408
      %v2410 = vpop.xlane.xlu0 %2409
      %v2411 = vsel %vm632, %v2407, 0.0
      %2412 = vadd.xlane.f32.xlu0 %v2411
      %v2413 = vpop.xlane.xlu0 %2412
      %v2414 = vrcp.pop %v2410
      %v2415 = vrcp.pop %v2413
      %v2416 = vmul.f32 %v2405, %v2414
      %v2417 = vmul.f32 %v2407, %v2415
      %v2419 = vsel %vm632, %v2416, 0
      %v2422 = vsel %vm632, %v2417, 0
      %2424 = vmatpush.msra.mxu0 0.0
      %2425 = vmatpush.msra.mxu0 0.0
      %2426 = vmatpush.msra.mxu0 0.0
      %2427 = vmatpush.msra.mxu0 0.0
      %2428 = vmatpush.msra.mxu0 0.0
      %2429 = vmatpush.msra.mxu0 0.0
      %2430 = vmatpush.msra.mxu0 0.0
      %2431 = vmatpush.msra.mxu0 0.0
      %2432 = vmatpush.msra.mxu0 0.0
      %2433 = vmatpush.msra.mxu0 0.0
      %2434 = vmatpush.msra.mxu0 0.0
      %2435 = vmatpush.msra.mxu0 0.0
      %2436 = vmatpush.msra.mxu0 %v2353
      %2437 = vmatpush.msra.mxu0 %v2351
      %2438 = vmatpush.msra.mxu0 %v2348
      %2439 = vmatpush.msra.mxu0 %v2346
      %2440 = vmatmul.f32.gmra.mxu0 %v2419
      %v2441 = vpop.f32.mrf.mxu0
      %v2442 = vadd.f32 0.0, %v2441
      %2443 = vmatmul.f32.gmra.mxu0 %v2422
      %v2444 = vpop.f32.mrf.mxu0
      %v2445 = vadd.f32 0.0, %v2444
      %2446 = vdwg.mxu0
      %v2447 = vld [vmem:[%s570 + $0x18] sm:$0xff]
      %v2449 = vsel %vm704, %v2442, 0
      %v2452 = vsel %vm704, %v2445, 0
      %2454 = vmatpush.msra.mxu0 0.0
      %2455 = vmatpush.msra.mxu0 0.0
      %2456 = vmatpush.msra.mxu0 0.0
      %2457 = vmatpush.msra.mxu0 0.0
      %2458 = vmatpush.msra.mxu0 0.0
      %2459 = vmatpush.msra.mxu0 0.0
      %2460 = vmatpush.msra.mxu0 0.0
      %2461 = vmatpush.msra.mxu0 0.0
      %2462 = vmatpush.msra.mxu0 0.0
      %2463 = vmatpush.msra.mxu0 0.0
      %2464 = vmatpush.msra.mxu0 0.0
      %2465 = vmatpush.msra.mxu0 0.0
      %2466 = vmatpush.msra.mxu0 0.0
      %2467 = vmatpush.msra.mxu0 0.0
      %2468 = vmatpush.msra.mxu0 0.0
      %2469 = vmatpush.msra.mxu0 %v2447
      %2470 = vmatmul.f32.gmra.mxu0 %v2449
      %v2471 = vpop.f32.mrf.mxu0
      %v2472 = vadd.f32 0.0, %v2471
      %2473 = vmatmul.f32.gmra.mxu0 %v2452
      %v2474 = vpop.f32.mrf.mxu0
      %v2475 = vadd.f32 0.0, %v2474
      %2476 = vdwg.mxu0
      %v2477 = vadd.f32 %v2244, %v2472
      %v2478 = vadd.f32 %v2245, %v2475
      %v2479 = vperm.slane %v602, 7
      %v2480 = vadd.f32 %v2477, %v2479
      %v2481 = vadd.f32 %v2478, %v2479
      %v2482 = vadd.f32 %v1534, %v2480
      %v2483 = vadd.f32 %v1535, %v2481
      %v2484 = vsel %vm632, %v2482, 0.0
      %2485 = vadd.xlane.f32.xlu0 %v2484
      %v2486 = vpop.xlane.xlu0 %2485
      %v2487 = vsel %vm632, %v2483, 0.0
      %2488 = vadd.xlane.f32.xlu0 %v2487
      %v2489 = vpop.xlane.xlu0 %2488
      %v2490 = vmul.f32 %v2486, %v1491
      %v2491 = vmul.f32 %v2489, %v1491
      %v2492 = vsub.f32 %v2482, %v2490
      %v2493 = vsub.f32 %v2483, %v2491
      %v2494 = vmul.f32 %v2492, %v2492
      %v2495 = vmul.f32 %v2493, %v2493
      %v2496 = vsel %vm632, %v2494, 0.0
      %2497 = vadd.xlane.f32.xlu0 %v2496
      %v2498 = vpop.xlane.xlu0 %2497
      %v2499 = vsel %vm632, %v2495, 0.0
      %2500 = vadd.xlane.f32.xlu0 %v2499
      %v2501 = vpop.xlane.xlu0 %2500
      %v2502 = vmul.f32 %v2498, %v1491
      %v2503 = vmul.f32 %v2501, %v1491
      %v2504 = vadd.f32 %v2502, 1e-05
      %v2505 = vadd.f32 %v2503, 1e-05
      %v2506 = vrsqrt.pop %v2504
      %v2507 = vmul.f32 %v2506, %v2504
      %v2508 = vmul.f32 %v2507, %v2506
      %v2509 = vmul.f32 0.5, %v2508
      %v2510 = vsub.f32 1.5, %v2509
      %v2511 = vmul.f32 %v2506, %v2510
      %vm2512 = vweird.f32 %v2504
      %vm2513 = vweird.f32 %v2506
      %vm2514 = vmor %vm2512, %vm2513
      %v2515 = vsel %vm2514, %v2506, %v2511
      %v2516 = vrsqrt.pop %v2505
      %v2517 = vmul.f32 %v2516, %v2505
      %v2518 = vmul.f32 %v2517, %v2516
      %v2519 = vmul.f32 0.5, %v2518
      %v2520 = vsub.f32 1.5, %v2519
      %v2521 = vmul.f32 %v2516, %v2520
      %vm2522 = vweird.f32 %v2505
      %vm2523 = vweird.f32 %v2516
      %vm2524 = vmor %vm2522, %vm2523
      %v2525 = vsel %vm2524, %v2516, %v2521
      %v2526 = vmul.f32 %v2492, %v2515
      %v2527 = vmul.f32 %v2493, %v2525
      %v2528 = vperm.slane %v603, 3
      %v2529 = vmul.f32 %v2526, %v2528
      %v2530 = vmul.f32 %v2527, %v2528
      %v2531 = vperm.slane %v603, 4
      %v2532 = vadd.f32 %v2529, %v2531
      %v2533 = vadd.f32 %v2530, %v2531
      %v2534 = vpack.c.bf16 %v2533, %v2532
      %v2535 = vld [vmem:[%s575] sm:$0xff]
      %v2536 = vld [vmem:[%s575 + $0x8] sm:$0xff]
      %v2537 = vld [vmem:[%s575 + $0x40] sm:$0xff]
      %v2538 = vld [vmem:[%s575 + $0x48] sm:$0xff]
      %v2539 = vld [vmem:[%s575 + $0x80] sm:$0xff]
      %v2540 = vld [vmem:[%s575 + $0x88] sm:$0xff]
      %v2541 = vld [vmem:[%s575 + $0xc0] sm:$0xff]
      %v2542 = vld [vmem:[%s575 + $0xc8] sm:$0xff]
      %v2543 = vld [vmem:[%s579] sm:$0xf]
      %v2545 = vperm.slane %v2543, 0
      %v2546 = vperm.slane %v2543, 1
      %v2547 = vperm.slane %v2543, 2
      %v2548 = vperm.slane %v2543, 3
      %v2561 = vunpack.c.l.b16 %v2535
      %v2562 = vunpack.c.h.b16 %v2535
      %v2563 = vunpack.c.l.b16 %v2536
      %v2564 = vunpack.c.h.b16 %v2536
      %v2565 = vunpack.c.l.b16 %v2537
      %v2566 = vunpack.c.h.b16 %v2537
      %v2567 = vunpack.c.l.b16 %v2538
      %v2568 = vunpack.c.h.b16 %v2538
      %v2569 = vunpack.c.l.b16 %v2539
      %v2570 = vunpack.c.h.b16 %v2539
      %v2571 = vunpack.c.l.b16 %v2540
      %v2572 = vunpack.c.h.b16 %v2540
      %v2573 = vunpack.c.l.b16 %v2541
      %v2574 = vunpack.c.h.b16 %v2541
      %v2575 = vunpack.c.l.b16 %v2542
      %v2576 = vunpack.c.h.b16 %v2542
      %v2577 = vpack.c.b16 %v2565, %v2561
      %v2578 = vpack.c.b16 %v2566, %v2562
      %v2579 = vpack.c.b16 %v2567, %v2563
      %v2580 = vpack.c.b16 %v2568, %v2564
      %v2581 = vpack.c.b16 %v2573, %v2569
      %v2582 = vpack.c.b16 %v2574, %v2570
      %v2583 = vpack.c.b16 %v2575, %v2571
      %v2584 = vpack.c.b16 %v2576, %v2572
      %v2594 = vsel %vm632, %v2534, 0
      %2596 = vmatpush.bf16.msra.mxu0 0
      %2597 = vmatpush.bf16.msra.mxu0 0
      %2598 = vmatpush.bf16.msra.mxu0 0
      %2599 = vmatpush.bf16.msra.mxu0 0
      %2600 = vmatpush.bf16.msra.mxu0 0
      %2601 = vmatpush.bf16.msra.mxu0 0
      %2602 = vmatpush.bf16.msra.mxu0 %v2581
      %2603 = vmatpush.bf16.msra.mxu0 %v2577
      %2604 = vmatmul.bf16.gmra.mxu0 %v2594
      %v2605 = vpop.f32.mrf.mxu0
      %v2606 = vadd.f32 %v2545, %v2605
      %v2607 = vpop.f32.mrf.mxu0
      %v2608 = vadd.f32 %v2545, %v2607
      %2609 = vdwg.mxu0
      %2610 = vmatpush.bf16.msra.mxu0 0
      %2611 = vmatpush.bf16.msra.mxu0 0
      %2612 = vmatpush.bf16.msra.mxu0 0
      %2613 = vmatpush.bf16.msra.mxu0 0
      %2614 = vmatpush.bf16.msra.mxu0 0
      %2615 = vmatpush.bf16.msra.mxu0 0
      %2616 = vmatpush.bf16.msra.mxu0 %v2582
      %2617 = vmatpush.bf16.msra.mxu0 %v2578
      %2618 = vmatmul.bf16.gmra.mxu0 %v2594
      %v2619 = vpop.f32.mrf.mxu0
      %v2620 = vadd.f32 %v2546, %v2619
      %v2621 = vpop.f32.mrf.mxu0
      %v2622 = vadd.f32 %v2546, %v2621
      %2623 = vdwg.mxu0
      %2624 = vmatpush.bf16.msra.mxu0 0
      %2625 = vmatpush.bf16.msra.mxu0 0
      %2626 = vmatpush.bf16.msra.mxu0 0
      %2627 = vmatpush.bf16.msra.mxu0 0
      %2628 = vmatpush.bf16.msra.mxu0 0
      %2629 = vmatpush.bf16.msra.mxu0 0
      %2630 = vmatpush.bf16.msra.mxu0 %v2583
      %2631 = vmatpush.bf16.msra.mxu0 %v2579
      %2632 = vmatmul.bf16.gmra.mxu0 %v2594
      %v2633 = vpop.f32.mrf.mxu0
      %v2634 = vadd.f32 %v2547, %v2633
      %v2635 = vpop.f32.mrf.mxu0
      %v2636 = vadd.f32 %v2547, %v2635
      %2637 = vdwg.mxu0
      %2638 = vmatpush.bf16.msra.mxu0 0
      %2639 = vmatpush.bf16.msra.mxu0 0
      %2640 = vmatpush.bf16.msra.mxu0 0
      %2641 = vmatpush.bf16.msra.mxu0 0
      %2642 = vmatpush.bf16.msra.mxu0 0
      %2643 = vmatpush.bf16.msra.mxu0 0
      %2644 = vmatpush.bf16.msra.mxu0 %v2584
      %2645 = vmatpush.bf16.msra.mxu0 %v2580
      %2646 = vmatmul.bf16.gmra.mxu0 %v2594
      %v2647 = vpop.f32.mrf.mxu0
      %v2648 = vadd.f32 %v2548, %v2647
      %v2649 = vpop.f32.mrf.mxu0
      %v2650 = vadd.f32 %v2548, %v2649
      %2651 = vdwg.mxu0
      %v2652 = vmax.f32 %v2606, 0.0
      %v2653 = vmax.f32 %v2620, 0.0
      %v2654 = vmax.f32 %v2634, 0.0
      %v2655 = vmax.f32 %v2648, 0.0
      %v2656 = vmax.f32 %v2608, 0.0
      %v2657 = vmax.f32 %v2622, 0.0
      %v2658 = vmax.f32 %v2636, 0.0
      %v2659 = vmax.f32 %v2650, 0.0
      %v2660 = vpack.c.bf16 %v2656, %v2652
      %v2661 = vpack.c.bf16 %v2657, %v2653
      %v2662 = vpack.c.bf16 %v2658, %v2654
      %v2663 = vpack.c.bf16 %v2659, %v2655
      %v2664 = vld [vmem:[%s584] sm:$0xf]
      %v2665 = vld [vmem:[%s584 + $0x4] sm:$0xf]
      %v2666 = vld [vmem:[%s584 + $0x8] sm:$0xf]
      %v2667 = vld [vmem:[%s584 + $0xc] sm:$0xf]
      %v2668 = vld [vmem:[%s584 + $0x10] sm:$0xf]
      %v2669 = vld [vmem:[%s584 + $0x14] sm:$0xf]
      %v2670 = vld [vmem:[%s584 + $0x18] sm:$0xf]
      %v2671 = vld [vmem:[%s584 + $0x1c] sm:$0xf]
      %v2672 = vld [vmem:[%s584 + $0x20] sm:$0xf]
      %v2673 = vld [vmem:[%s584 + $0x24] sm:$0xf]
      %v2674 = vld [vmem:[%s584 + $0x28] sm:$0xf]
      %v2675 = vld [vmem:[%s584 + $0x2c] sm:$0xf]
      %v2676 = vld [vmem:[%s584 + $0x30] sm:$0xf]
      %v2677 = vld [vmem:[%s584 + $0x34] sm:$0xf]
      %v2678 = vld [vmem:[%s584 + $0x38] sm:$0xf]
      %v2679 = vld [vmem:[%s584 + $0x3c] sm:$0xf]
      %v2680 = vld [vmem:[%s584 + $0x40] sm:$0xf]
      %v2681 = vld [vmem:[%s584 + $0x44] sm:$0xf]
      %v2682 = vld [vmem:[%s584 + $0x48] sm:$0xf]
      %v2683 = vld [vmem:[%s584 + $0x4c] sm:$0xf]
      %v2684 = vld [vmem:[%s584 + $0x50] sm:$0xf]
      %v2685 = vld [vmem:[%s584 + $0x54] sm:$0xf]
      %v2686 = vld [vmem:[%s584 + $0x58] sm:$0xf]
      %v2687 = vld [vmem:[%s584 + $0x5c] sm:$0xf]
      %v2688 = vld [vmem:[%s584 + $0x60] sm:$0xf]
      %v2689 = vld [vmem:[%s584 + $0x64] sm:$0xf]
      %v2690 = vld [vmem:[%s584 + $0x68] sm:$0xf]
      %v2691 = vld [vmem:[%s584 + $0x6c] sm:$0xf]
      %v2692 = vld [vmem:[%s584 + $0x70] sm:$0xf]
      %v2693 = vld [vmem:[%s584 + $0x74] sm:$0xf]
      %v2694 = vld [vmem:[%s584 + $0x78] sm:$0xf]
      %v2695 = vld [vmem:[%s584 + $0x7c] sm:$0xf]
      %v2696 = vld [vmem:[%s584 + $0x80] sm:$0xf]
      %v2697 = vld [vmem:[%s584 + $0x84] sm:$0xf]
      %v2698 = vld [vmem:[%s584 + $0x88] sm:$0xf]
      %v2699 = vld [vmem:[%s584 + $0x8c] sm:$0xf]
      %v2700 = vld [vmem:[%s584 + $0x90] sm:$0xf]
      %v2701 = vld [vmem:[%s584 + $0x94] sm:$0xf]
      %v2702 = vld [vmem:[%s584 + $0x98] sm:$0xf]
      %v2703 = vld [vmem:[%s584 + $0x9c] sm:$0xf]
      %v2704 = vld [vmem:[%s584 + $0xa0] sm:$0xf]
      %v2705 = vld [vmem:[%s584 + $0xa4] sm:$0xf]
      %v2706 = vld [vmem:[%s584 + $0xa8] sm:$0xf]
      %v2707 = vld [vmem:[%s584 + $0xac] sm:$0xf]
      %v2708 = vld [vmem:[%s584 + $0xb0] sm:$0xf]
      %v2709 = vld [vmem:[%s584 + $0xb4] sm:$0xf]
      %v2710 = vld [vmem:[%s584 + $0xb8] sm:$0xf]
      %v2711 = vld [vmem:[%s584 + $0xbc] sm:$0xf]
      %v2712 = vld [vmem:[%s584 + $0xc0] sm:$0xf]
      %v2713 = vld [vmem:[%s584 + $0xc4] sm:$0xf]
      %v2714 = vld [vmem:[%s584 + $0xc8] sm:$0xf]
      %v2715 = vld [vmem:[%s584 + $0xcc] sm:$0xf]
      %v2716 = vld [vmem:[%s584 + $0xd0] sm:$0xf]
      %v2717 = vld [vmem:[%s584 + $0xd4] sm:$0xf]
      %v2718 = vld [vmem:[%s584 + $0xd8] sm:$0xf]
      %v2719 = vld [vmem:[%s584 + $0xdc] sm:$0xf]
      %v2720 = vld [vmem:[%s584 + $0xe0] sm:$0xf]
      %v2721 = vld [vmem:[%s584 + $0xe4] sm:$0xf]
      %v2722 = vld [vmem:[%s584 + $0xe8] sm:$0xf]
      %v2723 = vld [vmem:[%s584 + $0xec] sm:$0xf]
      %v2724 = vld [vmem:[%s584 + $0xf0] sm:$0xf]
      %v2725 = vld [vmem:[%s584 + $0xf4] sm:$0xf]
      %v2726 = vld [vmem:[%s584 + $0xf8] sm:$0xf]
      %v2727 = vld [vmem:[%s584 + $0xfc] sm:$0xf]
      %v2728 = vld [vmem:[%s575 + $0x10] sm:$0xff]
      %v2729 = vld [vmem:[%s575 + $0x18] sm:$0xff]
      %v2730 = vld [vmem:[%s575 + $0x50] sm:$0xff]
      %v2731 = vld [vmem:[%s575 + $0x58] sm:$0xff]
      %v2732 = vld [vmem:[%s575 + $0x90] sm:$0xff]
      %v2733 = vld [vmem:[%s575 + $0x98] sm:$0xff]
      %v2734 = vld [vmem:[%s575 + $0xd0] sm:$0xff]
      %v2735 = vld [vmem:[%s575 + $0xd8] sm:$0xff]
      %v2736 = vld [vmem:[%s579 + $0x4] sm:$0xf]
      %v2738 = vperm.slane %v2736, 0
      %v2739 = vperm.slane %v2736, 1
      %v2740 = vperm.slane %v2736, 2
      %v2741 = vperm.slane %v2736, 3
      %v2754 = vunpack.c.l.b16 %v2728
      %v2755 = vunpack.c.h.b16 %v2728
      %v2756 = vunpack.c.l.b16 %v2729
      %v2757 = vunpack.c.h.b16 %v2729
      %v2758 = vunpack.c.l.b16 %v2730
      %v2759 = vunpack.c.h.b16 %v2730
      %v2760 = vunpack.c.l.b16 %v2731
      %v2761 = vunpack.c.h.b16 %v2731
      %v2762 = vunpack.c.l.b16 %v2732
      %v2763 = vunpack.c.h.b16 %v2732
      %v2764 = vunpack.c.l.b16 %v2733
      %v2765 = vunpack.c.h.b16 %v2733
      %v2766 = vunpack.c.l.b16 %v2734
      %v2767 = vunpack.c.h.b16 %v2734
      %v2768 = vunpack.c.l.b16 %v2735
      %v2769 = vunpack.c.h.b16 %v2735
      %v2770 = vpack.c.b16 %v2758, %v2754
      %v2771 = vpack.c.b16 %v2759, %v2755
      %v2772 = vpack.c.b16 %v2760, %v2756
      %v2773 = vpack.c.b16 %v2761, %v2757
      %v2774 = vpack.c.b16 %v2766, %v2762
      %v2775 = vpack.c.b16 %v2767, %v2763
      %v2776 = vpack.c.b16 %v2768, %v2764
      %v2777 = vpack.c.b16 %v2769, %v2765
      %2786 = vmatpush.bf16.msra.mxu0 0
      %2787 = vmatpush.bf16.msra.mxu0 0
      %2788 = vmatpush.bf16.msra.mxu0 0
      %2789 = vmatpush.bf16.msra.mxu0 0
      %2790 = vmatpush.bf16.msra.mxu0 0
      %2791 = vmatpush.bf16.msra.mxu0 0
      %2792 = vmatpush.bf16.msra.mxu0 %v2774
      %2793 = vmatpush.bf16.msra.mxu0 %v2770
      %2794 = vmatmul.bf16.gmra.mxu0 %v2594
      %v2795 = vpop.f32.mrf.mxu0
      %v2796 = vadd.f32 %v2738, %v2795
      %v2797 = vpop.f32.mrf.mxu0
      %v2798 = vadd.f32 %v2738, %v2797
      %2799 = vdwg.mxu0
      %2800 = vmatpush.bf16.msra.mxu0 0
      %2801 = vmatpush.bf16.msra.mxu0 0
      %2802 = vmatpush.bf16.msra.mxu0 0
      %2803 = vmatpush.bf16.msra.mxu0 0
      %2804 = vmatpush.bf16.msra.mxu0 0
      %2805 = vmatpush.bf16.msra.mxu0 0
      %2806 = vmatpush.bf16.msra.mxu0 %v2775
      %2807 = vmatpush.bf16.msra.mxu0 %v2771
      %2808 = vmatmul.bf16.gmra.mxu0 %v2594
      %v2809 = vpop.f32.mrf.mxu0
      %v2810 = vadd.f32 %v2739, %v2809
      %v2811 = vpop.f32.mrf.mxu0
      %v2812 = vadd.f32 %v2739, %v2811
      %2813 = vdwg.mxu0
      %2814 = vmatpush.bf16.msra.mxu0 0
      %2815 = vmatpush.bf16.msra.mxu0 0
      %2816 = vmatpush.bf16.msra.mxu0 0
      %2817 = vmatpush.bf16.msra.mxu0 0
      %2818 = vmatpush.bf16.msra.mxu0 0
      %2819 = vmatpush.bf16.msra.mxu0 0
      %2820 = vmatpush.bf16.msra.mxu0 %v2776
      %2821 = vmatpush.bf16.msra.mxu0 %v2772
      %2822 = vmatmul.bf16.gmra.mxu0 %v2594
      %v2823 = vpop.f32.mrf.mxu0
      %v2824 = vadd.f32 %v2740, %v2823
      %v2825 = vpop.f32.mrf.mxu0
      %v2826 = vadd.f32 %v2740, %v2825
      %2827 = vdwg.mxu0
      %2828 = vmatpush.bf16.msra.mxu0 0
      %2829 = vmatpush.bf16.msra.mxu0 0
      %2830 = vmatpush.bf16.msra.mxu0 0
      %2831 = vmatpush.bf16.msra.mxu0 0
      %2832 = vmatpush.bf16.msra.mxu0 0
      %2833 = vmatpush.bf16.msra.mxu0 0
      %2834 = vmatpush.bf16.msra.mxu0 %v2777
      %2835 = vmatpush.bf16.msra.mxu0 %v2773
      %2836 = vmatmul.bf16.gmra.mxu0 %v2594
      %v2837 = vpop.f32.mrf.mxu0
      %v2838 = vadd.f32 %v2741, %v2837
      %v2839 = vpop.f32.mrf.mxu0
      %v2840 = vadd.f32 %v2741, %v2839
      %2841 = vdwg.mxu0
      %v2842 = vmax.f32 %v2796, 0.0
      %v2843 = vmax.f32 %v2810, 0.0
      %v2844 = vmax.f32 %v2824, 0.0
      %v2845 = vmax.f32 %v2838, 0.0
      %v2846 = vmax.f32 %v2798, 0.0
      %v2847 = vmax.f32 %v2812, 0.0
      %v2848 = vmax.f32 %v2826, 0.0
      %v2849 = vmax.f32 %v2840, 0.0
      %v2850 = vpack.c.bf16 %v2846, %v2842
      %v2851 = vpack.c.bf16 %v2847, %v2843
      %v2852 = vpack.c.bf16 %v2848, %v2844
      %v2853 = vpack.c.bf16 %v2849, %v2845
      %v2854 = vld [vmem:[%s584 + $0x100] sm:$0xf]
      %v2855 = vld [vmem:[%s584 + $0x104] sm:$0xf]
      %v2856 = vld [vmem:[%s584 + $0x108] sm:$0xf]
      %v2857 = vld [vmem:[%s584 + $0x10c] sm:$0xf]
      %v2858 = vld [vmem:[%s584 + $0x110] sm:$0xf]
      %v2859 = vld [vmem:[%s584 + $0x114] sm:$0xf]
      %v2860 = vld [vmem:[%s584 + $0x118] sm:$0xf]
      %v2861 = vld [vmem:[%s584 + $0x11c] sm:$0xf]
      %v2862 = vld [vmem:[%s584 + $0x120] sm:$0xf]
      %v2863 = vld [vmem:[%s584 + $0x124] sm:$0xf]
      %v2864 = vld [vmem:[%s584 + $0x128] sm:$0xf]
      %v2865 = vld [vmem:[%s584 + $0x12c] sm:$0xf]
      %v2866 = vld [vmem:[%s584 + $0x130] sm:$0xf]
      %v2867 = vld [vmem:[%s584 + $0x134] sm:$0xf]
      %v2868 = vld [vmem:[%s584 + $0x138] sm:$0xf]
      %v2869 = vld [vmem:[%s584 + $0x13c] sm:$0xf]
      %v2870 = vld [vmem:[%s584 + $0x140] sm:$0xf]
      %v2871 = vld [vmem:[%s584 + $0x144] sm:$0xf]
      %v2872 = vld [vmem:[%s584 + $0x148] sm:$0xf]
      %v2873 = vld [vmem:[%s584 + $0x14c] sm:$0xf]
      %v2874 = vld [vmem:[%s584 + $0x150] sm:$0xf]
      %v2875 = vld [vmem:[%s584 + $0x154] sm:$0xf]
      %v2876 = vld [vmem:[%s584 + $0x158] sm:$0xf]
      %v2877 = vld [vmem:[%s584 + $0x15c] sm:$0xf]
      %v2878 = vld [vmem:[%s584 + $0x160] sm:$0xf]
      %v2879 = vld [vmem:[%s584 + $0x164] sm:$0xf]
      %v2880 = vld [vmem:[%s584 + $0x168] sm:$0xf]
      %v2881 = vld [vmem:[%s584 + $0x16c] sm:$0xf]
      %v2882 = vld [vmem:[%s584 + $0x170] sm:$0xf]
      %v2883 = vld [vmem:[%s584 + $0x174] sm:$0xf]
      %v2884 = vld [vmem:[%s584 + $0x178] sm:$0xf]
      %v2885 = vld [vmem:[%s584 + $0x17c] sm:$0xf]
      %v2886 = vld [vmem:[%s584 + $0x180] sm:$0xf]
      %v2887 = vld [vmem:[%s584 + $0x184] sm:$0xf]
      %v2888 = vld [vmem:[%s584 + $0x188] sm:$0xf]
      %v2889 = vld [vmem:[%s584 + $0x18c] sm:$0xf]
      %v2890 = vld [vmem:[%s584 + $0x190] sm:$0xf]
      %v2891 = vld [vmem:[%s584 + $0x194] sm:$0xf]
      %v2892 = vld [vmem:[%s584 + $0x198] sm:$0xf]
      %v2893 = vld [vmem:[%s584 + $0x19c] sm:$0xf]
      %v2894 = vld [vmem:[%s584 + $0x1a0] sm:$0xf]
      %v2895 = vld [vmem:[%s584 + $0x1a4] sm:$0xf]
      %v2896 = vld [vmem:[%s584 + $0x1a8] sm:$0xf]
      %v2897 = vld [vmem:[%s584 + $0x1ac] sm:$0xf]
      %v2898 = vld [vmem:[%s584 + $0x1b0] sm:$0xf]
      %v2899 = vld [vmem:[%s584 + $0x1b4] sm:$0xf]
      %v2900 = vld [vmem:[%s584 + $0x1b8] sm:$0xf]
      %v2901 = vld [vmem:[%s584 + $0x1bc] sm:$0xf]
      %v2902 = vld [vmem:[%s584 + $0x1c0] sm:$0xf]
      %v2903 = vld [vmem:[%s584 + $0x1c4] sm:$0xf]
      %v2904 = vld [vmem:[%s584 + $0x1c8] sm:$0xf]
      %v2905 = vld [vmem:[%s584 + $0x1cc] sm:$0xf]
      %v2906 = vld [vmem:[%s584 + $0x1d0] sm:$0xf]
      %v2907 = vld [vmem:[%s584 + $0x1d4] sm:$0xf]
      %v2908 = vld [vmem:[%s584 + $0x1d8] sm:$0xf]
      %v2909 = vld [vmem:[%s584 + $0x1dc] sm:$0xf]
      %v2910 = vld [vmem:[%s584 + $0x1e0] sm:$0xf]
      %v2911 = vld [vmem:[%s584 + $0x1e4] sm:$0xf]
      %v2912 = vld [vmem:[%s584 + $0x1e8] sm:$0xf]
      %v2913 = vld [vmem:[%s584 + $0x1ec] sm:$0xf]
      %v2914 = vld [vmem:[%s584 + $0x1f0] sm:$0xf]
      %v2915 = vld [vmem:[%s584 + $0x1f4] sm:$0xf]
      %v2916 = vld [vmem:[%s584 + $0x1f8] sm:$0xf]
      %v2917 = vld [vmem:[%s584 + $0x1fc] sm:$0xf]
      %v2982 = vunpack.c.l.b16 %v2854
      %v2983 = vunpack.c.l.b16 %v2855
      %v2984 = vunpack.c.l.b16 %v2856
      %v2985 = vunpack.c.l.b16 %v2857
      %v2986 = vunpack.c.l.b16 %v2858
      %v2987 = vunpack.c.l.b16 %v2859
      %v2988 = vunpack.c.l.b16 %v2860
      %v2989 = vunpack.c.l.b16 %v2861
      %v2990 = vunpack.c.l.b16 %v2862
      %v2991 = vunpack.c.l.b16 %v2863
      %v2992 = vunpack.c.l.b16 %v2864
      %v2993 = vunpack.c.l.b16 %v2865
      %v2994 = vunpack.c.l.b16 %v2866
      %v2995 = vunpack.c.l.b16 %v2867
      %v2996 = vunpack.c.l.b16 %v2868
      %v2997 = vunpack.c.l.b16 %v2869
      %v2998 = vunpack.c.l.b16 %v2870
      %v2999 = vunpack.c.l.b16 %v2871
      %v3000 = vunpack.c.l.b16 %v2872
      %v3001 = vunpack.c.l.b16 %v2873
      %v3002 = vunpack.c.l.b16 %v2874
      %v3003 = vunpack.c.l.b16 %v2875
      %v3004 = vunpack.c.l.b16 %v2876
      %v3005 = vunpack.c.l.b16 %v2877
      %v3006 = vunpack.c.l.b16 %v2878
      %v3007 = vunpack.c.l.b16 %v2879
      %v3008 = vunpack.c.l.b16 %v2880
      %v3009 = vunpack.c.l.b16 %v2881
      %v3010 = vunpack.c.l.b16 %v2882
      %v3011 = vunpack.c.l.b16 %v2883
      %v3012 = vunpack.c.l.b16 %v2884
      %v3013 = vunpack.c.l.b16 %v2885
      %v3014 = vunpack.c.l.b16 %v2886
      %v3015 = vunpack.c.l.b16 %v2887
      %v3016 = vunpack.c.l.b16 %v2888
      %v3017 = vunpack.c.l.b16 %v2889
      %v3018 = vunpack.c.l.b16 %v2890
      %v3019 = vunpack.c.l.b16 %v2891
      %v3020 = vunpack.c.l.b16 %v2892
      %v3021 = vunpack.c.l.b16 %v2893
      %v3022 = vunpack.c.l.b16 %v2894
      %v3023 = vunpack.c.l.b16 %v2895
      %v3024 = vunpack.c.l.b16 %v2896
      %v3025 = vunpack.c.l.b16 %v2897
      %v3026 = vunpack.c.l.b16 %v2898
      %v3027 = vunpack.c.l.b16 %v2899
      %v3028 = vunpack.c.l.b16 %v2900
      %v3029 = vunpack.c.l.b16 %v2901
      %v3030 = vunpack.c.l.b16 %v2902
      %v3031 = vunpack.c.l.b16 %v2903
      %v3032 = vunpack.c.l.b16 %v2904
      %v3033 = vunpack.c.l.b16 %v2905
      %v3034 = vunpack.c.l.b16 %v2906
      %v3035 = vunpack.c.l.b16 %v2907
      %v3036 = vunpack.c.l.b16 %v2908
      %v3037 = vunpack.c.l.b16 %v2909
      %v3038 = vunpack.c.l.b16 %v2910
      %v3039 = vunpack.c.l.b16 %v2911
      %v3040 = vunpack.c.l.b16 %v2912
      %v3041 = vunpack.c.l.b16 %v2913
      %v3042 = vunpack.c.l.b16 %v2914
      %v3043 = vunpack.c.l.b16 %v2915
      %v3044 = vunpack.c.l.b16 %v2916
      %v3045 = vunpack.c.l.b16 %v2917
      %v3046 = vpack.c.b16 %v2983, %v2982
      %v3047 = vpack.c.b16 %v2985, %v2984
      %v3048 = vpack.c.b16 %v2987, %v2986
      %v3049 = vpack.c.b16 %v2989, %v2988
      %v3050 = vpack.c.b16 %v2991, %v2990
      %v3051 = vpack.c.b16 %v2993, %v2992
      %v3052 = vpack.c.b16 %v2995, %v2994
      %v3053 = vpack.c.b16 %v2997, %v2996
      %v3054 = vpack.c.b16 %v2999, %v2998
      %v3055 = vpack.c.b16 %v3001, %v3000
      %v3056 = vpack.c.b16 %v3003, %v3002
      %v3057 = vpack.c.b16 %v3005, %v3004
      %v3058 = vpack.c.b16 %v3007, %v3006
      %v3059 = vpack.c.b16 %v3009, %v3008
      %v3060 = vpack.c.b16 %v3011, %v3010
      %v3061 = vpack.c.b16 %v3013, %v3012
      %v3062 = vpack.c.b16 %v3015, %v3014
      %v3063 = vpack.c.b16 %v3017, %v3016
      %v3064 = vpack.c.b16 %v3019, %v3018
      %v3065 = vpack.c.b16 %v3021, %v3020
      %v3066 = vpack.c.b16 %v3023, %v3022
      %v3067 = vpack.c.b16 %v3025, %v3024
      %v3068 = vpack.c.b16 %v3027, %v3026
      %v3069 = vpack.c.b16 %v3029, %v3028
      %v3070 = vpack.c.b16 %v3031, %v3030
      %v3071 = vpack.c.b16 %v3033, %v3032
      %v3072 = vpack.c.b16 %v3035, %v3034
      %v3073 = vpack.c.b16 %v3037, %v3036
      %v3074 = vpack.c.b16 %v3039, %v3038
      %v3075 = vpack.c.b16 %v3041, %v3040
      %v3076 = vpack.c.b16 %v3043, %v3042
      %v3077 = vpack.c.b16 %v3045, %v3044
      %3110 = vmatpush.bf16.msra.mxu0 %v3053
      %3111 = vmatpush.bf16.msra.mxu0 %v3052
      %3112 = vmatpush.bf16.msra.mxu0 %v3051
      %3113 = vmatpush.bf16.msra.mxu0 %v3050
      %3114 = vmatpush.bf16.msra.mxu0 %v3049
      %3115 = vmatpush.bf16.msra.mxu0 %v3048
      %3116 = vmatpush.bf16.msra.mxu0 %v3047
      %3117 = vmatpush.bf16.msra.mxu0 %v3046
      %3118 = vmatmul.bf16.gmra.mxu0 %v2850
      %v3119 = vpop.f32.mrf.mxu0
      %v3120 = vadd.f32 0.0, %v3119
      %v3121 = vpop.f32.mrf.mxu0
      %v3122 = vadd.f32 0.0, %v3121
      %3123 = vdwg.mxu0
      %3124 = vmatpush.bf16.msra.mxu0 %v3061
      %3125 = vmatpush.bf16.msra.mxu0 %v3060
      %3126 = vmatpush.bf16.msra.mxu0 %v3059
      %3127 = vmatpush.bf16.msra.mxu0 %v3058
      %3128 = vmatpush.bf16.msra.mxu0 %v3057
      %3129 = vmatpush.bf16.msra.mxu0 %v3056
      %3130 = vmatpush.bf16.msra.mxu0 %v3055
      %3131 = vmatpush.bf16.msra.mxu0 %v3054
      %3132 = vmatmul.bf16.gmra.mxu0 %v2851
      %v3133 = vpop.f32.mrf.mxu0
      %v3134 = vadd.f32 %v3120, %v3133
      %v3135 = vpop.f32.mrf.mxu0
      %v3136 = vadd.f32 %v3122, %v3135
      %3137 = vdwg.mxu0
      %3138 = vmatpush.bf16.msra.mxu0 %v3069
      %3139 = vmatpush.bf16.msra.mxu0 %v3068
      %3140 = vmatpush.bf16.msra.mxu0 %v3067
      %3141 = vmatpush.bf16.msra.mxu0 %v3066
      %3142 = vmatpush.bf16.msra.mxu0 %v3065
      %3143 = vmatpush.bf16.msra.mxu0 %v3064
      %3144 = vmatpush.bf16.msra.mxu0 %v3063
      %3145 = vmatpush.bf16.msra.mxu0 %v3062
      %3146 = vmatmul.bf16.gmra.mxu0 %v2852
      %v3147 = vpop.f32.mrf.mxu0
      %v3148 = vadd.f32 %v3134, %v3147
      %v3149 = vpop.f32.mrf.mxu0
      %v3150 = vadd.f32 %v3136, %v3149
      %3151 = vdwg.mxu0
      %3152 = vmatpush.bf16.msra.mxu0 %v3077
      %3153 = vmatpush.bf16.msra.mxu0 %v3076
      %3154 = vmatpush.bf16.msra.mxu0 %v3075
      %3155 = vmatpush.bf16.msra.mxu0 %v3074
      %3156 = vmatpush.bf16.msra.mxu0 %v3073
      %3157 = vmatpush.bf16.msra.mxu0 %v3072
      %3158 = vmatpush.bf16.msra.mxu0 %v3071
      %3159 = vmatpush.bf16.msra.mxu0 %v3070
      %3160 = vmatmul.bf16.gmra.mxu0 %v2853
      %v3161 = vpop.f32.mrf.mxu0
      %v3162 = vadd.f32 %v3148, %v3161
      %v3163 = vpop.f32.mrf.mxu0
      %v3164 = vadd.f32 %v3150, %v3163
      %3165 = vdwg.mxu0
      %v3230 = vunpack.c.l.b16 %v2664
      %v3231 = vunpack.c.l.b16 %v2665
      %v3232 = vunpack.c.l.b16 %v2666
      %v3233 = vunpack.c.l.b16 %v2667
      %v3234 = vunpack.c.l.b16 %v2668
      %v3235 = vunpack.c.l.b16 %v2669
      %v3236 = vunpack.c.l.b16 %v2670
      %v3237 = vunpack.c.l.b16 %v2671
      %v3238 = vunpack.c.l.b16 %v2672
      %v3239 = vunpack.c.l.b16 %v2673
      %v3240 = vunpack.c.l.b16 %v2674
      %v3241 = vunpack.c.l.b16 %v2675
      %v3242 = vunpack.c.l.b16 %v2676
      %v3243 = vunpack.c.l.b16 %v2677
      %v3244 = vunpack.c.l.b16 %v2678
      %v3245 = vunpack.c.l.b16 %v2679
      %v3246 = vunpack.c.l.b16 %v2680
      %v3247 = vunpack.c.l.b16 %v2681
      %v3248 = vunpack.c.l.b16 %v2682
      %v3249 = vunpack.c.l.b16 %v2683
      %v3250 = vunpack.c.l.b16 %v2684
      %v3251 = vunpack.c.l.b16 %v2685
      %v3252 = vunpack.c.l.b16 %v2686
      %v3253 = vunpack.c.l.b16 %v2687
      %v3254 = vunpack.c.l.b16 %v2688
      %v3255 = vunpack.c.l.b16 %v2689
      %v3256 = vunpack.c.l.b16 %v2690
      %v3257 = vunpack.c.l.b16 %v2691
      %v3258 = vunpack.c.l.b16 %v2692
      %v3259 = vunpack.c.l.b16 %v2693
      %v3260 = vunpack.c.l.b16 %v2694
      %v3261 = vunpack.c.l.b16 %v2695
      %v3262 = vunpack.c.l.b16 %v2696
      %v3263 = vunpack.c.l.b16 %v2697
      %v3264 = vunpack.c.l.b16 %v2698
      %v3265 = vunpack.c.l.b16 %v2699
      %v3266 = vunpack.c.l.b16 %v2700
      %v3267 = vunpack.c.l.b16 %v2701
      %v3268 = vunpack.c.l.b16 %v2702
      %v3269 = vunpack.c.l.b16 %v2703
      %v3270 = vunpack.c.l.b16 %v2704
      %v3271 = vunpack.c.l.b16 %v2705
      %v3272 = vunpack.c.l.b16 %v2706
      %v3273 = vunpack.c.l.b16 %v2707
      %v3274 = vunpack.c.l.b16 %v2708
      %v3275 = vunpack.c.l.b16 %v2709
      %v3276 = vunpack.c.l.b16 %v2710
      %v3277 = vunpack.c.l.b16 %v2711
      %v3278 = vunpack.c.l.b16 %v2712
      %v3279 = vunpack.c.l.b16 %v2713
      %v3280 = vunpack.c.l.b16 %v2714
      %v3281 = vunpack.c.l.b16 %v2715
      %v3282 = vunpack.c.l.b16 %v2716
      %v3283 = vunpack.c.l.b16 %v2717
      %v3284 = vunpack.c.l.b16 %v2718
      %v3285 = vunpack.c.l.b16 %v2719
      %v3286 = vunpack.c.l.b16 %v2720
      %v3287 = vunpack.c.l.b16 %v2721
      %v3288 = vunpack.c.l.b16 %v2722
      %v3289 = vunpack.c.l.b16 %v2723
      %v3290 = vunpack.c.l.b16 %v2724
      %v3291 = vunpack.c.l.b16 %v2725
      %v3292 = vunpack.c.l.b16 %v2726
      %v3293 = vunpack.c.l.b16 %v2727
      %v3294 = vpack.c.b16 %v3231, %v3230
      %v3295 = vpack.c.b16 %v3233, %v3232
      %v3296 = vpack.c.b16 %v3235, %v3234
      %v3297 = vpack.c.b16 %v3237, %v3236
      %v3298 = vpack.c.b16 %v3239, %v3238
      %v3299 = vpack.c.b16 %v3241, %v3240
      %v3300 = vpack.c.b16 %v3243, %v3242
      %v3301 = vpack.c.b16 %v3245, %v3244
      %v3302 = vpack.c.b16 %v3247, %v3246
      %v3303 = vpack.c.b16 %v3249, %v3248
      %v3304 = vpack.c.b16 %v3251, %v3250
      %v3305 = vpack.c.b16 %v3253, %v3252
      %v3306 = vpack.c.b16 %v3255, %v3254
      %v3307 = vpack.c.b16 %v3257, %v3256
      %v3308 = vpack.c.b16 %v3259, %v3258
      %v3309 = vpack.c.b16 %v3261, %v3260
      %v3310 = vpack.c.b16 %v3263, %v3262
      %v3311 = vpack.c.b16 %v3265, %v3264
      %v3312 = vpack.c.b16 %v3267, %v3266
      %v3313 = vpack.c.b16 %v3269, %v3268
      %v3314 = vpack.c.b16 %v3271, %v3270
      %v3315 = vpack.c.b16 %v3273, %v3272
      %v3316 = vpack.c.b16 %v3275, %v3274
      %v3317 = vpack.c.b16 %v3277, %v3276
      %v3318 = vpack.c.b16 %v3279, %v3278
      %v3319 = vpack.c.b16 %v3281, %v3280
      %v3320 = vpack.c.b16 %v3283, %v3282
      %v3321 = vpack.c.b16 %v3285, %v3284
      %v3322 = vpack.c.b16 %v3287, %v3286
      %v3323 = vpack.c.b16 %v3289, %v3288
      %v3324 = vpack.c.b16 %v3291, %v3290
      %v3325 = vpack.c.b16 %v3293, %v3292
      %3358 = vmatpush.bf16.msra.mxu0 %v3301
      %3359 = vmatpush.bf16.msra.mxu0 %v3300
      %3360 = vmatpush.bf16.msra.mxu0 %v3299
      %3361 = vmatpush.bf16.msra.mxu0 %v3298
      %3362 = vmatpush.bf16.msra.mxu0 %v3297
      %3363 = vmatpush.bf16.msra.mxu0 %v3296
      %3364 = vmatpush.bf16.msra.mxu0 %v3295
      %3365 = vmatpush.bf16.msra.mxu0 %v3294
      %3366 = vmatmul.bf16.gmra.mxu0 %v2660
      %v3367 = vpop.f32.mrf.mxu0
      %v3368 = vadd.f32 %v3162, %v3367
      %v3369 = vpop.f32.mrf.mxu0
      %v3370 = vadd.f32 %v3164, %v3369
      %3371 = vdwg.mxu0
      %3372 = vmatpush.bf16.msra.mxu0 %v3309
      %3373 = vmatpush.bf16.msra.mxu0 %v3308
      %3374 = vmatpush.bf16.msra.mxu0 %v3307
      %3375 = vmatpush.bf16.msra.mxu0 %v3306
      %3376 = vmatpush.bf16.msra.mxu0 %v3305
      %3377 = vmatpush.bf16.msra.mxu0 %v3304
      %3378 = vmatpush.bf16.msra.mxu0 %v3303
      %3379 = vmatpush.bf16.msra.mxu0 %v3302
      %3380 = vmatmul.bf16.gmra.mxu0 %v2661
      %v3381 = vpop.f32.mrf.mxu0
      %v3382 = vadd.f32 %v3368, %v3381
      %v3383 = vpop.f32.mrf.mxu0
      %v3384 = vadd.f32 %v3370, %v3383
      %3385 = vdwg.mxu0
      %3386 = vmatpush.bf16.msra.mxu0 %v3317
      %3387 = vmatpush.bf16.msra.mxu0 %v3316
      %3388 = vmatpush.bf16.msra.mxu0 %v3315
      %3389 = vmatpush.bf16.msra.mxu0 %v3314
      %3390 = vmatpush.bf16.msra.mxu0 %v3313
      %3391 = vmatpush.bf16.msra.mxu0 %v3312
      %3392 = vmatpush.bf16.msra.mxu0 %v3311
      %3393 = vmatpush.bf16.msra.mxu0 %v3310
      %3394 = vmatmul.bf16.gmra.mxu0 %v2662
      %v3395 = vpop.f32.mrf.mxu0
      %v3396 = vadd.f32 %v3382, %v3395
      %v3397 = vpop.f32.mrf.mxu0
      %v3398 = vadd.f32 %v3384, %v3397
      %3399 = vdwg.mxu0
      %3400 = vmatpush.bf16.msra.mxu0 %v3325
      %3401 = vmatpush.bf16.msra.mxu0 %v3324
      %3402 = vmatpush.bf16.msra.mxu0 %v3323
      %3403 = vmatpush.bf16.msra.mxu0 %v3322
      %3404 = vmatpush.bf16.msra.mxu0 %v3321
      %3405 = vmatpush.bf16.msra.mxu0 %v3320
      %3406 = vmatpush.bf16.msra.mxu0 %v3319
      %3407 = vmatpush.bf16.msra.mxu0 %v3318
      %3408 = vmatmul.bf16.gmra.mxu0 %v2663
      %v3409 = vpop.f32.mrf.mxu0
      %v3410 = vadd.f32 %v3396, %v3409
      %v3411 = vpop.f32.mrf.mxu0
      %v3412 = vadd.f32 %v3398, %v3411
      %3413 = vdwg.mxu0
      %v3414 = vld [vmem:[%s575 + $0x20] sm:$0xff]
      %v3415 = vld [vmem:[%s575 + $0x28] sm:$0xff]
      %v3416 = vld [vmem:[%s575 + $0x60] sm:$0xff]
      %v3417 = vld [vmem:[%s575 + $0x68] sm:$0xff]
      %v3418 = vld [vmem:[%s575 + $0xa0] sm:$0xff]
      %v3419 = vld [vmem:[%s575 + $0xa8] sm:$0xff]
      %v3420 = vld [vmem:[%s575 + $0xe0] sm:$0xff]
      %v3421 = vld [vmem:[%s575 + $0xe8] sm:$0xff]
      %v3422 = vld [vmem:[%s579 + $0x8] sm:$0xf]
      %v3424 = vperm.slane %v3422, 0
      %v3425 = vperm.slane %v3422, 1
      %v3426 = vperm.slane %v3422, 2
      %v3427 = vperm.slane %v3422, 3
      %v3440 = vunpack.c.l.b16 %v3414
      %v3441 = vunpack.c.h.b16 %v3414
      %v3442 = vunpack.c.l.b16 %v3415
      %v3443 = vunpack.c.h.b16 %v3415
      %v3444 = vunpack.c.l.b16 %v3416
      %v3445 = vunpack.c.h.b16 %v3416
      %v3446 = vunpack.c.l.b16 %v3417
      %v3447 = vunpack.c.h.b16 %v3417
      %v3448 = vunpack.c.l.b16 %v3418
      %v3449 = vunpack.c.h.b16 %v3418
      %v3450 = vunpack.c.l.b16 %v3419
      %v3451 = vunpack.c.h.b16 %v3419
      %v3452 = vunpack.c.l.b16 %v3420
      %v3453 = vunpack.c.h.b16 %v3420
      %v3454 = vunpack.c.l.b16 %v3421
      %v3455 = vunpack.c.h.b16 %v3421
      %v3456 = vpack.c.b16 %v3444, %v3440
      %v3457 = vpack.c.b16 %v3445, %v3441
      %v3458 = vpack.c.b16 %v3446, %v3442
      %v3459 = vpack.c.b16 %v3447, %v3443
      %v3460 = vpack.c.b16 %v3452, %v3448
      %v3461 = vpack.c.b16 %v3453, %v3449
      %v3462 = vpack.c.b16 %v3454, %v3450
      %v3463 = vpack.c.b16 %v3455, %v3451
      %3472 = vmatpush.bf16.msra.mxu0 0
      %3473 = vmatpush.bf16.msra.mxu0 0
      %3474 = vmatpush.bf16.msra.mxu0 0
      %3475 = vmatpush.bf16.msra.mxu0 0
      %3476 = vmatpush.bf16.msra.mxu0 0
      %3477 = vmatpush.bf16.msra.mxu0 0
      %3478 = vmatpush.bf16.msra.mxu0 %v3460
      %3479 = vmatpush.bf16.msra.mxu0 %v3456
      %3480 = vmatmul.bf16.gmra.mxu0 %v2594
      %v3481 = vpop.f32.mrf.mxu0
      %v3482 = vadd.f32 %v3424, %v3481
      %v3483 = vpop.f32.mrf.mxu0
      %v3484 = vadd.f32 %v3424, %v3483
      %3485 = vdwg.mxu0
      %3486 = vmatpush.bf16.msra.mxu0 0
      %3487 = vmatpush.bf16.msra.mxu0 0
      %3488 = vmatpush.bf16.msra.mxu0 0
      %3489 = vmatpush.bf16.msra.mxu0 0
      %3490 = vmatpush.bf16.msra.mxu0 0
      %3491 = vmatpush.bf16.msra.mxu0 0
      %3492 = vmatpush.bf16.msra.mxu0 %v3461
      %3493 = vmatpush.bf16.msra.mxu0 %v3457
      %3494 = vmatmul.bf16.gmra.mxu0 %v2594
      %v3495 = vpop.f32.mrf.mxu0
      %v3496 = vadd.f32 %v3425, %v3495
      %v3497 = vpop.f32.mrf.mxu0
      %v3498 = vadd.f32 %v3425, %v3497
      %3499 = vdwg.mxu0
      %3500 = vmatpush.bf16.msra.mxu0 0
      %3501 = vmatpush.bf16.msra.mxu0 0
      %3502 = vmatpush.bf16.msra.mxu0 0
      %3503 = vmatpush.bf16.msra.mxu0 0
      %3504 = vmatpush.bf16.msra.mxu0 0
      %3505 = vmatpush.bf16.msra.mxu0 0
      %3506 = vmatpush.bf16.msra.mxu0 %v3462
      %3507 = vmatpush.bf16.msra.mxu0 %v3458
      %3508 = vmatmul.bf16.gmra.mxu0 %v2594
      %v3509 = vpop.f32.mrf.mxu0
      %v3510 = vadd.f32 %v3426, %v3509
      %v3511 = vpop.f32.mrf.mxu0
      %v3512 = vadd.f32 %v3426, %v3511
      %3513 = vdwg.mxu0
      %3514 = vmatpush.bf16.msra.mxu0 0
      %3515 = vmatpush.bf16.msra.mxu0 0
      %3516 = vmatpush.bf16.msra.mxu0 0
      %3517 = vmatpush.bf16.msra.mxu0 0
      %3518 = vmatpush.bf16.msra.mxu0 0
      %3519 = vmatpush.bf16.msra.mxu0 0
      %3520 = vmatpush.bf16.msra.mxu0 %v3463
      %3521 = vmatpush.bf16.msra.mxu0 %v3459
      %3522 = vmatmul.bf16.gmra.mxu0 %v2594
      %v3523 = vpop.f32.mrf.mxu0
      %v3524 = vadd.f32 %v3427, %v3523
      %v3525 = vpop.f32.mrf.mxu0
      %v3526 = vadd.f32 %v3427, %v3525
      %3527 = vdwg.mxu0
      %v3528 = vmax.f32 %v3482, 0.0
      %v3529 = vmax.f32 %v3496, 0.0
      %v3530 = vmax.f32 %v3510, 0.0
      %v3531 = vmax.f32 %v3524, 0.0
      %v3532 = vmax.f32 %v3484, 0.0
      %v3533 = vmax.f32 %v3498, 0.0
      %v3534 = vmax.f32 %v3512, 0.0
      %v3535 = vmax.f32 %v3526, 0.0
      %v3536 = vpack.c.bf16 %v3532, %v3528
      %v3537 = vpack.c.bf16 %v3533, %v3529
      %v3538 = vpack.c.bf16 %v3534, %v3530
      %v3539 = vpack.c.bf16 %v3535, %v3531
      %v3540 = vld [vmem:[%s584 + $0x200] sm:$0xf]
      %v3541 = vld [vmem:[%s584 + $0x204] sm:$0xf]
      %v3542 = vld [vmem:[%s584 + $0x208] sm:$0xf]
      %v3543 = vld [vmem:[%s584 + $0x20c] sm:$0xf]
      %v3544 = vld [vmem:[%s584 + $0x210] sm:$0xf]
      %v3545 = vld [vmem:[%s584 + $0x214] sm:$0xf]
      %v3546 = vld [vmem:[%s584 + $0x218] sm:$0xf]
      %v3547 = vld [vmem:[%s584 + $0x21c] sm:$0xf]
      %v3548 = vld [vmem:[%s584 + $0x220] sm:$0xf]
      %v3549 = vld [vmem:[%s584 + $0x224] sm:$0xf]
      %v3550 = vld [vmem:[%s584 + $0x228] sm:$0xf]
      %v3551 = vld [vmem:[%s584 + $0x22c] sm:$0xf]
      %v3552 = vld [vmem:[%s584 + $0x230] sm:$0xf]
      %v3553 = vld [vmem:[%s584 + $0x234] sm:$0xf]
      %v3554 = vld [vmem:[%s584 + $0x238] sm:$0xf]
      %v3555 = vld [vmem:[%s584 + $0x23c] sm:$0xf]
      %v3556 = vld [vmem:[%s584 + $0x240] sm:$0xf]
      %v3557 = vld [vmem:[%s584 + $0x244] sm:$0xf]
      %v3558 = vld [vmem:[%s584 + $0x248] sm:$0xf]
      %v3559 = vld [vmem:[%s584 + $0x24c] sm:$0xf]
      %v3560 = vld [vmem:[%s584 + $0x250] sm:$0xf]
      %v3561 = vld [vmem:[%s584 + $0x254] sm:$0xf]
      %v3562 = vld [vmem:[%s584 + $0x258] sm:$0xf]
      %v3563 = vld [vmem:[%s584 + $0x25c] sm:$0xf]
      %v3564 = vld [vmem:[%s584 + $0x260] sm:$0xf]
      %v3565 = vld [vmem:[%s584 + $0x264] sm:$0xf]
      %v3566 = vld [vmem:[%s584 + $0x268] sm:$0xf]
      %v3567 = vld [vmem:[%s584 + $0x26c] sm:$0xf]
      %v3568 = vld [vmem:[%s584 + $0x270] sm:$0xf]
      %v3569 = vld [vmem:[%s584 + $0x274] sm:$0xf]
      %v3570 = vld [vmem:[%s584 + $0x278] sm:$0xf]
      %v3571 = vld [vmem:[%s584 + $0x27c] sm:$0xf]
      %v3572 = vld [vmem:[%s584 + $0x280] sm:$0xf]
      %v3573 = vld [vmem:[%s584 + $0x284] sm:$0xf]
      %v3574 = vld [vmem:[%s584 + $0x288] sm:$0xf]
      %v3575 = vld [vmem:[%s584 + $0x28c] sm:$0xf]
      %v3576 = vld [vmem:[%s584 + $0x290] sm:$0xf]
      %v3577 = vld [vmem:[%s584 + $0x294] sm:$0xf]
      %v3578 = vld [vmem:[%s584 + $0x298] sm:$0xf]
      %v3579 = vld [vmem:[%s584 + $0x29c] sm:$0xf]
      %v3580 = vld [vmem:[%s584 + $0x2a0] sm:$0xf]
      %v3581 = vld [vmem:[%s584 + $0x2a4] sm:$0xf]
      %v3582 = vld [vmem:[%s584 + $0x2a8] sm:$0xf]
      %v3583 = vld [vmem:[%s584 + $0x2ac] sm:$0xf]
      %v3584 = vld [vmem:[%s584 + $0x2b0] sm:$0xf]
      %v3585 = vld [vmem:[%s584 + $0x2b4] sm:$0xf]
      %v3586 = vld [vmem:[%s584 + $0x2b8] sm:$0xf]
      %v3587 = vld [vmem:[%s584 + $0x2bc] sm:$0xf]
      %v3588 = vld [vmem:[%s584 + $0x2c0] sm:$0xf]
      %v3589 = vld [vmem:[%s584 + $0x2c4] sm:$0xf]
      %v3590 = vld [vmem:[%s584 + $0x2c8] sm:$0xf]
      %v3591 = vld [vmem:[%s584 + $0x2cc] sm:$0xf]
      %v3592 = vld [vmem:[%s584 + $0x2d0] sm:$0xf]
      %v3593 = vld [vmem:[%s584 + $0x2d4] sm:$0xf]
      %v3594 = vld [vmem:[%s584 + $0x2d8] sm:$0xf]
      %v3595 = vld [vmem:[%s584 + $0x2dc] sm:$0xf]
      %v3596 = vld [vmem:[%s584 + $0x2e0] sm:$0xf]
      %v3597 = vld [vmem:[%s584 + $0x2e4] sm:$0xf]
      %v3598 = vld [vmem:[%s584 + $0x2e8] sm:$0xf]
      %v3599 = vld [vmem:[%s584 + $0x2ec] sm:$0xf]
      %v3600 = vld [vmem:[%s584 + $0x2f0] sm:$0xf]
      %v3601 = vld [vmem:[%s584 + $0x2f4] sm:$0xf]
      %v3602 = vld [vmem:[%s584 + $0x2f8] sm:$0xf]
      %v3603 = vld [vmem:[%s584 + $0x2fc] sm:$0xf]
      %v3668 = vunpack.c.l.b16 %v3540
      %v3669 = vunpack.c.l.b16 %v3541
      %v3670 = vunpack.c.l.b16 %v3542
      %v3671 = vunpack.c.l.b16 %v3543
      %v3672 = vunpack.c.l.b16 %v3544
      %v3673 = vunpack.c.l.b16 %v3545
      %v3674 = vunpack.c.l.b16 %v3546
      %v3675 = vunpack.c.l.b16 %v3547
      %v3676 = vunpack.c.l.b16 %v3548
      %v3677 = vunpack.c.l.b16 %v3549
      %v3678 = vunpack.c.l.b16 %v3550
      %v3679 = vunpack.c.l.b16 %v3551
      %v3680 = vunpack.c.l.b16 %v3552
      %v3681 = vunpack.c.l.b16 %v3553
      %v3682 = vunpack.c.l.b16 %v3554
      %v3683 = vunpack.c.l.b16 %v3555
      %v3684 = vunpack.c.l.b16 %v3556
      %v3685 = vunpack.c.l.b16 %v3557
      %v3686 = vunpack.c.l.b16 %v3558
      %v3687 = vunpack.c.l.b16 %v3559
      %v3688 = vunpack.c.l.b16 %v3560
      %v3689 = vunpack.c.l.b16 %v3561
      %v3690 = vunpack.c.l.b16 %v3562
      %v3691 = vunpack.c.l.b16 %v3563
      %v3692 = vunpack.c.l.b16 %v3564
      %v3693 = vunpack.c.l.b16 %v3565
      %v3694 = vunpack.c.l.b16 %v3566
      %v3695 = vunpack.c.l.b16 %v3567
      %v3696 = vunpack.c.l.b16 %v3568
      %v3697 = vunpack.c.l.b16 %v3569
      %v3698 = vunpack.c.l.b16 %v3570
      %v3699 = vunpack.c.l.b16 %v3571
      %v3700 = vunpack.c.l.b16 %v3572
      %v3701 = vunpack.c.l.b16 %v3573
      %v3702 = vunpack.c.l.b16 %v3574
      %v3703 = vunpack.c.l.b16 %v3575
      %v3704 = vunpack.c.l.b16 %v3576
      %v3705 = vunpack.c.l.b16 %v3577
      %v3706 = vunpack.c.l.b16 %v3578
      %v3707 = vunpack.c.l.b16 %v3579
      %v3708 = vunpack.c.l.b16 %v3580
      %v3709 = vunpack.c.l.b16 %v3581
      %v3710 = vunpack.c.l.b16 %v3582
      %v3711 = vunpack.c.l.b16 %v3583
      %v3712 = vunpack.c.l.b16 %v3584
      %v3713 = vunpack.c.l.b16 %v3585
      %v3714 = vunpack.c.l.b16 %v3586
      %v3715 = vunpack.c.l.b16 %v3587
      %v3716 = vunpack.c.l.b16 %v3588
      %v3717 = vunpack.c.l.b16 %v3589
      %v3718 = vunpack.c.l.b16 %v3590
      %v3719 = vunpack.c.l.b16 %v3591
      %v3720 = vunpack.c.l.b16 %v3592
      %v3721 = vunpack.c.l.b16 %v3593
      %v3722 = vunpack.c.l.b16 %v3594
      %v3723 = vunpack.c.l.b16 %v3595
      %v3724 = vunpack.c.l.b16 %v3596
      %v3725 = vunpack.c.l.b16 %v3597
      %v3726 = vunpack.c.l.b16 %v3598
      %v3727 = vunpack.c.l.b16 %v3599
      %v3728 = vunpack.c.l.b16 %v3600
      %v3729 = vunpack.c.l.b16 %v3601
      %v3730 = vunpack.c.l.b16 %v3602
      %v3731 = vunpack.c.l.b16 %v3603
      %v3732 = vpack.c.b16 %v3669, %v3668
      %v3733 = vpack.c.b16 %v3671, %v3670
      %v3734 = vpack.c.b16 %v3673, %v3672
      %v3735 = vpack.c.b16 %v3675, %v3674
      %v3736 = vpack.c.b16 %v3677, %v3676
      %v3737 = vpack.c.b16 %v3679, %v3678
      %v3738 = vpack.c.b16 %v3681, %v3680
      %v3739 = vpack.c.b16 %v3683, %v3682
      %v3740 = vpack.c.b16 %v3685, %v3684
      %v3741 = vpack.c.b16 %v3687, %v3686
      %v3742 = vpack.c.b16 %v3689, %v3688
      %v3743 = vpack.c.b16 %v3691, %v3690
      %v3744 = vpack.c.b16 %v3693, %v3692
      %v3745 = vpack.c.b16 %v3695, %v3694
      %v3746 = vpack.c.b16 %v3697, %v3696
      %v3747 = vpack.c.b16 %v3699, %v3698
      %v3748 = vpack.c.b16 %v3701, %v3700
      %v3749 = vpack.c.b16 %v3703, %v3702
      %v3750 = vpack.c.b16 %v3705, %v3704
      %v3751 = vpack.c.b16 %v3707, %v3706
      %v3752 = vpack.c.b16 %v3709, %v3708
      %v3753 = vpack.c.b16 %v3711, %v3710
      %v3754 = vpack.c.b16 %v3713, %v3712
      %v3755 = vpack.c.b16 %v3715, %v3714
      %v3756 = vpack.c.b16 %v3717, %v3716
      %v3757 = vpack.c.b16 %v3719, %v3718
      %v3758 = vpack.c.b16 %v3721, %v3720
      %v3759 = vpack.c.b16 %v3723, %v3722
      %v3760 = vpack.c.b16 %v3725, %v3724
      %v3761 = vpack.c.b16 %v3727, %v3726
      %v3762 = vpack.c.b16 %v3729, %v3728
      %v3763 = vpack.c.b16 %v3731, %v3730
      %3796 = vmatpush.bf16.msra.mxu0 %v3739
      %3797 = vmatpush.bf16.msra.mxu0 %v3738
      %3798 = vmatpush.bf16.msra.mxu0 %v3737
      %3799 = vmatpush.bf16.msra.mxu0 %v3736
      %3800 = vmatpush.bf16.msra.mxu0 %v3735
      %3801 = vmatpush.bf16.msra.mxu0 %v3734
      %3802 = vmatpush.bf16.msra.mxu0 %v3733
      %3803 = vmatpush.bf16.msra.mxu0 %v3732
      %3804 = vmatmul.bf16.gmra.mxu0 %v3536
      %v3805 = vpop.f32.mrf.mxu0
      %v3806 = vadd.f32 0.0, %v3805
      %v3807 = vpop.f32.mrf.mxu0
      %v3808 = vadd.f32 0.0, %v3807
      %3809 = vdwg.mxu0
      %3810 = vmatpush.bf16.msra.mxu0 %v3747
      %3811 = vmatpush.bf16.msra.mxu0 %v3746
      %3812 = vmatpush.bf16.msra.mxu0 %v3745
      %3813 = vmatpush.bf16.msra.mxu0 %v3744
      %3814 = vmatpush.bf16.msra.mxu0 %v3743
      %3815 = vmatpush.bf16.msra.mxu0 %v3742
      %3816 = vmatpush.bf16.msra.mxu0 %v3741
      %3817 = vmatpush.bf16.msra.mxu0 %v3740
      %3818 = vmatmul.bf16.gmra.mxu0 %v3537
      %v3819 = vpop.f32.mrf.mxu0
      %v3820 = vadd.f32 %v3806, %v3819
      %v3821 = vpop.f32.mrf.mxu0
      %v3822 = vadd.f32 %v3808, %v3821
      %3823 = vdwg.mxu0
      %3824 = vmatpush.bf16.msra.mxu0 %v3755
      %3825 = vmatpush.bf16.msra.mxu0 %v3754
      %3826 = vmatpush.bf16.msra.mxu0 %v3753
      %3827 = vmatpush.bf16.msra.mxu0 %v3752
      %3828 = vmatpush.bf16.msra.mxu0 %v3751
      %3829 = vmatpush.bf16.msra.mxu0 %v3750
      %3830 = vmatpush.bf16.msra.mxu0 %v3749
      %3831 = vmatpush.bf16.msra.mxu0 %v3748
      %3832 = vmatmul.bf16.gmra.mxu0 %v3538
      %v3833 = vpop.f32.mrf.mxu0
      %v3834 = vadd.f32 %v3820, %v3833
      %v3835 = vpop.f32.mrf.mxu0
      %v3836 = vadd.f32 %v3822, %v3835
      %3837 = vdwg.mxu0
      %3838 = vmatpush.bf16.msra.mxu0 %v3763
      %3839 = vmatpush.bf16.msra.mxu0 %v3762
      %3840 = vmatpush.bf16.msra.mxu0 %v3761
      %3841 = vmatpush.bf16.msra.mxu0 %v3760
      %3842 = vmatpush.bf16.msra.mxu0 %v3759
      %3843 = vmatpush.bf16.msra.mxu0 %v3758
      %3844 = vmatpush.bf16.msra.mxu0 %v3757
      %3845 = vmatpush.bf16.msra.mxu0 %v3756
      %3846 = vmatmul.bf16.gmra.mxu0 %v3539
      %v3847 = vpop.f32.mrf.mxu0
      %v3848 = vadd.f32 %v3834, %v3847
      %v3849 = vpop.f32.mrf.mxu0
      %v3850 = vadd.f32 %v3836, %v3849
      %3851 = vdwg.mxu0
      %v3852 = vadd.f32 %v3410, %v3848
      %v3853 = vadd.f32 %v3412, %v3850
      %v3854 = vld [vmem:[%s575 + $0x30] sm:$0xff]
      %v3855 = vld [vmem:[%s575 + $0x38] sm:$0xff]
      %v3856 = vld [vmem:[%s575 + $0x70] sm:$0xff]
      %v3857 = vld [vmem:[%s575 + $0x78] sm:$0xff]
      %v3858 = vld [vmem:[%s575 + $0xb0] sm:$0xff]
      %v3859 = vld [vmem:[%s575 + $0xb8] sm:$0xff]
      %v3860 = vld [vmem:[%s575 + $0xf0] sm:$0xff]
      %v3861 = vld [vmem:[%s575 + $0xf8] sm:$0xff]
      %v3862 = vld [vmem:[%s579 + $0xc] sm:$0xf]
      %v3864 = vperm.slane %v3862, 0
      %v3865 = vperm.slane %v3862, 1
      %v3866 = vperm.slane %v3862, 2
      %v3867 = vperm.slane %v3862, 3
      %v3880 = vunpack.c.l.b16 %v3854
      %v3881 = vunpack.c.h.b16 %v3854
      %v3882 = vunpack.c.l.b16 %v3855
      %v3883 = vunpack.c.h.b16 %v3855
      %v3884 = vunpack.c.l.b16 %v3856
      %v3885 = vunpack.c.h.b16 %v3856
      %v3886 = vunpack.c.l.b16 %v3857
      %v3887 = vunpack.c.h.b16 %v3857
      %v3888 = vunpack.c.l.b16 %v3858
      %v3889 = vunpack.c.h.b16 %v3858
      %v3890 = vunpack.c.l.b16 %v3859
      %v3891 = vunpack.c.h.b16 %v3859
      %v3892 = vunpack.c.l.b16 %v3860
      %v3893 = vunpack.c.h.b16 %v3860
      %v3894 = vunpack.c.l.b16 %v3861
      %v3895 = vunpack.c.h.b16 %v3861
      %v3896 = vpack.c.b16 %v3884, %v3880
      %v3897 = vpack.c.b16 %v3885, %v3881
      %v3898 = vpack.c.b16 %v3886, %v3882
      %v3899 = vpack.c.b16 %v3887, %v3883
      %v3900 = vpack.c.b16 %v3892, %v3888
      %v3901 = vpack.c.b16 %v3893, %v3889
      %v3902 = vpack.c.b16 %v3894, %v3890
      %v3903 = vpack.c.b16 %v3895, %v3891
      %3912 = vmatpush.bf16.msra.mxu0 0
      %3913 = vmatpush.bf16.msra.mxu0 0
      %3914 = vmatpush.bf16.msra.mxu0 0
      %3915 = vmatpush.bf16.msra.mxu0 0
      %3916 = vmatpush.bf16.msra.mxu0 0
      %3917 = vmatpush.bf16.msra.mxu0 0
      %3918 = vmatpush.bf16.msra.mxu0 %v3900
      %3919 = vmatpush.bf16.msra.mxu0 %v3896
      %3920 = vmatmul.bf16.gmra.mxu0 %v2594
      %v3921 = vpop.f32.mrf.mxu0
      %v3922 = vadd.f32 %v3864, %v3921
      %v3923 = vpop.f32.mrf.mxu0
      %v3924 = vadd.f32 %v3864, %v3923
      %3925 = vdwg.mxu0
      %3926 = vmatpush.bf16.msra.mxu0 0
      %3927 = vmatpush.bf16.msra.mxu0 0
      %3928 = vmatpush.bf16.msra.mxu0 0
      %3929 = vmatpush.bf16.msra.mxu0 0
      %3930 = vmatpush.bf16.msra.mxu0 0
      %3931 = vmatpush.bf16.msra.mxu0 0
      %3932 = vmatpush.bf16.msra.mxu0 %v3901
      %3933 = vmatpush.bf16.msra.mxu0 %v3897
      %3934 = vmatmul.bf16.gmra.mxu0 %v2594
      %v3935 = vpop.f32.mrf.mxu0
      %v3936 = vadd.f32 %v3865, %v3935
      %v3937 = vpop.f32.mrf.mxu0
      %v3938 = vadd.f32 %v3865, %v3937
      %3939 = vdwg.mxu0
      %3940 = vmatpush.bf16.msra.mxu0 0
      %3941 = vmatpush.bf16.msra.mxu0 0
      %3942 = vmatpush.bf16.msra.mxu0 0
      %3943 = vmatpush.bf16.msra.mxu0 0
      %3944 = vmatpush.bf16.msra.mxu0 0
      %3945 = vmatpush.bf16.msra.mxu0 0
      %3946 = vmatpush.bf16.msra.mxu0 %v3902
      %3947 = vmatpush.bf16.msra.mxu0 %v3898
      %3948 = vmatmul.bf16.gmra.mxu0 %v2594
      %v3949 = vpop.f32.mrf.mxu0
      %v3950 = vadd.f32 %v3866, %v3949
      %v3951 = vpop.f32.mrf.mxu0
      %v3952 = vadd.f32 %v3866, %v3951
      %3953 = vdwg.mxu0
      %3954 = vmatpush.bf16.msra.mxu0 0
      %3955 = vmatpush.bf16.msra.mxu0 0
      %3956 = vmatpush.bf16.msra.mxu0 0
      %3957 = vmatpush.bf16.msra.mxu0 0
      %3958 = vmatpush.bf16.msra.mxu0 0
      %3959 = vmatpush.bf16.msra.mxu0 0
      %3960 = vmatpush.bf16.msra.mxu0 %v3903
      %3961 = vmatpush.bf16.msra.mxu0 %v3899
      %3962 = vmatmul.bf16.gmra.mxu0 %v2594
      %v3963 = vpop.f32.mrf.mxu0
      %v3964 = vadd.f32 %v3867, %v3963
      %v3965 = vpop.f32.mrf.mxu0
      %v3966 = vadd.f32 %v3867, %v3965
      %3967 = vdwg.mxu0
      %v3968 = vmax.f32 %v3922, 0.0
      %v3969 = vmax.f32 %v3936, 0.0
      %v3970 = vmax.f32 %v3950, 0.0
      %v3971 = vmax.f32 %v3964, 0.0
      %v3972 = vmax.f32 %v3924, 0.0
      %v3973 = vmax.f32 %v3938, 0.0
      %v3974 = vmax.f32 %v3952, 0.0
      %v3975 = vmax.f32 %v3966, 0.0
      %v3976 = vpack.c.bf16 %v3972, %v3968
      %v3977 = vpack.c.bf16 %v3973, %v3969
      %v3978 = vpack.c.bf16 %v3974, %v3970
      %v3979 = vpack.c.bf16 %v3975, %v3971
      %v3980 = vld [vmem:[%s584 + $0x300] sm:$0xf]
      %v3981 = vld [vmem:[%s584 + $0x304] sm:$0xf]
      %v3982 = vld [vmem:[%s584 + $0x308] sm:$0xf]
      %v3983 = vld [vmem:[%s584 + $0x30c] sm:$0xf]
      %v3984 = vld [vmem:[%s584 + $0x310] sm:$0xf]
      %v3985 = vld [vmem:[%s584 + $0x314] sm:$0xf]
      %v3986 = vld [vmem:[%s584 + $0x318] sm:$0xf]
      %v3987 = vld [vmem:[%s584 + $0x31c] sm:$0xf]
      %v3988 = vld [vmem:[%s584 + $0x320] sm:$0xf]
      %v3989 = vld [vmem:[%s584 + $0x324] sm:$0xf]
      %v3990 = vld [vmem:[%s584 + $0x328] sm:$0xf]
      %v3991 = vld [vmem:[%s584 + $0x32c] sm:$0xf]
      %v3992 = vld [vmem:[%s584 + $0x330] sm:$0xf]
      %v3993 = vld [vmem:[%s584 + $0x334] sm:$0xf]
      %v3994 = vld [vmem:[%s584 + $0x338] sm:$0xf]
      %v3995 = vld [vmem:[%s584 + $0x33c] sm:$0xf]
      %v3996 = vld [vmem:[%s584 + $0x340] sm:$0xf]
      %v3997 = vld [vmem:[%s584 + $0x344] sm:$0xf]
      %v3998 = vld [vmem:[%s584 + $0x348] sm:$0xf]
      %v3999 = vld [vmem:[%s584 + $0x34c] sm:$0xf]
      %v4000 = vld [vmem:[%s584 + $0x350] sm:$0xf]
      %v4001 = vld [vmem:[%s584 + $0x354] sm:$0xf]
      %v4002 = vld [vmem:[%s584 + $0x358] sm:$0xf]
      %v4003 = vld [vmem:[%s584 + $0x35c] sm:$0xf]
      %v4004 = vld [vmem:[%s584 + $0x360] sm:$0xf]
      %v4005 = vld [vmem:[%s584 + $0x364] sm:$0xf]
      %v4006 = vld [vmem:[%s584 + $0x368] sm:$0xf]
      %v4007 = vld [vmem:[%s584 + $0x36c] sm:$0xf]
      %v4008 = vld [vmem:[%s584 + $0x370] sm:$0xf]
      %v4009 = vld [vmem:[%s584 + $0x374] sm:$0xf]
      %v4010 = vld [vmem:[%s584 + $0x378] sm:$0xf]
      %v4011 = vld [vmem:[%s584 + $0x37c] sm:$0xf]
      %v4012 = vld [vmem:[%s584 + $0x380] sm:$0xf]
      %v4013 = vld [vmem:[%s584 + $0x384] sm:$0xf]
      %v4014 = vld [vmem:[%s584 + $0x388] sm:$0xf]
      %v4015 = vld [vmem:[%s584 + $0x38c] sm:$0xf]
      %v4016 = vld [vmem:[%s584 + $0x390] sm:$0xf]
      %v4017 = vld [vmem:[%s584 + $0x394] sm:$0xf]
      %v4018 = vld [vmem:[%s584 + $0x398] sm:$0xf]
      %v4019 = vld [vmem:[%s584 + $0x39c] sm:$0xf]
      %v4020 = vld [vmem:[%s584 + $0x3a0] sm:$0xf]
      %v4021 = vld [vmem:[%s584 + $0x3a4] sm:$0xf]
      %v4022 = vld [vmem:[%s584 + $0x3a8] sm:$0xf]
      %v4023 = vld [vmem:[%s584 + $0x3ac] sm:$0xf]
      %v4024 = vld [vmem:[%s584 + $0x3b0] sm:$0xf]
      %v4025 = vld [vmem:[%s584 + $0x3b4] sm:$0xf]
      %v4026 = vld [vmem:[%s584 + $0x3b8] sm:$0xf]
      %v4027 = vld [vmem:[%s584 + $0x3bc] sm:$0xf]
      %v4028 = vld [vmem:[%s584 + $0x3c0] sm:$0xf]
      %v4029 = vld [vmem:[%s584 + $0x3c4] sm:$0xf]
      %v4030 = vld [vmem:[%s584 + $0x3c8] sm:$0xf]
      %v4031 = vld [vmem:[%s584 + $0x3cc] sm:$0xf]
      %v4032 = vld [vmem:[%s584 + $0x3d0] sm:$0xf]
      %v4033 = vld [vmem:[%s584 + $0x3d4] sm:$0xf]
      %v4034 = vld [vmem:[%s584 + $0x3d8] sm:$0xf]
      %v4035 = vld [vmem:[%s584 + $0x3dc] sm:$0xf]
      %v4036 = vld [vmem:[%s584 + $0x3e0] sm:$0xf]
      %v4037 = vld [vmem:[%s584 + $0x3e4] sm:$0xf]
      %v4038 = vld [vmem:[%s584 + $0x3e8] sm:$0xf]
      %v4039 = vld [vmem:[%s584 + $0x3ec] sm:$0xf]
      %v4040 = vld [vmem:[%s584 + $0x3f0] sm:$0xf]
      %v4041 = vld [vmem:[%s584 + $0x3f4] sm:$0xf]
      %v4042 = vld [vmem:[%s584 + $0x3f8] sm:$0xf]
      %v4043 = vld [vmem:[%s584 + $0x3fc] sm:$0xf]
      %v4108 = vunpack.c.l.b16 %v3980
      %v4109 = vunpack.c.l.b16 %v3981
      %v4110 = vunpack.c.l.b16 %v3982
      %v4111 = vunpack.c.l.b16 %v3983
      %v4112 = vunpack.c.l.b16 %v3984
      %v4113 = vunpack.c.l.b16 %v3985
      %v4114 = vunpack.c.l.b16 %v3986
      %v4115 = vunpack.c.l.b16 %v3987
      %v4116 = vunpack.c.l.b16 %v3988
      %v4117 = vunpack.c.l.b16 %v3989
      %v4118 = vunpack.c.l.b16 %v3990
      %v4119 = vunpack.c.l.b16 %v3991
      %v4120 = vunpack.c.l.b16 %v3992
      %v4121 = vunpack.c.l.b16 %v3993
      %v4122 = vunpack.c.l.b16 %v3994
      %v4123 = vunpack.c.l.b16 %v3995
      %v4124 = vunpack.c.l.b16 %v3996
      %v4125 = vunpack.c.l.b16 %v3997
      %v4126 = vunpack.c.l.b16 %v3998
      %v4127 = vunpack.c.l.b16 %v3999
      %v4128 = vunpack.c.l.b16 %v4000
      %v4129 = vunpack.c.l.b16 %v4001
      %v4130 = vunpack.c.l.b16 %v4002
      %v4131 = vunpack.c.l.b16 %v4003
      %v4132 = vunpack.c.l.b16 %v4004
      %v4133 = vunpack.c.l.b16 %v4005
      %v4134 = vunpack.c.l.b16 %v4006
      %v4135 = vunpack.c.l.b16 %v4007
      %v4136 = vunpack.c.l.b16 %v4008
      %v4137 = vunpack.c.l.b16 %v4009
      %v4138 = vunpack.c.l.b16 %v4010
      %v4139 = vunpack.c.l.b16 %v4011
      %v4140 = vunpack.c.l.b16 %v4012
      %v4141 = vunpack.c.l.b16 %v4013
      %v4142 = vunpack.c.l.b16 %v4014
      %v4143 = vunpack.c.l.b16 %v4015
      %v4144 = vunpack.c.l.b16 %v4016
      %v4145 = vunpack.c.l.b16 %v4017
      %v4146 = vunpack.c.l.b16 %v4018
      %v4147 = vunpack.c.l.b16 %v4019
      %v4148 = vunpack.c.l.b16 %v4020
      %v4149 = vunpack.c.l.b16 %v4021
      %v4150 = vunpack.c.l.b16 %v4022
      %v4151 = vunpack.c.l.b16 %v4023
      %v4152 = vunpack.c.l.b16 %v4024
      %v4153 = vunpack.c.l.b16 %v4025
      %v4154 = vunpack.c.l.b16 %v4026
      %v4155 = vunpack.c.l.b16 %v4027
      %v4156 = vunpack.c.l.b16 %v4028
      %v4157 = vunpack.c.l.b16 %v4029
      %v4158 = vunpack.c.l.b16 %v4030
      %v4159 = vunpack.c.l.b16 %v4031
      %v4160 = vunpack.c.l.b16 %v4032
      %v4161 = vunpack.c.l.b16 %v4033
      %v4162 = vunpack.c.l.b16 %v4034
      %v4163 = vunpack.c.l.b16 %v4035
      %v4164 = vunpack.c.l.b16 %v4036
      %v4165 = vunpack.c.l.b16 %v4037
      %v4166 = vunpack.c.l.b16 %v4038
      %v4167 = vunpack.c.l.b16 %v4039
      %v4168 = vunpack.c.l.b16 %v4040
      %v4169 = vunpack.c.l.b16 %v4041
      %v4170 = vunpack.c.l.b16 %v4042
      %v4171 = vunpack.c.l.b16 %v4043
      %v4172 = vpack.c.b16 %v4109, %v4108
      %v4173 = vpack.c.b16 %v4111, %v4110
      %v4174 = vpack.c.b16 %v4113, %v4112
      %v4175 = vpack.c.b16 %v4115, %v4114
      %v4176 = vpack.c.b16 %v4117, %v4116
      %v4177 = vpack.c.b16 %v4119, %v4118
      %v4178 = vpack.c.b16 %v4121, %v4120
      %v4179 = vpack.c.b16 %v4123, %v4122
      %v4180 = vpack.c.b16 %v4125, %v4124
      %v4181 = vpack.c.b16 %v4127, %v4126
      %v4182 = vpack.c.b16 %v4129, %v4128
      %v4183 = vpack.c.b16 %v4131, %v4130
      %v4184 = vpack.c.b16 %v4133, %v4132
      %v4185 = vpack.c.b16 %v4135, %v4134
      %v4186 = vpack.c.b16 %v4137, %v4136
      %v4187 = vpack.c.b16 %v4139, %v4138
      %v4188 = vpack.c.b16 %v4141, %v4140
      %v4189 = vpack.c.b16 %v4143, %v4142
      %v4190 = vpack.c.b16 %v4145, %v4144
      %v4191 = vpack.c.b16 %v4147, %v4146
      %v4192 = vpack.c.b16 %v4149, %v4148
      %v4193 = vpack.c.b16 %v4151, %v4150
      %v4194 = vpack.c.b16 %v4153, %v4152
      %v4195 = vpack.c.b16 %v4155, %v4154
      %v4196 = vpack.c.b16 %v4157, %v4156
      %v4197 = vpack.c.b16 %v4159, %v4158
      %v4198 = vpack.c.b16 %v4161, %v4160
      %v4199 = vpack.c.b16 %v4163, %v4162
      %v4200 = vpack.c.b16 %v4165, %v4164
      %v4201 = vpack.c.b16 %v4167, %v4166
      %v4202 = vpack.c.b16 %v4169, %v4168
      %v4203 = vpack.c.b16 %v4171, %v4170
      %4236 = vmatpush.bf16.msra.mxu0 %v4179
      %4237 = vmatpush.bf16.msra.mxu0 %v4178
      %4238 = vmatpush.bf16.msra.mxu0 %v4177
      %4239 = vmatpush.bf16.msra.mxu0 %v4176
      %4240 = vmatpush.bf16.msra.mxu0 %v4175
      %4241 = vmatpush.bf16.msra.mxu0 %v4174
      %4242 = vmatpush.bf16.msra.mxu0 %v4173
      %4243 = vmatpush.bf16.msra.mxu0 %v4172
      %4244 = vmatmul.bf16.gmra.mxu0 %v3976
      %v4245 = vpop.f32.mrf.mxu0
      %v4246 = vadd.f32 0.0, %v4245
      %v4247 = vpop.f32.mrf.mxu0
      %v4248 = vadd.f32 0.0, %v4247
      %4249 = vdwg.mxu0
      %4250 = vmatpush.bf16.msra.mxu0 %v4187
      %4251 = vmatpush.bf16.msra.mxu0 %v4186
      %4252 = vmatpush.bf16.msra.mxu0 %v4185
      %4253 = vmatpush.bf16.msra.mxu0 %v4184
      %4254 = vmatpush.bf16.msra.mxu0 %v4183
      %4255 = vmatpush.bf16.msra.mxu0 %v4182
      %4256 = vmatpush.bf16.msra.mxu0 %v4181
      %4257 = vmatpush.bf16.msra.mxu0 %v4180
      %4258 = vmatmul.bf16.gmra.mxu0 %v3977
      %v4259 = vpop.f32.mrf.mxu0
      %v4260 = vadd.f32 %v4246, %v4259
      %v4261 = vpop.f32.mrf.mxu0
      %v4262 = vadd.f32 %v4248, %v4261
      %4263 = vdwg.mxu0
      %4264 = vmatpush.bf16.msra.mxu0 %v4195
      %4265 = vmatpush.bf16.msra.mxu0 %v4194
      %4266 = vmatpush.bf16.msra.mxu0 %v4193
      %4267 = vmatpush.bf16.msra.mxu0 %v4192
      %4268 = vmatpush.bf16.msra.mxu0 %v4191
      %4269 = vmatpush.bf16.msra.mxu0 %v4190
      %4270 = vmatpush.bf16.msra.mxu0 %v4189
      %4271 = vmatpush.bf16.msra.mxu0 %v4188
      %4272 = vmatmul.bf16.gmra.mxu0 %v3978
      %v4273 = vpop.f32.mrf.mxu0
      %v4274 = vadd.f32 %v4260, %v4273
      %v4275 = vpop.f32.mrf.mxu0
      %v4276 = vadd.f32 %v4262, %v4275
      %4277 = vdwg.mxu0
      %4278 = vmatpush.bf16.msra.mxu0 %v4203
      %4279 = vmatpush.bf16.msra.mxu0 %v4202
      %4280 = vmatpush.bf16.msra.mxu0 %v4201
      %4281 = vmatpush.bf16.msra.mxu0 %v4200
      %4282 = vmatpush.bf16.msra.mxu0 %v4199
      %4283 = vmatpush.bf16.msra.mxu0 %v4198
      %4284 = vmatpush.bf16.msra.mxu0 %v4197
      %4285 = vmatpush.bf16.msra.mxu0 %v4196
      %4286 = vmatmul.bf16.gmra.mxu0 %v3979
      %v4287 = vpop.f32.mrf.mxu0
      %v4288 = vadd.f32 %v4274, %v4287
      %v4289 = vpop.f32.mrf.mxu0
      %v4290 = vadd.f32 %v4276, %v4289
      %4291 = vdwg.mxu0
      %v4292 = vadd.f32 %v3852, %v4288
      %v4293 = vadd.f32 %v3853, %v4290
      %v4294 = vperm.slane %v603, 0
      %v4295 = vadd.f32 %v4292, %v4294
      %v4296 = vadd.f32 %v4293, %v4294
      %v4297 = vadd.f32 %v2532, %v4295
      %v4298 = vadd.f32 %v2533, %v4296
      %v4299 = vsel %vm632, %v4297, 0.0
      %4300 = vadd.xlane.f32.xlu0 %v4299
      %v4301 = vpop.xlane.xlu0 %4300
      %v4302 = vsel %vm632, %v4298, 0.0
      %4303 = vadd.xlane.f32.xlu0 %v4302
      %v4304 = vpop.xlane.xlu0 %4303
      %v4305 = vmul.f32 %v4301, %v1491
      %v4306 = vmul.f32 %v4304, %v1491
      %v4307 = vsub.f32 %v4297, %v4305
      %v4308 = vsub.f32 %v4298, %v4306
      %v4309 = vmul.f32 %v4307, %v4307
      %v4310 = vmul.f32 %v4308, %v4308
      %v4311 = vsel %vm632, %v4309, 0.0
      %4312 = vadd.xlane.f32.xlu0 %v4311
      %v4313 = vpop.xlane.xlu0 %4312
      %v4314 = vsel %vm632, %v4310, 0.0
      %4315 = vadd.xlane.f32.xlu0 %v4314
      %v4316 = vpop.xlane.xlu0 %4315
      %v4317 = vmul.f32 %v4313, %v1491
      %v4318 = vmul.f32 %v4316, %v1491
      %v4319 = vadd.f32 %v4317, 1e-05
      %v4320 = vadd.f32 %v4318, 1e-05
      %v4321 = vrsqrt.pop %v4319
      %v4322 = vmul.f32 %v4321, %v4319
      %v4323 = vmul.f32 %v4322, %v4321
      %v4324 = vmul.f32 0.5, %v4323
      %v4325 = vsub.f32 1.5, %v4324
      %v4326 = vmul.f32 %v4321, %v4325
      %vm4327 = vweird.f32 %v4319
      %vm4328 = vweird.f32 %v4321
      %vm4329 = vmor %vm4327, %vm4328
      %v4330 = vsel %vm4329, %v4321, %v4326
      %v4331 = vrsqrt.pop %v4320
      %v4332 = vmul.f32 %v4331, %v4320
      %v4333 = vmul.f32 %v4332, %v4331
      %v4334 = vmul.f32 0.5, %v4333
      %v4335 = vsub.f32 1.5, %v4334
      %v4336 = vmul.f32 %v4331, %v4335
      %vm4337 = vweird.f32 %v4320
      %vm4338 = vweird.f32 %v4331
      %vm4339 = vmor %vm4337, %vm4338
      %v4340 = vsel %vm4339, %v4331, %v4336
      %v4341 = vmul.f32 %v4307, %v4330
      %v4342 = vmul.f32 %v4308, %v4340
      %v4343 = vperm.slane %v603, 5
      %v4344 = vmul.f32 %v4341, %v4343
      %v4345 = vmul.f32 %v4342, %v4343
      %v4346 = vperm.slane %v603, 6
      %v4347 = vadd.f32 %v4344, %v4346
      %v4348 = vadd.f32 %v4345, %v4346
      %4349 = vst.msk [vmem:[#allocation2] sm:$0xff] %vm632, %v4347
      %4350 = vst.msk [vmem:[#allocation2 + $0x8] sm:$0xff] %vm632, %v4348
      %p4351 = scmp.eq.s32.totalorder %s25, 1
      // Predicated region
      $region81: #{transformer_decoder_forward.1} parent=75 // pred_check
        %p4352 = pneg %p4351
      $region82: #{transformer_decoder_forward.1} parent=75 // pred_check_branch
        %4354 = sbr.rel (%p4352) target = $region84
      $region83: #{transformer_decoder_forward.1} parent=75 // pred_region
        %v4355 = vpack.c.bf16 %v4348, %v4347
        %v4356 = vld [vmem:[%s12] sm:$0xf]
        %v4357 = vld [vmem:[%s12 + $0x4] sm:$0xf]
        %v4358 = vld [vmem:[%s12 + $0x8] sm:$0xf]
        %v4359 = vld [vmem:[%s12 + $0xc] sm:$0xf]
        %v4360 = vld [vmem:[%s13] sm:$0x1]
        %v4362 = vperm.slane %v4360, 0
        %v4368 = vunpack.c.l.b16 %v4356
        %v4369 = vunpack.c.l.b16 %v4357
        %v4370 = vunpack.c.l.b16 %v4358
        %v4371 = vunpack.c.l.b16 %v4359
        %v4372 = vpack.c.b16 %v4369, %v4368
        %v4373 = vpack.c.b16 %v4371, %v4370
        %v4377 = vsel %vm632, %v4355, 0
        %4379 = vmatpush.bf16.msra.mxu0 0
        %4380 = vmatpush.bf16.msra.mxu0 0
        %4381 = vmatpush.bf16.msra.mxu0 0
        %4382 = vmatpush.bf16.msra.mxu0 0
        %4383 = vmatpush.bf16.msra.mxu0 0
        %4384 = vmatpush.bf16.msra.mxu0 0
        %4385 = vmatpush.bf16.msra.mxu0 %v4373
        %4386 = vmatpush.bf16.msra.mxu0 %v4372
        %4387 = vmatmul.bf16.gmra.mxu0 %v4377
        %v4388 = vpop.f32.mrf.mxu0
        %v4389 = vadd.f32 %v4362, %v4388
        %v4390 = vpop.f32.mrf.mxu0
        %v4391 = vadd.f32 %v4362, %v4390
        %4392 = vdwg.mxu0
        %4393 = vst [vmem:[%s14] sm:$0xff] %v4389
        %4394 = vst [vmem:[%s14 + $0x8] sm:$0xff] %v4391
      $region84: #{transformer_decoder_forward.1} parent=75 // pred_fallthru
        _
      // Predicated region
      $region85: #{transformer_decoder_forward.1} parent=75 // pred_check
        %p4395 = pneg %p372
      $region86: #{transformer_decoder_forward.1} parent=75 // pred_check_branch
        %4397 = sbr.rel (%p4395) target = $region88
      $region87: #{transformer_decoder_forward.1} parent=75 // pred_region
        _
      $region88: #{transformer_decoder_forward.1} parent=75 // pred_fallthru
        _
      // Predicated region
      $region89: #{transformer_decoder_forward.1} parent=75 // pred_check
        %p4398 = pneg %p372
      $region90: #{transformer_decoder_forward.1} parent=75 // pred_check_branch
        %4400 = sbr.rel (%p4398) target = $region92
      $region91: #{transformer_decoder_forward.1} parent=75 // pred_region
        _
      $region92: #{transformer_decoder_forward.1} parent=75 // pred_fallthru
        _
    $region76: #{transformer_decoder_forward.1} parent=5 // pred_fallthru
      _
    %p4401 = scmp.le.s32.totalorder 2, %s20
    // Predicated region
    $region93: #{transformer_decoder_forward.1} parent=5 // pred_check
      %p4402 = pneg %p4401
    $region94: #{transformer_decoder_forward.1} parent=5 // pred_check_branch
      %4404 = sbr.rel (%p4402) target = $region96
    $region95: #{transformer_decoder_forward.1} parent=5 // pred_region
      %s4405 = ssub.s32 %s20, 2
    $region96: #{transformer_decoder_forward.1} parent=5 // pred_fallthru
      _
  $region6: #{transformer_decoder_forward.1} parent=0 // loop_footer
    %s24 = sadd.s32 1, %s20
  $region7: #{transformer_decoder_forward.1} parent=0 // loop_footer_branch
    %19 = sbr.rel target = $region3
  $region8: #{transformer_decoder_forward.1} parent=0 // loop_exit
    _

</llo_original>
